<compile_context>
chip_gen: v7x
topology: tpu7x:2x2x1
jax: 0.10.0
libtpu: 0.0.40
codegen_flags: <defaults>
</compile_context>

<pallas_src>
import jax
import jax.numpy as jnp
from jax.experimental import pallas as pl
from jax.experimental.pallas import tpu as pltpu

F_IN = 32      # number_of_input_features (small demo size)
H1 = 2048      # AllPairs.out_features == net.fc2 in_features
H2 = 2048      # net.fc2 out_features
OUT = 1        # net.fc3 out_features

TN_H2 = 512    # H2 chunk width streamed per grid step (divides 2048 -> 4 chunks)
TM_CAP = 1024  # cap on pairwise rows per tile (bounds h1 scratch + h2 temp)


def _round_up(x, m):
    return (x + m - 1) // m * m


def _cdiv(a, b):
    return -(-a // b)


def _fused_kernel(vw_ref, uw_ref, w2_ref, b2_ref, w3_ref, b3_ref, out_ref, h1_s):
    """Grid = (i tiles, j tiles, H2 chunks); H2 is the innermost (accumulation) axis.

    vw_ref : (ti_m, H1) bf16   AllPairs rows for this i tile (AllPairs.fc3 bias folded in)
    uw_ref : (tj,   H1) bf16   AllPairs rows for this j tile
    w2_ref : (H1,   tn) bf16   net.fc2 weight chunk (streamed along H2)
    b2_ref : (1,    tn) f32    net.fc2 bias chunk
    w3_ref : (1,    tn) f32    net.fc3 weight chunk as a lane-dense row
    b3_ref : (1,     1) f32    net.fc3 bias
    out_ref: (ti_m, tj, 1) f32 resident fc3 accumulator for this (i, j) tile
    h1_s   : (ti_m*tj, H1) bf16 scratch: relu(AllPairs) rows, built once per (i, j) tile
    """
    n = pl.program_id(2)
    ti_m = vw_ref.shape[0]
    tj = uw_ref.shape[0]
    tm = ti_m * tj

    @pl.when(n == 0)
    def _init():
        # Build relu(AllPairs(x)) for this (i, j) tile with VPU broadcast-adds (no K=32
        # MXU matmul), then reuse it for every streamed H2 chunk:
        #   h1[t*tj + jj] = relu(vW[i0 + t] + uW[j0 + jj])
        for t in range(ti_m):                                   # static unroll
            h1_s[pl.ds(t * tj, tj), :] = jnp.maximum(
                uw_ref[...] + vw_ref[pl.ds(t, 1), :], 0.0
            ).astype(h1_s.dtype)
        # Seed the resident output accumulator with the fc3 bias.
        out_ref[...] = jnp.broadcast_to(b3_ref[...], (tm, 1)).reshape(ti_m, tj, 1)

    # net.fc2 chunk: bf16 x bf16 MXU matmul with f32 accumulation, f32 bias + relu epilogue.
    h2 = jnp.dot(h1_s[...], w2_ref[...], preferred_element_type=jnp.float32)
    h2 = jnp.maximum(h2 + b2_ref[...], 0.0)

    # net.fc3 partial sum for this H2 chunk: VPU multiply + lane reduction
    # (avoids a lane-padded N=1 MXU matmul).
    part = jnp.sum(h2 * w3_ref[...], axis=-1, keepdims=True)    # (tm, 1) f32
    out_ref[...] += part.reshape(ti_m, tj, 1)


def _pick_tiling(b):
    """Choose (ti_m, bi_pad, tj, bj_pad) with ti_m*tj <= TM_CAP, tiles multiples of 8."""
    b8 = _round_up(b, 8)
    # j axis: tiles of at most 128 rows.
    nj = max(1, _cdiv(b8, 128))
    tj = _round_up(_cdiv(b8, nj), 8)
    bj_pad = _round_up(b, tj)
    # i axis: as many rows as the TM_CAP budget allows (multiple of 8).
    ti_cap = max(8, (TM_CAP // tj) // 8 * 8)
    ti_m = min(b8, ti_cap)
    if ti_m > 8 and _round_up(b, ti_m) == ti_m:
        # Single i tile but splittable: prefer >= 2 parallel tiles (v7x megacore).
        ti_m = max(8, _round_up(ti_m // 2, 8))
    bi_pad = _round_up(b, ti_m)
    return ti_m, bi_pad, tj, bj_pad


def _vmem_budget_bytes(ti_m, tj, tn):
    tm = ti_m * tj
    bf16, f32 = 2, 4
    total = 0
    total += 2 * ti_m * H1 * bf16        # vW tile (double-buffered)
    total += 2 * tj * H1 * bf16          # uW tile (double-buffered)
    total += 2 * H1 * tn * bf16          # fc2 weight chunk (double-buffered stream)
    total += 2 * 2 * max(tn, 128) * f32  # fc2 bias + fc3 weight chunks
    total += 2 * ti_m * tj * f32         # resident output block + writeback buffer
    total += tm * H1 * bf16              # h1 scratch
    total += 4 * tm * tn * f32           # headroom for the (tm, tn) h2 temporaries
    return total


def effective_similarity_forward(x, params):
    (w_ap1, b_ap1, w_ap2, b_ap2, w_ap3, b_ap3,
     w_fc2, b_fc2, w_fc3, b_fc3) = params
    two_b, _ = x.shape
    b = two_b // 2

    # ---- AllPairs branch linears (tiny B x 32 matmuls, stay in XLA) ----
    u = x[:b] @ w_ap1 + b_ap1[0]          # AllPairs.fc1 branch, (B, F)
    v = x[b:] @ w_ap2 + b_ap2[0]          # AllPairs.fc2 branch, (B, F)
    # Distribute AllPairs.fc3 over the pairwise sum:
    #   relu(AllPairs(x))[i*B + j] = relu(vW[i] + uW[j])
    uw = (u @ w_ap3).astype(jnp.bfloat16)             # (B, H1); bias folded into vW only
    vw = (v @ w_ap3 + b_ap3[0]).astype(jnp.bfloat16)  # (B, H1)

    # ---- tiling ----
    ti_m, bi_pad, tj, bj_pad = _pick_tiling(b)
    tm = ti_m * tj
    tn = TN_H2
    ni, nj, nn = bi_pad // ti_m, bj_pad // tj, H2 // tn
    grid = (ni, nj, nn)

    uw_p = jnp.pad(uw, ((0, bj_pad - b), (0, 0)))
    vw_p = jnp.pad(vw, ((0, bi_pad - b), (0, 0)))
    w2_bf16 = w_fc2.astype(jnp.bfloat16)  # halves HBM traffic for the dominant weight
    w3_row = w_fc3.reshape(1, H2)         # fc3 weights as a lane-dense (1, H2) row

    vmem_limit = min(56 * 1024 * 1024,
                     max(32 * 1024 * 1024,
                         _vmem_budget_bytes(ti_m, tj, tn) + 8 * 1024 * 1024))

    out3 = pl.pallas_call(
        _fused_kernel,
        out_shape=jax.ShapeDtypeStruct((bi_pad, bj_pad, OUT), jnp.float32),
        grid_spec=pltpu.PrefetchScalarGridSpec(
            num_scalar_prefetch=0,
            grid=grid,
            in_specs=[
                pl.BlockSpec((ti_m, H1), lambda i, j, n: (i, 0)),   # vW tile (bf16)
                pl.BlockSpec((tj, H1),   lambda i, j, n: (j, 0)),   # uW tile (bf16)
                pl.BlockSpec((H1, tn),   lambda i, j, n: (0, n)),   # fc2 weight chunk (bf16)
                pl.BlockSpec((1, tn),    lambda i, j, n: (0, n)),   # fc2 bias chunk
                pl.BlockSpec((1, tn),    lambda i, j, n: (0, n)),   # fc3 weight chunk
                pl.BlockSpec((1, OUT),   lambda i, j, n: (0, 0)),   # fc3 bias
            ],
            out_specs=pl.BlockSpec((ti_m, tj, OUT), lambda i, j, n: (i, j, 0)),
            scratch_shapes=[pltpu.VMEM((tm, H1), jnp.bfloat16)],    # h1 rows for this tile
        ),
        compiler_params=pltpu.CompilerParams(
            dimension_semantics=("parallel", "parallel", "arbitrary"),
            vmem_limit_bytes=int(vmem_limit),
        ),
    )(vw_p, uw_p, w2_bf16, b_fc2, w3_row, b_fc3)

    # Undo padding: out3[i, j, 0] is the score for pair row i*B + j.
    return out3[:b, :b].reshape(b * b, OUT)


def _linear_params(key, fan_in, fan_out):
    """Deterministic PyTorch-Linear-style init; weight returned transposed (in, out)."""
    kw, kb = jax.random.split(key)
    bound = 1.0 / jnp.sqrt(jnp.float32(fan_in))
    w_t = jax.random.uniform(kw, (fan_in, fan_out), jnp.float32, -bound, bound)
    bias = jax.random.uniform(kb, (1, fan_out), jnp.float32, -bound, bound)
    return w_t, bias


def make_params(key):
    ks = jax.random.split(key, 5)
    w_ap1, b_ap1 = _linear_params(ks[0], F_IN, F_IN)   # AllPairs.fc1
    w_ap2, b_ap2 = _linear_params(ks[1], F_IN, F_IN)   # AllPairs.fc2
    w_ap3, b_ap3 = _linear_params(ks[2], F_IN, H1)     # AllPairs.fc3
    w_fc2, b_fc2 = _linear_params(ks[3], H1, H2)       # net.fc2
    w_fc3, b_fc3 = _linear_params(ks[4], H2, OUT)      # net.fc3
    return (w_ap1, b_ap1, w_ap2, b_ap2, w_ap3, b_ap3,
            w_fc2, b_fc2, w_fc3, b_fc3)


def reference_forward(x, params):
    """Pure f32 JAX reference matching the PyTorch module semantics."""
    (w_ap1, b_ap1, w_ap2, b_ap2, w_ap3, b_ap3,
     w_fc2, b_fc2, w_fc3, b_fc3) = params
    b = x.shape[0] // 2
    u = x[:b] @ w_ap1 + b_ap1[0]
    v = x[b:] @ w_ap2 + b_ap2[0]
    s = (v[:, None, :] + u[None, :, :]).reshape(b * b, -1)   # row i*B+j = v[i]+u[j]
    h1 = jax.nn.relu(s @ w_ap3 + b_ap3[0])
    h2 = jax.nn.relu(h1 @ w_fc2 + b_fc2[0])
    return h2 @ w_fc3 + b_fc3[0]


if __name__ == "__main__":
    key = jax.random.PRNGKey(0)
    kx, kp, kx2 = jax.random.split(key, 3)
    params = make_params(kp)

    # Primary small case: x is (2B, F) with B = 8 -> 64 pairwise rows, grid (1, 1, 4).
    x = jax.random.normal(kx, (16, F_IN), jnp.float32)
    out = jax.block_until_ready(effective_similarity_forward(x, params))
    ref = reference_forward(x, params)
    assert out.shape == (64, OUT), out.shape
    # bf16 fc2 operands (f32 accumulation) -> ~0.1-1% relative error vs the f32 reference.
    assert jnp.allclose(out, ref, rtol=2e-2, atol=2e-2), float(jnp.max(jnp.abs(out - ref)))

    # Second case exercising multiple i tiles + i-axis padding: B = 24, grid (2, 1, 4).
    x2 = jax.random.normal(kx2, (48, F_IN), jnp.float32)
    out2 = jax.block_until_ready(effective_similarity_forward(x2, params))
    ref2 = reference_forward(x2, params)
    assert out2.shape == (576, OUT), out2.shape
    assert jnp.allclose(out2, ref2, rtol=2e-2, atol=2e-2), float(jnp.max(jnp.abs(out2 - ref2)))

    print("KERNEL_OK")
</pallas_src>

<mosaic_0001>
module attributes {stable_mosaic.version = 11 : i64} {
  func.func @_fused_kernel(%arg0: i32, %arg1: i32, %arg2: i32, %arg3: memref<8x2048xbf16, #tpu.memory_space<vmem>>, %arg4: memref<8x2048xbf16, #tpu.memory_space<vmem>>, %arg5: memref<2048x512xbf16, #tpu.memory_space<vmem>>, %arg6: memref<1x512xf32, #tpu.memory_space<vmem>>, %arg7: memref<1x512xf32, #tpu.memory_space<vmem>>, %arg8: memref<1x1xf32, #tpu.memory_space<vmem>>, %arg9: memref<8x8x1xf32, #tpu.memory_space<vmem>>, %arg10: memref<64x2048xbf16, #tpu.memory_space<vmem>>) attributes {dimension_semantics = [#tpu.dimension_semantics<parallel>, #tpu.dimension_semantics<parallel>, #tpu.dimension_semantics<arbitrary>], iteration_bounds = array<i64: 1, 1, 4>, scalar_prefetch = 0 : i64, scratch_operands = 1 : i64, tpu.core_type = #tpu.core_type<tc>, window_params = [{transform_indices = @transform_0, window_bounds = array<i64: 8, 2048>}, {transform_indices = @transform_1, window_bounds = array<i64: 8, 2048>}, {transform_indices = @transform_2, window_bounds = array<i64: 2048, 512>}, {transform_indices = @transform_3, window_bounds = array<i64: 1, 512>}, {transform_indices = @transform_4, window_bounds = array<i64: 1, 512>}, {pipeline_mode = #tpu.pipeline_mode<synchronous>, transform_indices = @transform_5, window_bounds = array<i64: 1, 1>}, {transform_indices = @transform_6, window_bounds = array<i64: 8, 8, 1>}]} {
    %c0_i32 = arith.constant 0 : i32
    %0 = arith.cmpi eq, %arg2, %c0_i32 : i32
    %1 = arith.extui %0 : i1 to i32
    %c0_i32_0 = arith.constant 0 : i32
    %2 = arith.cmpi ne, %1, %c0_i32_0 : i32
    scf.if %2 {
      %c0_16 = arith.constant 0 : index
      %c0_17 = arith.constant 0 : index
      %20 = vector.load %arg4[%c0_16, %c0_17] : memref<8x2048xbf16, #tpu.memory_space<vmem>>, vector<8x2048xbf16>
      %c0_18 = arith.constant 0 : index
      %c0_19 = arith.constant 0 : index
      %21 = vector.load %arg3[%c0_18, %c0_19] : memref<8x2048xbf16, #tpu.memory_space<vmem>>, vector<1x2048xbf16>
      %22 = vector.broadcast %21 : vector<1x2048xbf16> to vector<8x2048xbf16>
      %23 = arith.addf %20, %22 : vector<8x2048xbf16>
      %cst_20 = arith.constant 0.000000e+00 : bf16
      %24 = vector.broadcast %cst_20 : bf16 to vector<8x2048xbf16>
      %25 = arith.maximumf %23, %24 : vector<8x2048xbf16>
      %c0_21 = arith.constant 0 : index
      %c0_22 = arith.constant 0 : index
      %26 = vector.load %arg10[%c0_21, %c0_22] : memref<64x2048xbf16, #tpu.memory_space<vmem>>, vector<8x2048xbf16>
      tpu.vector_store %arg10[%c0_21, %c0_22], %25 {strides = array<i32>} : memref<64x2048xbf16, #tpu.memory_space<vmem>>, vector<8x2048xbf16>,
      %c0_23 = arith.constant 0 : index
      %c0_24 = arith.constant 0 : index
      %27 = vector.load %arg4[%c0_23, %c0_24] : memref<8x2048xbf16, #tpu.memory_space<vmem>>, vector<8x2048xbf16>
      %c1 = arith.constant 1 : index
      %c0_25 = arith.constant 0 : index
      %28 = vector.load %arg3[%c1, %c0_25] : memref<8x2048xbf16, #tpu.memory_space<vmem>>, vector<1x2048xbf16>
      %29 = vector.broadcast %28 : vector<1x2048xbf16> to vector<8x2048xbf16>
      %30 = arith.addf %27, %29 : vector<8x2048xbf16>
      %cst_26 = arith.constant 0.000000e+00 : bf16
      %31 = vector.broadcast %cst_26 : bf16 to vector<8x2048xbf16>
      %32 = arith.maximumf %30, %31 : vector<8x2048xbf16>
      %c8 = arith.constant 8 : index
      %c0_27 = arith.constant 0 : index
      %33 = vector.load %arg10[%c8, %c0_27] : memref<64x2048xbf16, #tpu.memory_space<vmem>>, vector<8x2048xbf16>
      tpu.vector_store %arg10[%c8, %c0_27], %32 {strides = array<i32>} : memref<64x2048xbf16, #tpu.memory_space<vmem>>, vector<8x2048xbf16>,
      %c0_28 = arith.constant 0 : index
      %c0_29 = arith.constant 0 : index
      %34 = vector.load %arg4[%c0_28, %c0_29] : memref<8x2048xbf16, #tpu.memory_space<vmem>>, vector<8x2048xbf16>
      %c2 = arith.constant 2 : index
      %c0_30 = arith.constant 0 : index
      %35 = vector.load %arg3[%c2, %c0_30] : memref<8x2048xbf16, #tpu.memory_space<vmem>>, vector<1x2048xbf16>
      %36 = vector.broadcast %35 : vector<1x2048xbf16> to vector<8x2048xbf16>
      %37 = arith.addf %34, %36 : vector<8x2048xbf16>
      %cst_31 = arith.constant 0.000000e+00 : bf16
      %38 = vector.broadcast %cst_31 : bf16 to vector<8x2048xbf16>
      %39 = arith.maximumf %37, %38 : vector<8x2048xbf16>
      %c16 = arith.constant 16 : index
      %c0_32 = arith.constant 0 : index
      %40 = vector.load %arg10[%c16, %c0_32] : memref<64x2048xbf16, #tpu.memory_space<vmem>>, vector<8x2048xbf16>
      tpu.vector_store %arg10[%c16, %c0_32], %39 {strides = array<i32>} : memref<64x2048xbf16, #tpu.memory_space<vmem>>, vector<8x2048xbf16>,
      %c0_33 = arith.constant 0 : index
      %c0_34 = arith.constant 0 : index
      %41 = vector.load %arg4[%c0_33, %c0_34] : memref<8x2048xbf16, #tpu.memory_space<vmem>>, vector<8x2048xbf16>
      %c3 = arith.constant 3 : index
      %c0_35 = arith.constant 0 : index
      %42 = vector.load %arg3[%c3, %c0_35] : memref<8x2048xbf16, #tpu.memory_space<vmem>>, vector<1x2048xbf16>
      %43 = vector.broadcast %42 : vector<1x2048xbf16> to vector<8x2048xbf16>
      %44 = arith.addf %41, %43 : vector<8x2048xbf16>
      %cst_36 = arith.constant 0.000000e+00 : bf16
      %45 = vector.broadcast %cst_36 : bf16 to vector<8x2048xbf16>
      %46 = arith.maximumf %44, %45 : vector<8x2048xbf16>
      %c24 = arith.constant 24 : index
      %c0_37 = arith.constant 0 : index
      %47 = vector.load %arg10[%c24, %c0_37] : memref<64x2048xbf16, #tpu.memory_space<vmem>>, vector<8x2048xbf16>
      tpu.vector_store %arg10[%c24, %c0_37], %46 {strides = array<i32>} : memref<64x2048xbf16, #tpu.memory_space<vmem>>, vector<8x2048xbf16>,
      %c0_38 = arith.constant 0 : index
      %c0_39 = arith.constant 0 : index
      %48 = vector.load %arg4[%c0_38, %c0_39] : memref<8x2048xbf16, #tpu.memory_space<vmem>>, vector<8x2048xbf16>
      %c4 = arith.constant 4 : index
      %c0_40 = arith.constant 0 : index
      %49 = vector.load %arg3[%c4, %c0_40] : memref<8x2048xbf16, #tpu.memory_space<vmem>>, vector<1x2048xbf16>
      %50 = vector.broadcast %49 : vector<1x2048xbf16> to vector<8x2048xbf16>
      %51 = arith.addf %48, %50 : vector<8x2048xbf16>
      %cst_41 = arith.constant 0.000000e+00 : bf16
      %52 = vector.broadcast %cst_41 : bf16 to vector<8x2048xbf16>
      %53 = arith.maximumf %51, %52 : vector<8x2048xbf16>
      %c32 = arith.constant 32 : index
      %c0_42 = arith.constant 0 : index
      %54 = vector.load %arg10[%c32, %c0_42] : memref<64x2048xbf16, #tpu.memory_space<vmem>>, vector<8x2048xbf16>
      tpu.vector_store %arg10[%c32, %c0_42], %53 {strides = array<i32>} : memref<64x2048xbf16, #tpu.memory_space<vmem>>, vector<8x2048xbf16>,
      %c0_43 = arith.constant 0 : index
      %c0_44 = arith.constant 0 : index
      %55 = vector.load %arg4[%c0_43, %c0_44] : memref<8x2048xbf16, #tpu.memory_space<vmem>>, vector<8x2048xbf16>
      %c5 = arith.constant 5 : index
      %c0_45 = arith.constant 0 : index
      %56 = vector.load %arg3[%c5, %c0_45] : memref<8x2048xbf16, #tpu.memory_space<vmem>>, vector<1x2048xbf16>
      %57 = vector.broadcast %56 : vector<1x2048xbf16> to vector<8x2048xbf16>
      %58 = arith.addf %55, %57 : vector<8x2048xbf16>
      %cst_46 = arith.constant 0.000000e+00 : bf16
      %59 = vector.broadcast %cst_46 : bf16 to vector<8x2048xbf16>
      %60 = arith.maximumf %58, %59 : vector<8x2048xbf16>
      %c40 = arith.constant 40 : index
      %c0_47 = arith.constant 0 : index
      %61 = vector.load %arg10[%c40, %c0_47] : memref<64x2048xbf16, #tpu.memory_space<vmem>>, vector<8x2048xbf16>
      tpu.vector_store %arg10[%c40, %c0_47], %60 {strides = array<i32>} : memref<64x2048xbf16, #tpu.memory_space<vmem>>, vector<8x2048xbf16>,
      %c0_48 = arith.constant 0 : index
      %c0_49 = arith.constant 0 : index
      %62 = vector.load %arg4[%c0_48, %c0_49] : memref<8x2048xbf16, #tpu.memory_space<vmem>>, vector<8x2048xbf16>
      %c6 = arith.constant 6 : index
      %c0_50 = arith.constant 0 : index
      %63 = vector.load %arg3[%c6, %c0_50] : memref<8x2048xbf16, #tpu.memory_space<vmem>>, vector<1x2048xbf16>
      %64 = vector.broadcast %63 : vector<1x2048xbf16> to vector<8x2048xbf16>
      %65 = arith.addf %62, %64 : vector<8x2048xbf16>
      %cst_51 = arith.constant 0.000000e+00 : bf16
      %66 = vector.broadcast %cst_51 : bf16 to vector<8x2048xbf16>
      %67 = arith.maximumf %65, %66 : vector<8x2048xbf16>
      %c48 = arith.constant 48 : index
      %c0_52 = arith.constant 0 : index
      %68 = vector.load %arg10[%c48, %c0_52] : memref<64x2048xbf16, #tpu.memory_space<vmem>>, vector<8x2048xbf16>
      tpu.vector_store %arg10[%c48, %c0_52], %67 {strides = array<i32>} : memref<64x2048xbf16, #tpu.memory_space<vmem>>, vector<8x2048xbf16>,
      %c0_53 = arith.constant 0 : index
      %c0_54 = arith.constant 0 : index
      %69 = vector.load %arg4[%c0_53, %c0_54] : memref<8x2048xbf16, #tpu.memory_space<vmem>>, vector<8x2048xbf16>
      %c7 = arith.constant 7 : index
      %c0_55 = arith.constant 0 : index
      %70 = vector.load %arg3[%c7, %c0_55] : memref<8x2048xbf16, #tpu.memory_space<vmem>>, vector<1x2048xbf16>
      %71 = vector.broadcast %70 : vector<1x2048xbf16> to vector<8x2048xbf16>
      %72 = arith.addf %69, %71 : vector<8x2048xbf16>
      %cst_56 = arith.constant 0.000000e+00 : bf16
      %73 = vector.broadcast %cst_56 : bf16 to vector<8x2048xbf16>
      %74 = arith.maximumf %72, %73 : vector<8x2048xbf16>
      %c56 = arith.constant 56 : index
      %c0_57 = arith.constant 0 : index
      %75 = vector.load %arg10[%c56, %c0_57] : memref<64x2048xbf16, #tpu.memory_space<vmem>>, vector<8x2048xbf16>
      tpu.vector_store %arg10[%c56, %c0_57], %74 {strides = array<i32>} : memref<64x2048xbf16, #tpu.memory_space<vmem>>, vector<8x2048xbf16>,
      %c0_58 = arith.constant 0 : index
      %c0_59 = arith.constant 0 : index
      %76 = vector.load %arg8[%c0_58, %c0_59] : memref<1x1xf32, #tpu.memory_space<vmem>>, vector<1x1xf32>
      %77 = vector.shape_cast %76 : vector<1x1xf32> to vector<1x1xf32>
      %78 = vector.broadcast %77 : vector<1x1xf32> to vector<64x1xf32>
      %79 = vector.shape_cast %78 : vector<64x1xf32> to vector<8x8x1xf32>
      %c0_60 = arith.constant 0 : index
      %c0_61 = arith.constant 0 : index
      %c0_62 = arith.constant 0 : index
      %80 = vector.load %arg9[%c0_60, %c0_61, %c0_62] : memref<8x8x1xf32, #tpu.memory_space<vmem>>, vector<8x8x1xf32>
      tpu.vector_store %arg9[%c0_60, %c0_61, %c0_62], %79 {strides = array<i32>} : memref<8x8x1xf32, #tpu.memory_space<vmem>>, vector<8x8x1xf32>,
    } else {
    }
    %c0 = arith.constant 0 : index
    %c0_1 = arith.constant 0 : index
    %3 = vector.load %arg10[%c0, %c0_1] : memref<64x2048xbf16, #tpu.memory_space<vmem>>, vector<64x2048xbf16>
    %c0_2 = arith.constant 0 : index
    %c0_3 = arith.constant 0 : index
    %4 = vector.load %arg5[%c0_2, %c0_3] : memref<2048x512xbf16, #tpu.memory_space<vmem>>, vector<2048x512xbf16>
    %cst = arith.constant dense<0.000000e+00> : vector<64x512xf32>
    %5 = tpu.matmul %3, %4, %cst {dimension_numbers = #tpu.dot_dimension_numbers<[1], [0], [0], [1], [0, 0, 1, 1], [], []>} : vector<64x2048xbf16>, vector<2048x512xbf16>, vector<64x512xf32> -> vector<64x512xf32>
    %c0_4 = arith.constant 0 : index
    %c0_5 = arith.constant 0 : index
    %6 = vector.load %arg6[%c0_4, %c0_5] : memref<1x512xf32, #tpu.memory_space<vmem>>, vector<1x512xf32>
    %7 = vector.broadcast %6 : vector<1x512xf32> to vector<64x512xf32>
    %8 = arith.addf %5, %7 : vector<64x512xf32>
    %cst_6 = arith.constant 0.000000e+00 : f32
    %9 = vector.broadcast %cst_6 : f32 to vector<64x512xf32>
    %10 = arith.maximumf %8, %9 : vector<64x512xf32>
    %c0_7 = arith.constant 0 : index
    %c0_8 = arith.constant 0 : index
    %11 = vector.load %arg7[%c0_7, %c0_8] : memref<1x512xf32, #tpu.memory_space<vmem>>, vector<1x512xf32>
    %12 = vector.broadcast %11 : vector<1x512xf32> to vector<64x512xf32>
    %13 = arith.mulf %10, %12 : vector<64x512xf32>
    %cst_9 = arith.constant dense<0.000000e+00> : vector<64xf32>
    %14 = vector.multi_reduction <add>, %13, %cst_9 [1] : vector<64x512xf32> to vector<64xf32>
    %15 = vector.shape_cast %14 : vector<64xf32> to vector<64x1xf32>
    %c0_10 = arith.constant 0 : index
    %c0_11 = arith.constant 0 : index
    %c0_12 = arith.constant 0 : index
    %16 = vector.load %arg9[%c0_10, %c0_11, %c0_12] : memref<8x8x1xf32, #tpu.memory_space<vmem>>, vector<8x8x1xf32>
    %17 = vector.shape_cast %15 : vector<64x1xf32> to vector<8x8x1xf32>
    %18 = arith.addf %16, %17 : vector<8x8x1xf32>
    %c0_13 = arith.constant 0 : index
    %c0_14 = arith.constant 0 : index
    %c0_15 = arith.constant 0 : index
    %19 = vector.load %arg9[%c0_13, %c0_14, %c0_15] : memref<8x8x1xf32, #tpu.memory_space<vmem>>, vector<8x8x1xf32>
    tpu.vector_store %arg9[%c0_13, %c0_14, %c0_15], %18 {strides = array<i32>} : memref<8x8x1xf32, #tpu.memory_space<vmem>>, vector<8x8x1xf32>,
    return
  }
  func.func @transform_0(%arg0: i32, %arg1: i32, %arg2: i32) -> (i32, i32) {
    %c0_i32 = arith.constant 0 : i32
    %c0_i32_0 = arith.constant 0 : i32
    return %arg0, %c0_i32 : i32, i32
  }
  func.func @transform_1(%arg0: i32, %arg1: i32, %arg2: i32) -> (i32, i32) {
    %c0_i32 = arith.constant 0 : i32
    %c0_i32_0 = arith.constant 0 : i32
    return %arg1, %c0_i32 : i32, i32
  }
  func.func @transform_2(%arg0: i32, %arg1: i32, %arg2: i32) -> (i32, i32) {
    %c0_i32 = arith.constant 0 : i32
    %c0_i32_0 = arith.constant 0 : i32
    return %c0_i32, %arg2 : i32, i32
  }
  func.func @transform_3(%arg0: i32, %arg1: i32, %arg2: i32) -> (i32, i32) {
    %c0_i32 = arith.constant 0 : i32
    %c0_i32_0 = arith.constant 0 : i32
    return %c0_i32, %arg2 : i32, i32
  }
  func.func @transform_4(%arg0: i32, %arg1: i32, %arg2: i32) -> (i32, i32) {
    %c0_i32 = arith.constant 0 : i32
    %c0_i32_0 = arith.constant 0 : i32
    return %c0_i32, %arg2 : i32, i32
  }
  func.func @transform_5(%arg0: i32, %arg1: i32, %arg2: i32) -> (i32, i32) {
    %c0_i32 = arith.constant 0 : i32
    %c0_i32_0 = arith.constant 0 : i32
    %c0_i32_1 = arith.constant 0 : i32
    return %c0_i32, %c0_i32_0 : i32, i32
  }
  func.func @transform_6(%arg0: i32, %arg1: i32, %arg2: i32) -> (i32, i32, i32) {
    %c0_i32 = arith.constant 0 : i32
    %c0_i32_0 = arith.constant 0 : i32
    return %arg0, %arg1, %c0_i32 : i32, i32, i32
  }
}

</mosaic_0001>

<llo_original>
// kernel: tpu_custom_call.1
$region0: #{tpu_custom_call.1}
  #allocation0 [shape = 'u32[]', space=smem, size = 0x4, offset = 0x4, fixed_abs, tag = 'smem constant byte address 0x4 - core index']
  #allocation1 [shape = 'u32[144,128]{1,0:T(1,128)}', space=vmem, size = 0x12000, scoped, tag = 'internal scratch']
  #allocation2 [shape = 'bf16[64,2048]{1,0:T(16,128)(2,1)}', space=vmem, size = 0x40000, scoped, tag = 'scratch operand']
  #allocation3 [shape = 'f32[1,1]{1,0:T(1,128)S(1)}', space=vmem, size = 0x200, scoped, tag = 'scoped memory for tpu_custom_call.1']
  %s0 = inlined_call_operand.hbm [shape: bf16[8,2048], index: 0, kind: input, shape index: {}]
  %s1 = inlined_call_operand.hbm [shape: bf16[8,2048], index: 1, kind: input, shape index: {}]
  %s2 = inlined_call_operand.hbm [shape: bf16[2048,2048], index: 2, kind: input, shape index: {}]
  %s3 = inlined_call_operand.hbm [shape: f32[1,2048], index: 3, kind: input, shape index: {}]
  %s4 = inlined_call_operand.hbm [shape: f32[1,2048], index: 4, kind: input, shape index: {}]
  %s5 = inlined_call_operand.<no memory space> [shape: f32[1,1], index: 5, kind: input, shape index: {}]
  %s6 = inlined_call_operand.vmem [shape: f32[8,8,1], index: 6, kind: output, shape index: {}]
  %s7 = sld [smem:[#allocation0]]
  $region81: #{tpu_custom_call.1} parent=0
    _
  %s9 = ssub.s32 1, %s7
  %s10 = scalar_select 0, %s9, %s7
  %v11 = vstv %s5
  %12 = vst [vmem:[#allocation3] sm:$0x1] %v11
  $region1: #{tpu_custom_call.1} parent=0
    #allocation4 [shape = 'u8[32768]{0}', space=vmem, size = 0x8000, scoped, tag = 'input window, operand 0, single buffered']
    #allocation5 [shape = 's32[2]{0}', space=sflag, size = 0x8, scoped, tag = 'scoped memory for tpu_custom_call.1']
    #allocation6 [shape = 'u8[32768]{0}', space=vmem, size = 0x8000, scoped, tag = 'input window, operand 1, single buffered']
    #allocation7 [shape = 's32[1]{0}', space=sflag, size = 0x4, scoped, tag = 'scoped memory for tpu_custom_call.1']
    #allocation8 [shape = 'u8[4194304]{0}', space=vmem, size = 0x400000, scoped, tag = 'input window, operand 2']
    #allocation9 [shape = 'u8[4096]{0}', space=vmem, size = 0x1000, scoped, tag = 'input window, operand 3']
    #allocation10 [shape = 'u8[4096]{0}', space=vmem, size = 0x1000, scoped, tag = 'input window, operand 4']
    %13 = vsyncpa [#allocation5], 0
    %14 = vsyncpa [#allocation7], 0
    loop: start=0, step=1, limit=6
    $region2: #{tpu_custom_call.1} parent=1 // loop_pre_header
      _
    $region3: #{tpu_custom_call.1} parent=1 // loop_header
      %s16 = sphi 0, %s20
      %p17 = scmp.ge.s32.totalorder %s16, 6
      %s23 = sphi 0, %s42
      %s24 = sphi 0, %s38
      %s25 = sphi 0, %s34
      %s26 = sphi 0, %s23
      %s27 = sphi 0, %s24
      %s28 = sphi 0, %s25
      %s29 = sphi 0, %s26
      %s30 = sphi 0, %s27
      %s31 = sphi 0, %s28
      %s45 = sphi 0, %s47
      %s48 = sphi 0, %s45
      %s49 = sphi 0, %s48
      %s65 = sphi 0, %s49
      %s71 = sphi 0, %s73
      %s74 = sphi 0, %s71
      %s75 = sphi 0, %s74
      %s91 = sphi 0, %s75
      %s97 = sphi 0, %s99
      %s100 = sphi 0, %s97
      %s101 = sphi 0, %s100
      %s117 = sphi 0, %s101
      %s123 = sphi 0, %s125
      %s126 = sphi 0, %s123
      %s127 = sphi 0, %s126
      %s143 = sphi 0, %s127
      %s149 = sphi 0, %s151
      %s152 = sphi 0, %s149
      %s153 = sphi 0, %s152
      %s169 = sphi 0, %s153
      %s173 = sphi 0, %s173
      %s175 = sphi 0, %s173
      %s176 = sphi 0, %s175
      %s190 = sphi 0, %s176
      %s198 = sphi 0, %s200
      %s201 = sphi 0, %s198
      %s202 = sphi 0, %s201
      %s218 = sphi 0, %s202
    $region4: #{tpu_custom_call.1} parent=1 // loop_header_branch
      %19 = sbr.rel (%p17) target = $region8
    $region5: #{tpu_custom_call.1} parent=1 // loop_body
      %s21 = ssub.s32 %s16, 1
      %s22 = ssub.s32 %s16, 2
      %s32 = sadd.s32 1, %s25
      %p33 = scmp.ge.s32.totalorder %s32, 4
      %s34 = scalar_select %p33, 0, %s32
      %s35 = sadd.s32 1, %s24
      %s36 = scalar_select %p33, %s35, %s24
      %p37 = scmp.ge.s32.totalorder %s36, 1
      %s38 = scalar_select %p37, 0, %s36
      %s39 = sadd.s32 1, %s23
      %s40 = scalar_select %p37, %s39, %s23
      %p41 = scmp.ge.s32.totalorder %s40, 1
      %s42 = scalar_select %p41, 0, %s40
      %s43 = ssub.s32 %s23, %s42
      %p44 = scmp.eq.s32.totalorder %s43, 0
      %s46 = sadd.s32 %s45, 1
      %s47 = scalar_select %p44, %s45, %s46
      %p50 = pneg %p44
      %p51 = scmp.eq.s32.totalorder %s16, 3
      %p52 = por %p50, %p51
      %p53 = scmp.ne.s32.totalorder %s45, %s48
      %p54 = scmp.eq.s32.totalorder %s16, 0
      %p55 = por %p53, %p54
      %p56 = scmp.ne.s32.totalorder %s45, %s48
      %p57 = scmp.eq.s32.totalorder %s21, 3
      %p58 = por %p56, %p57
      %p59 = scmp.ne.s32.totalorder %s48, %s49
      %p60 = scmp.eq.s32.totalorder %s21, 0
      %p61 = por %p59, %p60
      %p62 = scmp.ne.s32.totalorder %s48, %s49
      %p63 = scmp.eq.s32.totalorder %s22, 3
      %p64 = por %p62, %p63
      %p66 = scmp.ne.s32.totalorder %s49, %s65
      %p67 = scmp.eq.s32.totalorder %s22, 0
      %p68 = por %p66, %p67
      %s69 = ssub.s32 %s24, %s38
      %p70 = scmp.eq.s32.totalorder %s69, 0
      %s72 = sadd.s32 %s71, 1
      %s73 = scalar_select %p70, %s71, %s72
      %p76 = pneg %p70
      %p77 = scmp.eq.s32.totalorder %s16, 3
      %p78 = por %p76, %p77
      %p79 = scmp.ne.s32.totalorder %s71, %s74
      %p80 = scmp.eq.s32.totalorder %s16, 0
      %p81 = por %p79, %p80
      %p82 = scmp.ne.s32.totalorder %s71, %s74
      %p83 = scmp.eq.s32.totalorder %s21, 3
      %p84 = por %p82, %p83
      %p85 = scmp.ne.s32.totalorder %s74, %s75
      %p86 = scmp.eq.s32.totalorder %s21, 0
      %p87 = por %p85, %p86
      %p88 = scmp.ne.s32.totalorder %s74, %s75
      %p89 = scmp.eq.s32.totalorder %s22, 3
      %p90 = por %p88, %p89
      %p92 = scmp.ne.s32.totalorder %s75, %s91
      %p93 = scmp.eq.s32.totalorder %s22, 0
      %p94 = por %p92, %p93
      %s95 = ssub.s32 %s25, %s34
      %p96 = scmp.eq.s32.totalorder %s95, 0
      %s98 = sadd.s32 %s97, 1
      %s99 = scalar_select %p96, %s97, %s98
      %p102 = pneg %p96
      %p103 = scmp.eq.s32.totalorder %s16, 3
      %p104 = por %p102, %p103
      %p105 = scmp.ne.s32.totalorder %s97, %s100
      %p106 = scmp.eq.s32.totalorder %s16, 0
      %p107 = por %p105, %p106
      %p108 = scmp.ne.s32.totalorder %s97, %s100
      %p109 = scmp.eq.s32.totalorder %s21, 3
      %p110 = por %p108, %p109
      %p111 = scmp.ne.s32.totalorder %s100, %s101
      %p112 = scmp.eq.s32.totalorder %s21, 0
      %p113 = por %p111, %p112
      %p114 = scmp.ne.s32.totalorder %s100, %s101
      %p115 = scmp.eq.s32.totalorder %s22, 3
      %p116 = por %p114, %p115
      %p118 = scmp.ne.s32.totalorder %s101, %s117
      %p119 = scmp.eq.s32.totalorder %s22, 0
      %p120 = por %p118, %p119
      %s121 = ssub.s32 %s25, %s34
      %p122 = scmp.eq.s32.totalorder %s121, 0
      %s124 = sadd.s32 %s123, 1
      %s125 = scalar_select %p122, %s123, %s124
      %p128 = pneg %p122
      %p129 = scmp.eq.s32.totalorder %s16, 3
      %p130 = por %p128, %p129
      %p131 = scmp.ne.s32.totalorder %s123, %s126
      %p132 = scmp.eq.s32.totalorder %s16, 0
      %p133 = por %p131, %p132
      %p134 = scmp.ne.s32.totalorder %s123, %s126
      %p135 = scmp.eq.s32.totalorder %s21, 3
      %p136 = por %p134, %p135
      %p137 = scmp.ne.s32.totalorder %s126, %s127
      %p138 = scmp.eq.s32.totalorder %s21, 0
      %p139 = por %p137, %p138
      %p140 = scmp.ne.s32.totalorder %s126, %s127
      %p141 = scmp.eq.s32.totalorder %s22, 3
      %p142 = por %p140, %p141
      %p144 = scmp.ne.s32.totalorder %s127, %s143
      %p145 = scmp.eq.s32.totalorder %s22, 0
      %p146 = por %p144, %p145
      %s147 = ssub.s32 %s25, %s34
      %p148 = scmp.eq.s32.totalorder %s147, 0
      %s150 = sadd.s32 %s149, 1
      %s151 = scalar_select %p148, %s149, %s150
      %p154 = pneg %p148
      %p155 = scmp.eq.s32.totalorder %s16, 3
      %p156 = por %p154, %p155
      %p157 = scmp.ne.s32.totalorder %s149, %s152
      %p158 = scmp.eq.s32.totalorder %s16, 0
      %p159 = por %p157, %p158
      %p160 = scmp.ne.s32.totalorder %s149, %s152
      %p161 = scmp.eq.s32.totalorder %s21, 3
      %p162 = por %p160, %p161
      %p163 = scmp.ne.s32.totalorder %s152, %s153
      %p164 = scmp.eq.s32.totalorder %s21, 0
      %p165 = por %p163, %p164
      %p166 = scmp.ne.s32.totalorder %s152, %s153
      %p167 = scmp.eq.s32.totalorder %s22, 3
      %p168 = por %p166, %p167
      %p170 = scmp.ne.s32.totalorder %s153, %s169
      %p171 = scmp.eq.s32.totalorder %s22, 0
      %p172 = por %p170, %p171
      %s174 = sadd.s32 %s173, 1
      %p177 = scmp.eq.s32.totalorder %s16, 3
      %p178 = scmp.ne.s32.totalorder %s173, %s175
      %p179 = scmp.eq.s32.totalorder %s16, 0
      %p180 = por %p178, %p179
      %p181 = scmp.ne.s32.totalorder %s173, %s175
      %p182 = scmp.eq.s32.totalorder %s21, 3
      %p183 = por %p181, %p182
      %p184 = scmp.ne.s32.totalorder %s175, %s176
      %p185 = scmp.eq.s32.totalorder %s21, 0
      %p186 = por %p184, %p185
      %p187 = scmp.ne.s32.totalorder %s175, %s176
      %p188 = scmp.eq.s32.totalorder %s22, 3
      %p189 = por %p187, %p188
      %p191 = scmp.ne.s32.totalorder %s176, %s190
      %p192 = scmp.eq.s32.totalorder %s22, 0
      %p193 = por %p191, %p192
      %s194 = ssub.s32 %s23, %s42
      %s195 = ssub.s32 %s24, %s38
      %s196 = sor.u32 %s194, %s195
      %p197 = scmp.eq.s32.totalorder %s196, 0
      %s199 = sadd.s32 %s198, 1
      %s200 = scalar_select %p197, %s198, %s199
      %p203 = pneg %p197
      %p204 = scmp.eq.s32.totalorder %s16, 3
      %p205 = por %p203, %p204
      %p206 = scmp.ne.s32.totalorder %s198, %s201
      %p207 = scmp.eq.s32.totalorder %s16, 0
      %p208 = por %p206, %p207
      %p209 = scmp.ne.s32.totalorder %s198, %s201
      %p210 = scmp.eq.s32.totalorder %s21, 3
      %p211 = por %p209, %p210
      %p212 = scmp.ne.s32.totalorder %s201, %s202
      %p213 = scmp.eq.s32.totalorder %s21, 0
      %p214 = por %p212, %p213
      %p215 = scmp.ne.s32.totalorder %s201, %s202
      %p216 = scmp.eq.s32.totalorder %s22, 3
      %p217 = por %p215, %p216
      %p219 = scmp.ne.s32.totalorder %s202, %s218
      %p220 = scmp.eq.s32.totalorder %s22, 0
      %p221 = por %p219, %p220
      %p222 = scmp.le.s32.totalorder 1, %s16
      %p223 = scmp.lt.s32.totalorder %s16, 5
      %p224 = pnand %p222, %p223
      %p225 = pneg %p224
      // Predicated region
      $region9: #{tpu_custom_call.1} parent=5 // pred_check
        _
      $region10: #{tpu_custom_call.1} parent=5 // pred_check_branch
        %227 = sbr.rel (%p224) target = $region12
      $region11: #{tpu_custom_call.1} parent=5 // pred_region
        %s228 = ssub.s32 %s16, 1
        // Predicated region
        $region13: #{tpu_custom_call.1} parent=11 // pred_check
          %p229 = pneg %p61
        $region14: #{tpu_custom_call.1} parent=11 // pred_check_branch
          %231 = sbr.rel (%p229) target = $region16
        $region15: #{tpu_custom_call.1} parent=11 // pred_region
          %s233 = ssub.s32 1024, 1024
          %234 = vsyncadd [#allocation5], %s233
          %s235 = smul.addr %s26, 16
          %s236 = smul.addr %s235, 64
          %s237 = scalar_lea.hbm %s0, %s236
          %s239 = sshll.u32 [#allocation4], 4
          %s240 = int_to_ptr.vmem [resolvable:$true] %s239
          %242 = dma.hbm_to_vmem [thread:$0]  %s237, 1024, %s240, [#allocation5]
        $region16: #{tpu_custom_call.1} parent=11 // pred_fallthru
          _
        // Predicated region
        $region17: #{tpu_custom_call.1} parent=11 // pred_check
          %p243 = pneg %p87
        $region18: #{tpu_custom_call.1} parent=11 // pred_check_branch
          %245 = sbr.rel (%p243) target = $region20
        $region19: #{tpu_custom_call.1} parent=11 // pred_region
          %s247 = ssub.s32 1024, 1024
          %248 = vsyncadd [#allocation7], %s247
          %s249 = smul.addr %s27, 16
          %s250 = smul.addr %s249, 64
          %s251 = scalar_lea.hbm %s1, %s250
          %s253 = sshll.u32 [#allocation6], 4
          %s254 = int_to_ptr.vmem [resolvable:$true] %s253
          %256 = dma.hbm_to_vmem [thread:$0]  %s251, 1024, %s254, [#allocation7]
        $region20: #{tpu_custom_call.1} parent=11 // pred_fallthru
          _
        // Predicated region
        $region21: #{tpu_custom_call.1} parent=11 // pred_check
          %p257 = pneg %p186
        $region22: #{tpu_custom_call.1} parent=11 // pred_check_branch
          %259 = sbr.rel (%p257) target = $region24
        $region23: #{tpu_custom_call.1} parent=11 // pred_region
          _
        $region24: #{tpu_custom_call.1} parent=11 // pred_fallthru
          _
      $region12: #{tpu_custom_call.1} parent=5 // pred_fallthru
        _
      %p260 = scmp.lt.s32.totalorder %s16, 4
      // Predicated region
      $region25: #{tpu_custom_call.1} parent=5 // pred_check
        %p261 = pneg %p260
      $region26: #{tpu_custom_call.1} parent=5 // pred_check_branch
        %263 = sbr.rel (%p261) target = $region28
      $region27: #{tpu_custom_call.1} parent=5 // pred_region
        // Predicated region
        $region29: #{tpu_custom_call.1} parent=27 // pred_check
          %p264 = pneg %p107
        $region30: #{tpu_custom_call.1} parent=27 // pred_check_branch
          %266 = sbr.rel (%p264) target = $region32
        $region31: #{tpu_custom_call.1} parent=27 // pred_region
          %s267 = sand.u32 %s16, 1
          %s268 = scalar_lea.sflag [#allocation5], %s267
          %s269 = sand.u32 %s97, 1
          %s270 = smul.addr %s269, 4096
          %s271 = scalar_lea.vmem [#allocation8], %s270
          %s272 = smul.u32 4, %s25
          %s274 = ssub.s32 65536, 65536
          %275 = vsyncadd %s268, %s274
          %s276 = smul.addr %s272, 64
          %s277 = scalar_lea.hbm %s2, %s276
          %s278 = sshll.u32 %s271, 4
          %s279 = int_to_ptr.vmem [resolvable:$true] %s278
          %284 = dma.hbm_to_vmem [thread:$0]  %s277, 65536, %s279, %s268, 1024, 256, 16
        $region32: #{tpu_custom_call.1} parent=27 // pred_fallthru
          _
        // Predicated region
        $region33: #{tpu_custom_call.1} parent=27 // pred_check
          %p285 = pneg %p133
        $region34: #{tpu_custom_call.1} parent=27 // pred_check_branch
          %287 = sbr.rel (%p285) target = $region36
        $region35: #{tpu_custom_call.1} parent=27 // pred_region
          %s288 = sand.u32 %s16, 1
          %s289 = scalar_lea.sflag [#allocation5], %s288
          %s290 = sand.u32 %s123, 1
          %s291 = smul.addr %s290, 4
          %s292 = scalar_lea.vmem [#allocation9], %s291
          %s293 = smul.u32 4, %s25
          %s295 = ssub.s32 64, 64
          %296 = vsyncadd %s289, %s295
          %s297 = smul.addr %s293, 16
          %s298 = scalar_lea.hbm %s3, %s297
          %s300 = sshll.u32 %s292, 4
          %s301 = int_to_ptr.vmem [resolvable:$true] %s300
          %303 = dma.hbm_to_vmem [thread:$0]  %s298, 64, %s301, %s289
        $region36: #{tpu_custom_call.1} parent=27 // pred_fallthru
          _
        // Predicated region
        $region37: #{tpu_custom_call.1} parent=27 // pred_check
          %p304 = pneg %p159
        $region38: #{tpu_custom_call.1} parent=27 // pred_check_branch
          %306 = sbr.rel (%p304) target = $region40
        $region39: #{tpu_custom_call.1} parent=27 // pred_region
          %s307 = sand.u32 %s16, 1
          %s308 = scalar_lea.sflag [#allocation5], %s307
          %s309 = sand.u32 %s149, 1
          %s310 = smul.addr %s309, 4
          %s311 = scalar_lea.vmem [#allocation10], %s310
          %s312 = smul.u32 4, %s25
          %s314 = ssub.s32 64, 64
          %315 = vsyncadd %s308, %s314
          %s316 = smul.addr %s312, 16
          %s317 = scalar_lea.hbm %s4, %s316
          %s319 = sshll.u32 %s311, 4
          %s320 = int_to_ptr.vmem [resolvable:$true] %s319
          %322 = dma.hbm_to_vmem [thread:$0]  %s317, 64, %s320, %s308
        $region40: #{tpu_custom_call.1} parent=27 // pred_fallthru
          _
      $region28: #{tpu_custom_call.1} parent=5 // pred_fallthru
        _
      %p323 = scmp.le.s32.totalorder 1, %s16
      %p324 = scmp.lt.s32.totalorder %s16, 5
      %p325 = pnand %p323, %p324
      %p326 = pneg %p325
      // Predicated region
      $region41: #{tpu_custom_call.1} parent=5 // pred_check
        _
      $region42: #{tpu_custom_call.1} parent=5 // pred_check_branch
        %328 = sbr.rel (%p325) target = $region44
      $region43: #{tpu_custom_call.1} parent=5 // pred_region
        %s329 = ssub.s32 %s16, 1
        // Predicated region
        $region45: #{tpu_custom_call.1} parent=43 // pred_check
          %p330 = pneg %p61
        $region46: #{tpu_custom_call.1} parent=43 // pred_check_branch
          %332 = sbr.rel (%p330) target = $region48
        $region47: #{tpu_custom_call.1} parent=43 // pred_region
          %333 = dma.done [#allocation5], 1024
        $region48: #{tpu_custom_call.1} parent=43 // pred_fallthru
          _
        // Predicated region
        $region49: #{tpu_custom_call.1} parent=43 // pred_check
          %p334 = pneg %p87
        $region50: #{tpu_custom_call.1} parent=43 // pred_check_branch
          %336 = sbr.rel (%p334) target = $region52
        $region51: #{tpu_custom_call.1} parent=43 // pred_region
          %337 = dma.done [#allocation7], 1024
        $region52: #{tpu_custom_call.1} parent=43 // pred_fallthru
          _
        %s338 = sand.u32 %s21, 1
        %s339 = scalar_lea.sflag [#allocation5], %s338
        %s340 = sand.u32 %s100, 1
        %s341 = smul.addr %s340, 4096
        %s342 = scalar_lea.vmem [#allocation8], %s341
        // Predicated region
        $region53: #{tpu_custom_call.1} parent=43 // pred_check
          %p343 = pneg %p113
        $region54: #{tpu_custom_call.1} parent=43 // pred_check_branch
          %345 = sbr.rel (%p343) target = $region56
        $region55: #{tpu_custom_call.1} parent=43 // pred_region
          %346 = dma.done %s339, 65536
        $region56: #{tpu_custom_call.1} parent=43 // pred_fallthru
          _
        %s347 = sand.u32 %s21, 1
        %s348 = scalar_lea.sflag [#allocation5], %s347
        %s349 = sand.u32 %s126, 1
        %s350 = smul.addr %s349, 4
        %s351 = scalar_lea.vmem [#allocation9], %s350
        // Predicated region
        $region57: #{tpu_custom_call.1} parent=43 // pred_check
          %p352 = pneg %p139
        $region58: #{tpu_custom_call.1} parent=43 // pred_check_branch
          %354 = sbr.rel (%p352) target = $region60
        $region59: #{tpu_custom_call.1} parent=43 // pred_region
          %355 = dma.done %s348, 64
        $region60: #{tpu_custom_call.1} parent=43 // pred_fallthru
          _
        %s356 = sand.u32 %s21, 1
        %s357 = scalar_lea.sflag [#allocation5], %s356
        %s358 = sand.u32 %s152, 1
        %s359 = smul.addr %s358, 4
        %s360 = scalar_lea.vmem [#allocation10], %s359
        // Predicated region
        $region61: #{tpu_custom_call.1} parent=43 // pred_check
          %p361 = pneg %p165
        $region62: #{tpu_custom_call.1} parent=43 // pred_check_branch
          %363 = sbr.rel (%p361) target = $region64
        $region63: #{tpu_custom_call.1} parent=43 // pred_region
          %364 = dma.done %s357, 64
        $region64: #{tpu_custom_call.1} parent=43 // pred_fallthru
          _
        %p365 = pneg %p61
        %p366 = pneg %p58
        %p367 = pneg %p87
        %p368 = pneg %p84
        %s369 = sand.u32 %s21, 1
        %s370 = scalar_lea.sflag [#allocation5], %s369
        %s371 = sand.u32 %s100, 1
        %s372 = smul.addr %s371, 4096
        %s373 = scalar_lea.vmem [#allocation8], %s372
        %p374 = pneg %p113
        %p375 = pneg %p110
        %s376 = sand.u32 %s21, 1
        %s377 = scalar_lea.sflag [#allocation5], %s376
        %s378 = sand.u32 %s126, 1
        %s379 = smul.addr %s378, 4
        %s380 = scalar_lea.vmem [#allocation9], %s379
        %p381 = pneg %p139
        %p382 = pneg %p136
        %s383 = sand.u32 %s21, 1
        %s384 = scalar_lea.sflag [#allocation5], %s383
        %s385 = sand.u32 %s152, 1
        %s386 = smul.addr %s385, 4
        %s387 = scalar_lea.vmem [#allocation10], %s386
        %p388 = pneg %p165
        %p389 = pneg %p162
        %p390 = pneg %p186
        %p391 = pneg %p183
        %p392 = pneg %p214
        %p393 = pneg %p211
        %s394 = smul.u32 8, %s26
        %p395 = scmp.lt.s32.totalorder %s394, 7
        %s396 = scalar_select %p395, %s394, 7
        %p397 = scmp.lt.s32.totalorder %s27, 0
        %s398 = scalar_select %p397, %s27, 0
        %s399 = sadd.s32 %s398, %s396
        %s400 = smul.addr %s399, 8
        %s401 = scalar_lea.vmem %s6, %s400
        %s402 = smul.u32 4, %s28
        %s403 = smul.u32 4, %s28
        %s404 = smul.u32 4, %s28
        %s405 = smul.u32 8, %s26
        %p406 = scmp.lt.s32.totalorder %s405, 7
        %s407 = scalar_select %p406, %s405, 7
        %p408 = scmp.lt.s32.totalorder %s27, 0
        %s409 = scalar_select %p408, %s27, 0
        %s410 = sadd.s32 %s409, %s407
        %s411 = smul.addr %s410, 8
        %s412 = scalar_lea.vmem %s6, %s411
        %s413 = smul.u32 8, %s26
        %p415 = scmp.eq.s32.totalorder %s28, 0
        // Predicated region
        $region65: #{tpu_custom_call.1} parent=43 // pred_check
          %p416 = pneg %p415
        $region66: #{tpu_custom_call.1} parent=43 // pred_check_branch
          %418 = sbr.rel (%p416) target = $region68
        $region67: #{tpu_custom_call.1} parent=43 // pred_region
          %v419 = vld [vmem:[#allocation6] sm:$0xff]
          %v420 = vld [vmem:[#allocation6 + $0x8] sm:$0xff]
          %v421 = vld [vmem:[#allocation6 + $0x10] sm:$0xff]
          %v422 = vld [vmem:[#allocation6 + $0x18] sm:$0xff]
          %v423 = vld [vmem:[#allocation6 + $0x20] sm:$0xff]
          %v424 = vld [vmem:[#allocation6 + $0x28] sm:$0xff]
          %v425 = vld [vmem:[#allocation6 + $0x30] sm:$0xff]
          %v426 = vld [vmem:[#allocation6 + $0x38] sm:$0xff]
          %v427 = vld [vmem:[#allocation4] sm:$0x11]
          %v428 = vld [vmem:[#allocation4 + $0x8] sm:$0x11]
          %v429 = vld [vmem:[#allocation4 + $0x10] sm:$0x11]
          %v430 = vld [vmem:[#allocation4 + $0x18] sm:$0x11]
          %v431 = vld [vmem:[#allocation4 + $0x20] sm:$0x11]
          %v432 = vld [vmem:[#allocation4 + $0x28] sm:$0x11]
          %v433 = vld [vmem:[#allocation4 + $0x30] sm:$0x11]
          %v434 = vld [vmem:[#allocation4 + $0x38] sm:$0x11]
          %v443 = vunpack.c.l.b16 %v427
          %v444 = vunpack.c.h.b16 %v427
          %v445 = vunpack.c.l.b16 %v428
          %v446 = vunpack.c.h.b16 %v428
          %v447 = vunpack.c.l.b16 %v429
          %v448 = vunpack.c.h.b16 %v429
          %v449 = vunpack.c.l.b16 %v430
          %v450 = vunpack.c.h.b16 %v430
          %v451 = vunpack.c.l.b16 %v431
          %v452 = vunpack.c.h.b16 %v431
          %v453 = vunpack.c.l.b16 %v432
          %v454 = vunpack.c.h.b16 %v432
          %v455 = vunpack.c.l.b16 %v433
          %v456 = vunpack.c.h.b16 %v433
          %v457 = vunpack.c.l.b16 %v434
          %v458 = vunpack.c.h.b16 %v434
          %v459 = vpack.c.b16 %v443, %v443
          %v460 = vpack.c.b16 %v444, %v444
          %v461 = vpack.c.b16 %v445, %v445
          %v462 = vpack.c.b16 %v446, %v446
          %v463 = vpack.c.b16 %v447, %v447
          %v464 = vpack.c.b16 %v448, %v448
          %v465 = vpack.c.b16 %v449, %v449
          %v466 = vpack.c.b16 %v450, %v450
          %v467 = vpack.c.b16 %v451, %v451
          %v468 = vpack.c.b16 %v452, %v452
          %v469 = vpack.c.b16 %v453, %v453
          %v470 = vpack.c.b16 %v454, %v454
          %v471 = vpack.c.b16 %v455, %v455
          %v472 = vpack.c.b16 %v456, %v456
          %v473 = vpack.c.b16 %v457, %v457
          %v474 = vpack.c.b16 %v458, %v458
          %v476 = vpack.i.b16 %v459, %v459
          %v478 = vlaneseq
          %v479 = vshrl.u32 %v478, 7
          %v480 = vsub.s32 0, %v479
          %v481 = vrot.slane %v476, %v480
          %v483 = vpack.i.b16 %v460, %v460
          %v485 = vlaneseq
          %v486 = vshrl.u32 %v485, 7
          %v487 = vsub.s32 0, %v486
          %v488 = vrot.slane %v483, %v487
          %v490 = vpack.i.b16 %v461, %v461
          %v492 = vlaneseq
          %v493 = vshrl.u32 %v492, 7
          %v494 = vsub.s32 0, %v493
          %v495 = vrot.slane %v490, %v494
          %v497 = vpack.i.b16 %v462, %v462
          %v499 = vlaneseq
          %v500 = vshrl.u32 %v499, 7
          %v501 = vsub.s32 0, %v500
          %v502 = vrot.slane %v497, %v501
          %v504 = vpack.i.b16 %v463, %v463
          %v506 = vlaneseq
          %v507 = vshrl.u32 %v506, 7
          %v508 = vsub.s32 0, %v507
          %v509 = vrot.slane %v504, %v508
          %v511 = vpack.i.b16 %v464, %v464
          %v513 = vlaneseq
          %v514 = vshrl.u32 %v513, 7
          %v515 = vsub.s32 0, %v514
          %v516 = vrot.slane %v511, %v515
          %v518 = vpack.i.b16 %v465, %v465
          %v520 = vlaneseq
          %v521 = vshrl.u32 %v520, 7
          %v522 = vsub.s32 0, %v521
          %v523 = vrot.slane %v518, %v522
          %v525 = vpack.i.b16 %v466, %v466
          %v527 = vlaneseq
          %v528 = vshrl.u32 %v527, 7
          %v529 = vsub.s32 0, %v528
          %v530 = vrot.slane %v525, %v529
          %v532 = vpack.i.b16 %v467, %v467
          %v534 = vlaneseq
          %v535 = vshrl.u32 %v534, 7
          %v536 = vsub.s32 0, %v535
          %v537 = vrot.slane %v532, %v536
          %v539 = vpack.i.b16 %v468, %v468
          %v541 = vlaneseq
          %v542 = vshrl.u32 %v541, 7
          %v543 = vsub.s32 0, %v542
          %v544 = vrot.slane %v539, %v543
          %v546 = vpack.i.b16 %v469, %v469
          %v548 = vlaneseq
          %v549 = vshrl.u32 %v548, 7
          %v550 = vsub.s32 0, %v549
          %v551 = vrot.slane %v546, %v550
          %v553 = vpack.i.b16 %v470, %v470
          %v555 = vlaneseq
          %v556 = vshrl.u32 %v555, 7
          %v557 = vsub.s32 0, %v556
          %v558 = vrot.slane %v553, %v557
          %v560 = vpack.i.b16 %v471, %v471
          %v562 = vlaneseq
          %v563 = vshrl.u32 %v562, 7
          %v564 = vsub.s32 0, %v563
          %v565 = vrot.slane %v560, %v564
          %v567 = vpack.i.b16 %v472, %v472
          %v569 = vlaneseq
          %v570 = vshrl.u32 %v569, 7
          %v571 = vsub.s32 0, %v570
          %v572 = vrot.slane %v567, %v571
          %v574 = vpack.i.b16 %v473, %v473
          %v576 = vlaneseq
          %v577 = vshrl.u32 %v576, 7
          %v578 = vsub.s32 0, %v577
          %v579 = vrot.slane %v574, %v578
          %v581 = vpack.i.b16 %v474, %v474
          %v583 = vlaneseq
          %v584 = vshrl.u32 %v583, 7
          %v585 = vsub.s32 0, %v584
          %v586 = vrot.slane %v581, %v585
          %v603 = vunpack.c.l.b16 %v481
          %v604 = vunpack.c.l.b16 %v488
          %v605 = vunpack.c.l.b16 %v495
          %v606 = vunpack.c.l.b16 %v502
          %v607 = vunpack.c.l.b16 %v509
          %v608 = vunpack.c.l.b16 %v516
          %v609 = vunpack.c.l.b16 %v523
          %v610 = vunpack.c.l.b16 %v530
          %v611 = vunpack.c.l.b16 %v537
          %v612 = vunpack.c.l.b16 %v544
          %v613 = vunpack.c.l.b16 %v551
          %v614 = vunpack.c.l.b16 %v558
          %v615 = vunpack.c.l.b16 %v565
          %v616 = vunpack.c.l.b16 %v572
          %v617 = vunpack.c.l.b16 %v579
          %v618 = vunpack.c.l.b16 %v586
          %v619 = vpack.c.b16 %v604, %v603
          %v620 = vpack.c.b16 %v606, %v605
          %v621 = vpack.c.b16 %v608, %v607
          %v622 = vpack.c.b16 %v610, %v609
          %v623 = vpack.c.b16 %v612, %v611
          %v624 = vpack.c.b16 %v614, %v613
          %v625 = vpack.c.b16 %v616, %v615
          %v626 = vpack.c.b16 %v618, %v617
          %v635 = vadd.bf16 %v419, %v619
          %v636 = vadd.bf16 %v420, %v620
          %v637 = vadd.bf16 %v421, %v621
          %v638 = vadd.bf16 %v422, %v622
          %v639 = vadd.bf16 %v423, %v623
          %v640 = vadd.bf16 %v424, %v624
          %v641 = vadd.bf16 %v425, %v625
          %v642 = vadd.bf16 %v426, %v626
          %v643 = vmax.bf16 %v635, 0
          %v644 = vmax.bf16 %v636, 0
          %v645 = vmax.bf16 %v637, 0
          %v646 = vmax.bf16 %v638, 0
          %v647 = vmax.bf16 %v639, 0
          %v648 = vmax.bf16 %v640, 0
          %v649 = vmax.bf16 %v641, 0
          %v650 = vmax.bf16 %v642, 0
          %v659 = vunpack.c.l.b16 %v643
          %v660 = vunpack.c.h.b16 %v643
          %v661 = vunpack.c.l.b16 %v644
          %v662 = vunpack.c.h.b16 %v644
          %v663 = vunpack.c.l.b16 %v645
          %v664 = vunpack.c.h.b16 %v645
          %v665 = vunpack.c.l.b16 %v646
          %v666 = vunpack.c.h.b16 %v646
          %v667 = vunpack.c.l.b16 %v647
          %v668 = vunpack.c.h.b16 %v647
          %v669 = vunpack.c.l.b16 %v648
          %v670 = vunpack.c.h.b16 %v648
          %v671 = vunpack.c.l.b16 %v649
          %v672 = vunpack.c.h.b16 %v649
          %v673 = vunpack.c.l.b16 %v650
          %v674 = vunpack.c.h.b16 %v650
          %v675 = vpack.c.b16 %v659, %v659
          %v676 = vpack.c.b16 %v660, %v660
          %v677 = vpack.c.b16 %v661, %v661
          %v678 = vpack.c.b16 %v662, %v662
          %v679 = vpack.c.b16 %v663, %v663
          %v680 = vpack.c.b16 %v664, %v664
          %v681 = vpack.c.b16 %v665, %v665
          %v682 = vpack.c.b16 %v666, %v666
          %v683 = vpack.c.b16 %v667, %v667
          %v684 = vpack.c.b16 %v668, %v668
          %v685 = vpack.c.b16 %v669, %v669
          %v686 = vpack.c.b16 %v670, %v670
          %v687 = vpack.c.b16 %v671, %v671
          %v688 = vpack.c.b16 %v672, %v672
          %v689 = vpack.c.b16 %v673, %v673
          %v690 = vpack.c.b16 %v674, %v674
          %707 = vst [vmem:[#allocation2] sm:$0xf] %v675
          %708 = vst [vmem:[#allocation2 + $0x8] sm:$0xf] %v676
          %709 = vst [vmem:[#allocation2 + $0x10] sm:$0xf] %v677
          %710 = vst [vmem:[#allocation2 + $0x18] sm:$0xf] %v678
          %711 = vst [vmem:[#allocation2 + $0x20] sm:$0xf] %v679
          %712 = vst [vmem:[#allocation2 + $0x28] sm:$0xf] %v680
          %713 = vst [vmem:[#allocation2 + $0x30] sm:$0xf] %v681
          %714 = vst [vmem:[#allocation2 + $0x38] sm:$0xf] %v682
          %715 = vst [vmem:[#allocation2 + $0x40] sm:$0xf] %v683
          %716 = vst [vmem:[#allocation2 + $0x48] sm:$0xf] %v684
          %717 = vst [vmem:[#allocation2 + $0x50] sm:$0xf] %v685
          %718 = vst [vmem:[#allocation2 + $0x58] sm:$0xf] %v686
          %719 = vst [vmem:[#allocation2 + $0x60] sm:$0xf] %v687
          %720 = vst [vmem:[#allocation2 + $0x68] sm:$0xf] %v688
          %721 = vst [vmem:[#allocation2 + $0x70] sm:$0xf] %v689
          %722 = vst [vmem:[#allocation2 + $0x78] sm:$0xf] %v690
          %v723 = vld [vmem:[#allocation6] sm:$0xff]
          %v724 = vld [vmem:[#allocation6 + $0x8] sm:$0xff]
          %v725 = vld [vmem:[#allocation6 + $0x10] sm:$0xff]
          %v726 = vld [vmem:[#allocation6 + $0x18] sm:$0xff]
          %v727 = vld [vmem:[#allocation6 + $0x20] sm:$0xff]
          %v728 = vld [vmem:[#allocation6 + $0x28] sm:$0xff]
          %v729 = vld [vmem:[#allocation6 + $0x30] sm:$0xff]
          %v730 = vld [vmem:[#allocation6 + $0x38] sm:$0xff]
          %v731 = vld [vmem:[#allocation4] sm:$0x11]
          %v732 = vld [vmem:[#allocation4 + $0x8] sm:$0x11]
          %v733 = vld [vmem:[#allocation4 + $0x10] sm:$0x11]
          %v734 = vld [vmem:[#allocation4 + $0x18] sm:$0x11]
          %v735 = vld [vmem:[#allocation4 + $0x20] sm:$0x11]
          %v736 = vld [vmem:[#allocation4 + $0x28] sm:$0x11]
          %v737 = vld [vmem:[#allocation4 + $0x30] sm:$0x11]
          %v738 = vld [vmem:[#allocation4 + $0x38] sm:$0x11]
          %v747 = vunpack.c.l.b16 %v731
          %v748 = vunpack.c.h.b16 %v731
          %v749 = vunpack.c.l.b16 %v732
          %v750 = vunpack.c.h.b16 %v732
          %v751 = vunpack.c.l.b16 %v733
          %v752 = vunpack.c.h.b16 %v733
          %v753 = vunpack.c.l.b16 %v734
          %v754 = vunpack.c.h.b16 %v734
          %v755 = vunpack.c.l.b16 %v735
          %v756 = vunpack.c.h.b16 %v735
          %v757 = vunpack.c.l.b16 %v736
          %v758 = vunpack.c.h.b16 %v736
          %v759 = vunpack.c.l.b16 %v737
          %v760 = vunpack.c.h.b16 %v737
          %v761 = vunpack.c.l.b16 %v738
          %v762 = vunpack.c.h.b16 %v738
          %v763 = vpack.c.b16 %v747, %v747
          %v764 = vpack.c.b16 %v748, %v748
          %v765 = vpack.c.b16 %v749, %v749
          %v766 = vpack.c.b16 %v750, %v750
          %v767 = vpack.c.b16 %v751, %v751
          %v768 = vpack.c.b16 %v752, %v752
          %v769 = vpack.c.b16 %v753, %v753
          %v770 = vpack.c.b16 %v754, %v754
          %v771 = vpack.c.b16 %v755, %v755
          %v772 = vpack.c.b16 %v756, %v756
          %v773 = vpack.c.b16 %v757, %v757
          %v774 = vpack.c.b16 %v758, %v758
          %v775 = vpack.c.b16 %v759, %v759
          %v776 = vpack.c.b16 %v760, %v760
          %v777 = vpack.c.b16 %v761, %v761
          %v778 = vpack.c.b16 %v762, %v762
          %v780 = vshrl.u32 %v763, 16
          %v781 = vpack.i.b16 %v780, %v780
          %v783 = vlaneseq
          %v784 = vshrl.u32 %v783, 7
          %v785 = vsub.s32 0, %v784
          %v786 = vrot.slane %v781, %v785
          %v788 = vshrl.u32 %v764, 16
          %v789 = vpack.i.b16 %v788, %v788
          %v791 = vlaneseq
          %v792 = vshrl.u32 %v791, 7
          %v793 = vsub.s32 0, %v792
          %v794 = vrot.slane %v789, %v793
          %v796 = vshrl.u32 %v765, 16
          %v797 = vpack.i.b16 %v796, %v796
          %v799 = vlaneseq
          %v800 = vshrl.u32 %v799, 7
          %v801 = vsub.s32 0, %v800
          %v802 = vrot.slane %v797, %v801
          %v804 = vshrl.u32 %v766, 16
          %v805 = vpack.i.b16 %v804, %v804
          %v807 = vlaneseq
          %v808 = vshrl.u32 %v807, 7
          %v809 = vsub.s32 0, %v808
          %v810 = vrot.slane %v805, %v809
          %v812 = vshrl.u32 %v767, 16
          %v813 = vpack.i.b16 %v812, %v812
          %v815 = vlaneseq
          %v816 = vshrl.u32 %v815, 7
          %v817 = vsub.s32 0, %v816
          %v818 = vrot.slane %v813, %v817
          %v820 = vshrl.u32 %v768, 16
          %v821 = vpack.i.b16 %v820, %v820
          %v823 = vlaneseq
          %v824 = vshrl.u32 %v823, 7
          %v825 = vsub.s32 0, %v824
          %v826 = vrot.slane %v821, %v825
          %v828 = vshrl.u32 %v769, 16
          %v829 = vpack.i.b16 %v828, %v828
          %v831 = vlaneseq
          %v832 = vshrl.u32 %v831, 7
          %v833 = vsub.s32 0, %v832
          %v834 = vrot.slane %v829, %v833
          %v836 = vshrl.u32 %v770, 16
          %v837 = vpack.i.b16 %v836, %v836
          %v839 = vlaneseq
          %v840 = vshrl.u32 %v839, 7
          %v841 = vsub.s32 0, %v840
          %v842 = vrot.slane %v837, %v841
          %v844 = vshrl.u32 %v771, 16
          %v845 = vpack.i.b16 %v844, %v844
          %v847 = vlaneseq
          %v848 = vshrl.u32 %v847, 7
          %v849 = vsub.s32 0, %v848
          %v850 = vrot.slane %v845, %v849
          %v852 = vshrl.u32 %v772, 16
          %v853 = vpack.i.b16 %v852, %v852
          %v855 = vlaneseq
          %v856 = vshrl.u32 %v855, 7
          %v857 = vsub.s32 0, %v856
          %v858 = vrot.slane %v853, %v857
          %v860 = vshrl.u32 %v773, 16
          %v861 = vpack.i.b16 %v860, %v860
          %v863 = vlaneseq
          %v864 = vshrl.u32 %v863, 7
          %v865 = vsub.s32 0, %v864
          %v866 = vrot.slane %v861, %v865
          %v868 = vshrl.u32 %v774, 16
          %v869 = vpack.i.b16 %v868, %v868
          %v871 = vlaneseq
          %v872 = vshrl.u32 %v871, 7
          %v873 = vsub.s32 0, %v872
          %v874 = vrot.slane %v869, %v873
          %v876 = vshrl.u32 %v775, 16
          %v877 = vpack.i.b16 %v876, %v876
          %v879 = vlaneseq
          %v880 = vshrl.u32 %v879, 7
          %v881 = vsub.s32 0, %v880
          %v882 = vrot.slane %v877, %v881
          %v884 = vshrl.u32 %v776, 16
          %v885 = vpack.i.b16 %v884, %v884
          %v887 = vlaneseq
          %v888 = vshrl.u32 %v887, 7
          %v889 = vsub.s32 0, %v888
          %v890 = vrot.slane %v885, %v889
          %v892 = vshrl.u32 %v777, 16
          %v893 = vpack.i.b16 %v892, %v892
          %v895 = vlaneseq
          %v896 = vshrl.u32 %v895, 7
          %v897 = vsub.s32 0, %v896
          %v898 = vrot.slane %v893, %v897
          %v900 = vshrl.u32 %v778, 16
          %v901 = vpack.i.b16 %v900, %v900
          %v903 = vlaneseq
          %v904 = vshrl.u32 %v903, 7
          %v905 = vsub.s32 0, %v904
          %v906 = vrot.slane %v901, %v905
          %v923 = vunpack.c.l.b16 %v786
          %v924 = vunpack.c.l.b16 %v794
          %v925 = vunpack.c.l.b16 %v802
          %v926 = vunpack.c.l.b16 %v810
          %v927 = vunpack.c.l.b16 %v818
          %v928 = vunpack.c.l.b16 %v826
          %v929 = vunpack.c.l.b16 %v834
          %v930 = vunpack.c.l.b16 %v842
          %v931 = vunpack.c.l.b16 %v850
          %v932 = vunpack.c.l.b16 %v858
          %v933 = vunpack.c.l.b16 %v866
          %v934 = vunpack.c.l.b16 %v874
          %v935 = vunpack.c.l.b16 %v882
          %v936 = vunpack.c.l.b16 %v890
          %v937 = vunpack.c.l.b16 %v898
          %v938 = vunpack.c.l.b16 %v906
          %v939 = vpack.c.b16 %v924, %v923
          %v940 = vpack.c.b16 %v926, %v925
          %v941 = vpack.c.b16 %v928, %v927
          %v942 = vpack.c.b16 %v930, %v929
          %v943 = vpack.c.b16 %v932, %v931
          %v944 = vpack.c.b16 %v934, %v933
          %v945 = vpack.c.b16 %v936, %v935
          %v946 = vpack.c.b16 %v938, %v937
          %v955 = vadd.bf16 %v723, %v939
          %v956 = vadd.bf16 %v724, %v940
          %v957 = vadd.bf16 %v725, %v941
          %v958 = vadd.bf16 %v726, %v942
          %v959 = vadd.bf16 %v727, %v943
          %v960 = vadd.bf16 %v728, %v944
          %v961 = vadd.bf16 %v729, %v945
          %v962 = vadd.bf16 %v730, %v946
          %v963 = vmax.bf16 %v955, 0
          %v964 = vmax.bf16 %v956, 0
          %v965 = vmax.bf16 %v957, 0
          %v966 = vmax.bf16 %v958, 0
          %v967 = vmax.bf16 %v959, 0
          %v968 = vmax.bf16 %v960, 0
          %v969 = vmax.bf16 %v961, 0
          %v970 = vmax.bf16 %v962, 0
          %v979 = vunpack.c.l.b16 %v963
          %v980 = vunpack.c.h.b16 %v963
          %v981 = vunpack.c.l.b16 %v964
          %v982 = vunpack.c.h.b16 %v964
          %v983 = vunpack.c.l.b16 %v965
          %v984 = vunpack.c.h.b16 %v965
          %v985 = vunpack.c.l.b16 %v966
          %v986 = vunpack.c.h.b16 %v966
          %v987 = vunpack.c.l.b16 %v967
          %v988 = vunpack.c.h.b16 %v967
          %v989 = vunpack.c.l.b16 %v968
          %v990 = vunpack.c.h.b16 %v968
          %v991 = vunpack.c.l.b16 %v969
          %v992 = vunpack.c.h.b16 %v969
          %v993 = vunpack.c.l.b16 %v970
          %v994 = vunpack.c.h.b16 %v970
          %v995 = vpack.c.b16 %v979, %v979
          %v996 = vpack.c.b16 %v980, %v980
          %v997 = vpack.c.b16 %v981, %v981
          %v998 = vpack.c.b16 %v982, %v982
          %v999 = vpack.c.b16 %v983, %v983
          %v1000 = vpack.c.b16 %v984, %v984
          %v1001 = vpack.c.b16 %v985, %v985
          %v1002 = vpack.c.b16 %v986, %v986
          %v1003 = vpack.c.b16 %v987, %v987
          %v1004 = vpack.c.b16 %v988, %v988
          %v1005 = vpack.c.b16 %v989, %v989
          %v1006 = vpack.c.b16 %v990, %v990
          %v1007 = vpack.c.b16 %v991, %v991
          %v1008 = vpack.c.b16 %v992, %v992
          %v1009 = vpack.c.b16 %v993, %v993
          %v1010 = vpack.c.b16 %v994, %v994
          %1027 = vst [vmem:[#allocation2] sm:$0xf0] %v995
          %1028 = vst [vmem:[#allocation2 + $0x8] sm:$0xf0] %v996
          %1029 = vst [vmem:[#allocation2 + $0x10] sm:$0xf0] %v997
          %1030 = vst [vmem:[#allocation2 + $0x18] sm:$0xf0] %v998
          %1031 = vst [vmem:[#allocation2 + $0x20] sm:$0xf0] %v999
          %1032 = vst [vmem:[#allocation2 + $0x28] sm:$0xf0] %v1000
          %1033 = vst [vmem:[#allocation2 + $0x30] sm:$0xf0] %v1001
          %1034 = vst [vmem:[#allocation2 + $0x38] sm:$0xf0] %v1002
          %1035 = vst [vmem:[#allocation2 + $0x40] sm:$0xf0] %v1003
          %1036 = vst [vmem:[#allocation2 + $0x48] sm:$0xf0] %v1004
          %1037 = vst [vmem:[#allocation2 + $0x50] sm:$0xf0] %v1005
          %1038 = vst [vmem:[#allocation2 + $0x58] sm:$0xf0] %v1006
          %1039 = vst [vmem:[#allocation2 + $0x60] sm:$0xf0] %v1007
          %1040 = vst [vmem:[#allocation2 + $0x68] sm:$0xf0] %v1008
          %1041 = vst [vmem:[#allocation2 + $0x70] sm:$0xf0] %v1009
          %1042 = vst [vmem:[#allocation2 + $0x78] sm:$0xf0] %v1010
          %v1043 = vld [vmem:[#allocation6] sm:$0xff]
          %v1044 = vld [vmem:[#allocation6 + $0x8] sm:$0xff]
          %v1045 = vld [vmem:[#allocation6 + $0x10] sm:$0xff]
          %v1046 = vld [vmem:[#allocation6 + $0x18] sm:$0xff]
          %v1047 = vld [vmem:[#allocation6 + $0x20] sm:$0xff]
          %v1048 = vld [vmem:[#allocation6 + $0x28] sm:$0xff]
          %v1049 = vld [vmem:[#allocation6 + $0x30] sm:$0xff]
          %v1050 = vld [vmem:[#allocation6 + $0x38] sm:$0xff]
          %v1051 = vld [vmem:[#allocation4] sm:$0x22]
          %v1052 = vld [vmem:[#allocation4 + $0x8] sm:$0x22]
          %v1053 = vld [vmem:[#allocation4 + $0x10] sm:$0x22]
          %v1054 = vld [vmem:[#allocation4 + $0x18] sm:$0x22]
          %v1055 = vld [vmem:[#allocation4 + $0x20] sm:$0x22]
          %v1056 = vld [vmem:[#allocation4 + $0x28] sm:$0x22]
          %v1057 = vld [vmem:[#allocation4 + $0x30] sm:$0x22]
          %v1058 = vld [vmem:[#allocation4 + $0x38] sm:$0x22]
          %v1067 = vunpack.c.l.b16 %v1051
          %v1068 = vunpack.c.h.b16 %v1051
          %v1069 = vunpack.c.l.b16 %v1052
          %v1070 = vunpack.c.h.b16 %v1052
          %v1071 = vunpack.c.l.b16 %v1053
          %v1072 = vunpack.c.h.b16 %v1053
          %v1073 = vunpack.c.l.b16 %v1054
          %v1074 = vunpack.c.h.b16 %v1054
          %v1075 = vunpack.c.l.b16 %v1055
          %v1076 = vunpack.c.h.b16 %v1055
          %v1077 = vunpack.c.l.b16 %v1056
          %v1078 = vunpack.c.h.b16 %v1056
          %v1079 = vunpack.c.l.b16 %v1057
          %v1080 = vunpack.c.h.b16 %v1057
          %v1081 = vunpack.c.l.b16 %v1058
          %v1082 = vunpack.c.h.b16 %v1058
          %v1083 = vpack.c.b16 %v1067, %v1067
          %v1084 = vpack.c.b16 %v1068, %v1068
          %v1085 = vpack.c.b16 %v1069, %v1069
          %v1086 = vpack.c.b16 %v1070, %v1070
          %v1087 = vpack.c.b16 %v1071, %v1071
          %v1088 = vpack.c.b16 %v1072, %v1072
          %v1089 = vpack.c.b16 %v1073, %v1073
          %v1090 = vpack.c.b16 %v1074, %v1074
          %v1091 = vpack.c.b16 %v1075, %v1075
          %v1092 = vpack.c.b16 %v1076, %v1076
          %v1093 = vpack.c.b16 %v1077, %v1077
          %v1094 = vpack.c.b16 %v1078, %v1078
          %v1095 = vpack.c.b16 %v1079, %v1079
          %v1096 = vpack.c.b16 %v1080, %v1080
          %v1097 = vpack.c.b16 %v1081, %v1081
          %v1098 = vpack.c.b16 %v1082, %v1082
          %v1100 = vpack.i.b16 %v1083, %v1083
          %v1102 = vlaneseq
          %v1103 = vshrl.u32 %v1102, 7
          %v1104 = vsub.s32 1, %v1103
          %v1105 = vrot.slane %v1100, %v1104
          %v1107 = vpack.i.b16 %v1084, %v1084
          %v1109 = vlaneseq
          %v1110 = vshrl.u32 %v1109, 7
          %v1111 = vsub.s32 1, %v1110
          %v1112 = vrot.slane %v1107, %v1111
          %v1114 = vpack.i.b16 %v1085, %v1085
          %v1116 = vlaneseq
          %v1117 = vshrl.u32 %v1116, 7
          %v1118 = vsub.s32 1, %v1117
          %v1119 = vrot.slane %v1114, %v1118
          %v1121 = vpack.i.b16 %v1086, %v1086
          %v1123 = vlaneseq
          %v1124 = vshrl.u32 %v1123, 7
          %v1125 = vsub.s32 1, %v1124
          %v1126 = vrot.slane %v1121, %v1125
          %v1128 = vpack.i.b16 %v1087, %v1087
          %v1130 = vlaneseq
          %v1131 = vshrl.u32 %v1130, 7
          %v1132 = vsub.s32 1, %v1131
          %v1133 = vrot.slane %v1128, %v1132
          %v1135 = vpack.i.b16 %v1088, %v1088
          %v1137 = vlaneseq
          %v1138 = vshrl.u32 %v1137, 7
          %v1139 = vsub.s32 1, %v1138
          %v1140 = vrot.slane %v1135, %v1139
          %v1142 = vpack.i.b16 %v1089, %v1089
          %v1144 = vlaneseq
          %v1145 = vshrl.u32 %v1144, 7
          %v1146 = vsub.s32 1, %v1145
          %v1147 = vrot.slane %v1142, %v1146
          %v1149 = vpack.i.b16 %v1090, %v1090
          %v1151 = vlaneseq
          %v1152 = vshrl.u32 %v1151, 7
          %v1153 = vsub.s32 1, %v1152
          %v1154 = vrot.slane %v1149, %v1153
          %v1156 = vpack.i.b16 %v1091, %v1091
          %v1158 = vlaneseq
          %v1159 = vshrl.u32 %v1158, 7
          %v1160 = vsub.s32 1, %v1159
          %v1161 = vrot.slane %v1156, %v1160
          %v1163 = vpack.i.b16 %v1092, %v1092
          %v1165 = vlaneseq
          %v1166 = vshrl.u32 %v1165, 7
          %v1167 = vsub.s32 1, %v1166
          %v1168 = vrot.slane %v1163, %v1167
          %v1170 = vpack.i.b16 %v1093, %v1093
          %v1172 = vlaneseq
          %v1173 = vshrl.u32 %v1172, 7
          %v1174 = vsub.s32 1, %v1173
          %v1175 = vrot.slane %v1170, %v1174
          %v1177 = vpack.i.b16 %v1094, %v1094
          %v1179 = vlaneseq
          %v1180 = vshrl.u32 %v1179, 7
          %v1181 = vsub.s32 1, %v1180
          %v1182 = vrot.slane %v1177, %v1181
          %v1184 = vpack.i.b16 %v1095, %v1095
          %v1186 = vlaneseq
          %v1187 = vshrl.u32 %v1186, 7
          %v1188 = vsub.s32 1, %v1187
          %v1189 = vrot.slane %v1184, %v1188
          %v1191 = vpack.i.b16 %v1096, %v1096
          %v1193 = vlaneseq
          %v1194 = vshrl.u32 %v1193, 7
          %v1195 = vsub.s32 1, %v1194
          %v1196 = vrot.slane %v1191, %v1195
          %v1198 = vpack.i.b16 %v1097, %v1097
          %v1200 = vlaneseq
          %v1201 = vshrl.u32 %v1200, 7
          %v1202 = vsub.s32 1, %v1201
          %v1203 = vrot.slane %v1198, %v1202
          %v1205 = vpack.i.b16 %v1098, %v1098
          %v1207 = vlaneseq
          %v1208 = vshrl.u32 %v1207, 7
          %v1209 = vsub.s32 1, %v1208
          %v1210 = vrot.slane %v1205, %v1209
          %v1227 = vunpack.c.l.b16 %v1105
          %v1228 = vunpack.c.l.b16 %v1112
          %v1229 = vunpack.c.l.b16 %v1119
          %v1230 = vunpack.c.l.b16 %v1126
          %v1231 = vunpack.c.l.b16 %v1133
          %v1232 = vunpack.c.l.b16 %v1140
          %v1233 = vunpack.c.l.b16 %v1147
          %v1234 = vunpack.c.l.b16 %v1154
          %v1235 = vunpack.c.l.b16 %v1161
          %v1236 = vunpack.c.l.b16 %v1168
          %v1237 = vunpack.c.l.b16 %v1175
          %v1238 = vunpack.c.l.b16 %v1182
          %v1239 = vunpack.c.l.b16 %v1189
          %v1240 = vunpack.c.l.b16 %v1196
          %v1241 = vunpack.c.l.b16 %v1203
          %v1242 = vunpack.c.l.b16 %v1210
          %v1243 = vpack.c.b16 %v1228, %v1227
          %v1244 = vpack.c.b16 %v1230, %v1229
          %v1245 = vpack.c.b16 %v1232, %v1231
          %v1246 = vpack.c.b16 %v1234, %v1233
          %v1247 = vpack.c.b16 %v1236, %v1235
          %v1248 = vpack.c.b16 %v1238, %v1237
          %v1249 = vpack.c.b16 %v1240, %v1239
          %v1250 = vpack.c.b16 %v1242, %v1241
          %v1259 = vadd.bf16 %v1043, %v1243
          %v1260 = vadd.bf16 %v1044, %v1244
          %v1261 = vadd.bf16 %v1045, %v1245
          %v1262 = vadd.bf16 %v1046, %v1246
          %v1263 = vadd.bf16 %v1047, %v1247
          %v1264 = vadd.bf16 %v1048, %v1248
          %v1265 = vadd.bf16 %v1049, %v1249
          %v1266 = vadd.bf16 %v1050, %v1250
          %v1267 = vmax.bf16 %v1259, 0
          %v1268 = vmax.bf16 %v1260, 0
          %v1269 = vmax.bf16 %v1261, 0
          %v1270 = vmax.bf16 %v1262, 0
          %v1271 = vmax.bf16 %v1263, 0
          %v1272 = vmax.bf16 %v1264, 0
          %v1273 = vmax.bf16 %v1265, 0
          %v1274 = vmax.bf16 %v1266, 0
          %v1283 = vunpack.c.l.b16 %v1267
          %v1284 = vunpack.c.h.b16 %v1267
          %v1285 = vunpack.c.l.b16 %v1268
          %v1286 = vunpack.c.h.b16 %v1268
          %v1287 = vunpack.c.l.b16 %v1269
          %v1288 = vunpack.c.h.b16 %v1269
          %v1289 = vunpack.c.l.b16 %v1270
          %v1290 = vunpack.c.h.b16 %v1270
          %v1291 = vunpack.c.l.b16 %v1271
          %v1292 = vunpack.c.h.b16 %v1271
          %v1293 = vunpack.c.l.b16 %v1272
          %v1294 = vunpack.c.h.b16 %v1272
          %v1295 = vunpack.c.l.b16 %v1273
          %v1296 = vunpack.c.h.b16 %v1273
          %v1297 = vunpack.c.l.b16 %v1274
          %v1298 = vunpack.c.h.b16 %v1274
          %v1299 = vpack.c.b16 %v1283, %v1283
          %v1300 = vpack.c.b16 %v1284, %v1284
          %v1301 = vpack.c.b16 %v1285, %v1285
          %v1302 = vpack.c.b16 %v1286, %v1286
          %v1303 = vpack.c.b16 %v1287, %v1287
          %v1304 = vpack.c.b16 %v1288, %v1288
          %v1305 = vpack.c.b16 %v1289, %v1289
          %v1306 = vpack.c.b16 %v1290, %v1290
          %v1307 = vpack.c.b16 %v1291, %v1291
          %v1308 = vpack.c.b16 %v1292, %v1292
          %v1309 = vpack.c.b16 %v1293, %v1293
          %v1310 = vpack.c.b16 %v1294, %v1294
          %v1311 = vpack.c.b16 %v1295, %v1295
          %v1312 = vpack.c.b16 %v1296, %v1296
          %v1313 = vpack.c.b16 %v1297, %v1297
          %v1314 = vpack.c.b16 %v1298, %v1298
          %1331 = vst [vmem:[#allocation2 + $0x80] sm:$0xf] %v1299
          %1332 = vst [vmem:[#allocation2 + $0x88] sm:$0xf] %v1300
          %1333 = vst [vmem:[#allocation2 + $0x90] sm:$0xf] %v1301
          %1334 = vst [vmem:[#allocation2 + $0x98] sm:$0xf] %v1302
          %1335 = vst [vmem:[#allocation2 + $0xa0] sm:$0xf] %v1303
          %1336 = vst [vmem:[#allocation2 + $0xa8] sm:$0xf] %v1304
          %1337 = vst [vmem:[#allocation2 + $0xb0] sm:$0xf] %v1305
          %1338 = vst [vmem:[#allocation2 + $0xb8] sm:$0xf] %v1306
          %1339 = vst [vmem:[#allocation2 + $0xc0] sm:$0xf] %v1307
          %1340 = vst [vmem:[#allocation2 + $0xc8] sm:$0xf] %v1308
          %1341 = vst [vmem:[#allocation2 + $0xd0] sm:$0xf] %v1309
          %1342 = vst [vmem:[#allocation2 + $0xd8] sm:$0xf] %v1310
          %1343 = vst [vmem:[#allocation2 + $0xe0] sm:$0xf] %v1311
          %1344 = vst [vmem:[#allocation2 + $0xe8] sm:$0xf] %v1312
          %1345 = vst [vmem:[#allocation2 + $0xf0] sm:$0xf] %v1313
          %1346 = vst [vmem:[#allocation2 + $0xf8] sm:$0xf] %v1314
          %v1347 = vld [vmem:[#allocation6] sm:$0xff]
          %v1348 = vld [vmem:[#allocation6 + $0x8] sm:$0xff]
          %v1349 = vld [vmem:[#allocation6 + $0x10] sm:$0xff]
          %v1350 = vld [vmem:[#allocation6 + $0x18] sm:$0xff]
          %v1351 = vld [vmem:[#allocation6 + $0x20] sm:$0xff]
          %v1352 = vld [vmem:[#allocation6 + $0x28] sm:$0xff]
          %v1353 = vld [vmem:[#allocation6 + $0x30] sm:$0xff]
          %v1354 = vld [vmem:[#allocation6 + $0x38] sm:$0xff]
          %v1355 = vld [vmem:[#allocation4] sm:$0x22]
          %v1356 = vld [vmem:[#allocation4 + $0x8] sm:$0x22]
          %v1357 = vld [vmem:[#allocation4 + $0x10] sm:$0x22]
          %v1358 = vld [vmem:[#allocation4 + $0x18] sm:$0x22]
          %v1359 = vld [vmem:[#allocation4 + $0x20] sm:$0x22]
          %v1360 = vld [vmem:[#allocation4 + $0x28] sm:$0x22]
          %v1361 = vld [vmem:[#allocation4 + $0x30] sm:$0x22]
          %v1362 = vld [vmem:[#allocation4 + $0x38] sm:$0x22]
          %v1371 = vunpack.c.l.b16 %v1355
          %v1372 = vunpack.c.h.b16 %v1355
          %v1373 = vunpack.c.l.b16 %v1356
          %v1374 = vunpack.c.h.b16 %v1356
          %v1375 = vunpack.c.l.b16 %v1357
          %v1376 = vunpack.c.h.b16 %v1357
          %v1377 = vunpack.c.l.b16 %v1358
          %v1378 = vunpack.c.h.b16 %v1358
          %v1379 = vunpack.c.l.b16 %v1359
          %v1380 = vunpack.c.h.b16 %v1359
          %v1381 = vunpack.c.l.b16 %v1360
          %v1382 = vunpack.c.h.b16 %v1360
          %v1383 = vunpack.c.l.b16 %v1361
          %v1384 = vunpack.c.h.b16 %v1361
          %v1385 = vunpack.c.l.b16 %v1362
          %v1386 = vunpack.c.h.b16 %v1362
          %v1387 = vpack.c.b16 %v1371, %v1371
          %v1388 = vpack.c.b16 %v1372, %v1372
          %v1389 = vpack.c.b16 %v1373, %v1373
          %v1390 = vpack.c.b16 %v1374, %v1374
          %v1391 = vpack.c.b16 %v1375, %v1375
          %v1392 = vpack.c.b16 %v1376, %v1376
          %v1393 = vpack.c.b16 %v1377, %v1377
          %v1394 = vpack.c.b16 %v1378, %v1378
          %v1395 = vpack.c.b16 %v1379, %v1379
          %v1396 = vpack.c.b16 %v1380, %v1380
          %v1397 = vpack.c.b16 %v1381, %v1381
          %v1398 = vpack.c.b16 %v1382, %v1382
          %v1399 = vpack.c.b16 %v1383, %v1383
          %v1400 = vpack.c.b16 %v1384, %v1384
          %v1401 = vpack.c.b16 %v1385, %v1385
          %v1402 = vpack.c.b16 %v1386, %v1386
          %v1404 = vshrl.u32 %v1387, 16
          %v1405 = vpack.i.b16 %v1404, %v1404
          %v1407 = vlaneseq
          %v1408 = vshrl.u32 %v1407, 7
          %v1409 = vsub.s32 1, %v1408
          %v1410 = vrot.slane %v1405, %v1409
          %v1412 = vshrl.u32 %v1388, 16
          %v1413 = vpack.i.b16 %v1412, %v1412
          %v1415 = vlaneseq
          %v1416 = vshrl.u32 %v1415, 7
          %v1417 = vsub.s32 1, %v1416
          %v1418 = vrot.slane %v1413, %v1417
          %v1420 = vshrl.u32 %v1389, 16
          %v1421 = vpack.i.b16 %v1420, %v1420
          %v1423 = vlaneseq
          %v1424 = vshrl.u32 %v1423, 7
          %v1425 = vsub.s32 1, %v1424
          %v1426 = vrot.slane %v1421, %v1425
          %v1428 = vshrl.u32 %v1390, 16
          %v1429 = vpack.i.b16 %v1428, %v1428
          %v1431 = vlaneseq
          %v1432 = vshrl.u32 %v1431, 7
          %v1433 = vsub.s32 1, %v1432
          %v1434 = vrot.slane %v1429, %v1433
          %v1436 = vshrl.u32 %v1391, 16
          %v1437 = vpack.i.b16 %v1436, %v1436
          %v1439 = vlaneseq
          %v1440 = vshrl.u32 %v1439, 7
          %v1441 = vsub.s32 1, %v1440
          %v1442 = vrot.slane %v1437, %v1441
          %v1444 = vshrl.u32 %v1392, 16
          %v1445 = vpack.i.b16 %v1444, %v1444
          %v1447 = vlaneseq
          %v1448 = vshrl.u32 %v1447, 7
          %v1449 = vsub.s32 1, %v1448
          %v1450 = vrot.slane %v1445, %v1449
          %v1452 = vshrl.u32 %v1393, 16
          %v1453 = vpack.i.b16 %v1452, %v1452
          %v1455 = vlaneseq
          %v1456 = vshrl.u32 %v1455, 7
          %v1457 = vsub.s32 1, %v1456
          %v1458 = vrot.slane %v1453, %v1457
          %v1460 = vshrl.u32 %v1394, 16
          %v1461 = vpack.i.b16 %v1460, %v1460
          %v1463 = vlaneseq
          %v1464 = vshrl.u32 %v1463, 7
          %v1465 = vsub.s32 1, %v1464
          %v1466 = vrot.slane %v1461, %v1465
          %v1468 = vshrl.u32 %v1395, 16
          %v1469 = vpack.i.b16 %v1468, %v1468
          %v1471 = vlaneseq
          %v1472 = vshrl.u32 %v1471, 7
          %v1473 = vsub.s32 1, %v1472
          %v1474 = vrot.slane %v1469, %v1473
          %v1476 = vshrl.u32 %v1396, 16
          %v1477 = vpack.i.b16 %v1476, %v1476
          %v1479 = vlaneseq
          %v1480 = vshrl.u32 %v1479, 7
          %v1481 = vsub.s32 1, %v1480
          %v1482 = vrot.slane %v1477, %v1481
          %v1484 = vshrl.u32 %v1397, 16
          %v1485 = vpack.i.b16 %v1484, %v1484
          %v1487 = vlaneseq
          %v1488 = vshrl.u32 %v1487, 7
          %v1489 = vsub.s32 1, %v1488
          %v1490 = vrot.slane %v1485, %v1489
          %v1492 = vshrl.u32 %v1398, 16
          %v1493 = vpack.i.b16 %v1492, %v1492
          %v1495 = vlaneseq
          %v1496 = vshrl.u32 %v1495, 7
          %v1497 = vsub.s32 1, %v1496
          %v1498 = vrot.slane %v1493, %v1497
          %v1500 = vshrl.u32 %v1399, 16
          %v1501 = vpack.i.b16 %v1500, %v1500
          %v1503 = vlaneseq
          %v1504 = vshrl.u32 %v1503, 7
          %v1505 = vsub.s32 1, %v1504
          %v1506 = vrot.slane %v1501, %v1505
          %v1508 = vshrl.u32 %v1400, 16
          %v1509 = vpack.i.b16 %v1508, %v1508
          %v1511 = vlaneseq
          %v1512 = vshrl.u32 %v1511, 7
          %v1513 = vsub.s32 1, %v1512
          %v1514 = vrot.slane %v1509, %v1513
          %v1516 = vshrl.u32 %v1401, 16
          %v1517 = vpack.i.b16 %v1516, %v1516
          %v1519 = vlaneseq
          %v1520 = vshrl.u32 %v1519, 7
          %v1521 = vsub.s32 1, %v1520
          %v1522 = vrot.slane %v1517, %v1521
          %v1524 = vshrl.u32 %v1402, 16
          %v1525 = vpack.i.b16 %v1524, %v1524
          %v1527 = vlaneseq
          %v1528 = vshrl.u32 %v1527, 7
          %v1529 = vsub.s32 1, %v1528
          %v1530 = vrot.slane %v1525, %v1529
          %v1547 = vunpack.c.l.b16 %v1410
          %v1548 = vunpack.c.l.b16 %v1418
          %v1549 = vunpack.c.l.b16 %v1426
          %v1550 = vunpack.c.l.b16 %v1434
          %v1551 = vunpack.c.l.b16 %v1442
          %v1552 = vunpack.c.l.b16 %v1450
          %v1553 = vunpack.c.l.b16 %v1458
          %v1554 = vunpack.c.l.b16 %v1466
          %v1555 = vunpack.c.l.b16 %v1474
          %v1556 = vunpack.c.l.b16 %v1482
          %v1557 = vunpack.c.l.b16 %v1490
          %v1558 = vunpack.c.l.b16 %v1498
          %v1559 = vunpack.c.l.b16 %v1506
          %v1560 = vunpack.c.l.b16 %v1514
          %v1561 = vunpack.c.l.b16 %v1522
          %v1562 = vunpack.c.l.b16 %v1530
          %v1563 = vpack.c.b16 %v1548, %v1547
          %v1564 = vpack.c.b16 %v1550, %v1549
          %v1565 = vpack.c.b16 %v1552, %v1551
          %v1566 = vpack.c.b16 %v1554, %v1553
          %v1567 = vpack.c.b16 %v1556, %v1555
          %v1568 = vpack.c.b16 %v1558, %v1557
          %v1569 = vpack.c.b16 %v1560, %v1559
          %v1570 = vpack.c.b16 %v1562, %v1561
          %v1579 = vadd.bf16 %v1347, %v1563
          %v1580 = vadd.bf16 %v1348, %v1564
          %v1581 = vadd.bf16 %v1349, %v1565
          %v1582 = vadd.bf16 %v1350, %v1566
          %v1583 = vadd.bf16 %v1351, %v1567
          %v1584 = vadd.bf16 %v1352, %v1568
          %v1585 = vadd.bf16 %v1353, %v1569
          %v1586 = vadd.bf16 %v1354, %v1570
          %v1587 = vmax.bf16 %v1579, 0
          %v1588 = vmax.bf16 %v1580, 0
          %v1589 = vmax.bf16 %v1581, 0
          %v1590 = vmax.bf16 %v1582, 0
          %v1591 = vmax.bf16 %v1583, 0
          %v1592 = vmax.bf16 %v1584, 0
          %v1593 = vmax.bf16 %v1585, 0
          %v1594 = vmax.bf16 %v1586, 0
          %v1603 = vunpack.c.l.b16 %v1587
          %v1604 = vunpack.c.h.b16 %v1587
          %v1605 = vunpack.c.l.b16 %v1588
          %v1606 = vunpack.c.h.b16 %v1588
          %v1607 = vunpack.c.l.b16 %v1589
          %v1608 = vunpack.c.h.b16 %v1589
          %v1609 = vunpack.c.l.b16 %v1590
          %v1610 = vunpack.c.h.b16 %v1590
          %v1611 = vunpack.c.l.b16 %v1591
          %v1612 = vunpack.c.h.b16 %v1591
          %v1613 = vunpack.c.l.b16 %v1592
          %v1614 = vunpack.c.h.b16 %v1592
          %v1615 = vunpack.c.l.b16 %v1593
          %v1616 = vunpack.c.h.b16 %v1593
          %v1617 = vunpack.c.l.b16 %v1594
          %v1618 = vunpack.c.h.b16 %v1594
          %v1619 = vpack.c.b16 %v1603, %v1603
          %v1620 = vpack.c.b16 %v1604, %v1604
          %v1621 = vpack.c.b16 %v1605, %v1605
          %v1622 = vpack.c.b16 %v1606, %v1606
          %v1623 = vpack.c.b16 %v1607, %v1607
          %v1624 = vpack.c.b16 %v1608, %v1608
          %v1625 = vpack.c.b16 %v1609, %v1609
          %v1626 = vpack.c.b16 %v1610, %v1610
          %v1627 = vpack.c.b16 %v1611, %v1611
          %v1628 = vpack.c.b16 %v1612, %v1612
          %v1629 = vpack.c.b16 %v1613, %v1613
          %v1630 = vpack.c.b16 %v1614, %v1614
          %v1631 = vpack.c.b16 %v1615, %v1615
          %v1632 = vpack.c.b16 %v1616, %v1616
          %v1633 = vpack.c.b16 %v1617, %v1617
          %v1634 = vpack.c.b16 %v1618, %v1618
          %1651 = vst [vmem:[#allocation2 + $0x80] sm:$0xf0] %v1619
          %1652 = vst [vmem:[#allocation2 + $0x88] sm:$0xf0] %v1620
          %1653 = vst [vmem:[#allocation2 + $0x90] sm:$0xf0] %v1621
          %1654 = vst [vmem:[#allocation2 + $0x98] sm:$0xf0] %v1622
          %1655 = vst [vmem:[#allocation2 + $0xa0] sm:$0xf0] %v1623
          %1656 = vst [vmem:[#allocation2 + $0xa8] sm:$0xf0] %v1624
          %1657 = vst [vmem:[#allocation2 + $0xb0] sm:$0xf0] %v1625
          %1658 = vst [vmem:[#allocation2 + $0xb8] sm:$0xf0] %v1626
          %1659 = vst [vmem:[#allocation2 + $0xc0] sm:$0xf0] %v1627
          %1660 = vst [vmem:[#allocation2 + $0xc8] sm:$0xf0] %v1628
          %1661 = vst [vmem:[#allocation2 + $0xd0] sm:$0xf0] %v1629
          %1662 = vst [vmem:[#allocation2 + $0xd8] sm:$0xf0] %v1630
          %1663 = vst [vmem:[#allocation2 + $0xe0] sm:$0xf0] %v1631
          %1664 = vst [vmem:[#allocation2 + $0xe8] sm:$0xf0] %v1632
          %1665 = vst [vmem:[#allocation2 + $0xf0] sm:$0xf0] %v1633
          %1666 = vst [vmem:[#allocation2 + $0xf8] sm:$0xf0] %v1634
          %v1667 = vld [vmem:[#allocation6] sm:$0xff]
          %v1668 = vld [vmem:[#allocation6 + $0x8] sm:$0xff]
          %v1669 = vld [vmem:[#allocation6 + $0x10] sm:$0xff]
          %v1670 = vld [vmem:[#allocation6 + $0x18] sm:$0xff]
          %v1671 = vld [vmem:[#allocation6 + $0x20] sm:$0xff]
          %v1672 = vld [vmem:[#allocation6 + $0x28] sm:$0xff]
          %v1673 = vld [vmem:[#allocation6 + $0x30] sm:$0xff]
          %v1674 = vld [vmem:[#allocation6 + $0x38] sm:$0xff]
          %v1675 = vld [vmem:[#allocation4] sm:$0x44]
          %v1676 = vld [vmem:[#allocation4 + $0x8] sm:$0x44]
          %v1677 = vld [vmem:[#allocation4 + $0x10] sm:$0x44]
          %v1678 = vld [vmem:[#allocation4 + $0x18] sm:$0x44]
          %v1679 = vld [vmem:[#allocation4 + $0x20] sm:$0x44]
          %v1680 = vld [vmem:[#allocation4 + $0x28] sm:$0x44]
          %v1681 = vld [vmem:[#allocation4 + $0x30] sm:$0x44]
          %v1682 = vld [vmem:[#allocation4 + $0x38] sm:$0x44]
          %v1691 = vunpack.c.l.b16 %v1675
          %v1692 = vunpack.c.h.b16 %v1675
          %v1693 = vunpack.c.l.b16 %v1676
          %v1694 = vunpack.c.h.b16 %v1676
          %v1695 = vunpack.c.l.b16 %v1677
          %v1696 = vunpack.c.h.b16 %v1677
          %v1697 = vunpack.c.l.b16 %v1678
          %v1698 = vunpack.c.h.b16 %v1678
          %v1699 = vunpack.c.l.b16 %v1679
          %v1700 = vunpack.c.h.b16 %v1679
          %v1701 = vunpack.c.l.b16 %v1680
          %v1702 = vunpack.c.h.b16 %v1680
          %v1703 = vunpack.c.l.b16 %v1681
          %v1704 = vunpack.c.h.b16 %v1681
          %v1705 = vunpack.c.l.b16 %v1682
          %v1706 = vunpack.c.h.b16 %v1682
          %v1707 = vpack.c.b16 %v1691, %v1691
          %v1708 = vpack.c.b16 %v1692, %v1692
          %v1709 = vpack.c.b16 %v1693, %v1693
          %v1710 = vpack.c.b16 %v1694, %v1694
          %v1711 = vpack.c.b16 %v1695, %v1695
          %v1712 = vpack.c.b16 %v1696, %v1696
          %v1713 = vpack.c.b16 %v1697, %v1697
          %v1714 = vpack.c.b16 %v1698, %v1698
          %v1715 = vpack.c.b16 %v1699, %v1699
          %v1716 = vpack.c.b16 %v1700, %v1700
          %v1717 = vpack.c.b16 %v1701, %v1701
          %v1718 = vpack.c.b16 %v1702, %v1702
          %v1719 = vpack.c.b16 %v1703, %v1703
          %v1720 = vpack.c.b16 %v1704, %v1704
          %v1721 = vpack.c.b16 %v1705, %v1705
          %v1722 = vpack.c.b16 %v1706, %v1706
          %v1724 = vpack.i.b16 %v1707, %v1707
          %v1726 = vlaneseq
          %v1727 = vshrl.u32 %v1726, 7
          %v1728 = vsub.s32 2, %v1727
          %v1729 = vrot.slane %v1724, %v1728
          %v1731 = vpack.i.b16 %v1708, %v1708
          %v1733 = vlaneseq
          %v1734 = vshrl.u32 %v1733, 7
          %v1735 = vsub.s32 2, %v1734
          %v1736 = vrot.slane %v1731, %v1735
          %v1738 = vpack.i.b16 %v1709, %v1709
          %v1740 = vlaneseq
          %v1741 = vshrl.u32 %v1740, 7
          %v1742 = vsub.s32 2, %v1741
          %v1743 = vrot.slane %v1738, %v1742
          %v1745 = vpack.i.b16 %v1710, %v1710
          %v1747 = vlaneseq
          %v1748 = vshrl.u32 %v1747, 7
          %v1749 = vsub.s32 2, %v1748
          %v1750 = vrot.slane %v1745, %v1749
          %v1752 = vpack.i.b16 %v1711, %v1711
          %v1754 = vlaneseq
          %v1755 = vshrl.u32 %v1754, 7
          %v1756 = vsub.s32 2, %v1755
          %v1757 = vrot.slane %v1752, %v1756
          %v1759 = vpack.i.b16 %v1712, %v1712
          %v1761 = vlaneseq
          %v1762 = vshrl.u32 %v1761, 7
          %v1763 = vsub.s32 2, %v1762
          %v1764 = vrot.slane %v1759, %v1763
          %v1766 = vpack.i.b16 %v1713, %v1713
          %v1768 = vlaneseq
          %v1769 = vshrl.u32 %v1768, 7
          %v1770 = vsub.s32 2, %v1769
          %v1771 = vrot.slane %v1766, %v1770
          %v1773 = vpack.i.b16 %v1714, %v1714
          %v1775 = vlaneseq
          %v1776 = vshrl.u32 %v1775, 7
          %v1777 = vsub.s32 2, %v1776
          %v1778 = vrot.slane %v1773, %v1777
          %v1780 = vpack.i.b16 %v1715, %v1715
          %v1782 = vlaneseq
          %v1783 = vshrl.u32 %v1782, 7
          %v1784 = vsub.s32 2, %v1783
          %v1785 = vrot.slane %v1780, %v1784
          %v1787 = vpack.i.b16 %v1716, %v1716
          %v1789 = vlaneseq
          %v1790 = vshrl.u32 %v1789, 7
          %v1791 = vsub.s32 2, %v1790
          %v1792 = vrot.slane %v1787, %v1791
          %v1794 = vpack.i.b16 %v1717, %v1717
          %v1796 = vlaneseq
          %v1797 = vshrl.u32 %v1796, 7
          %v1798 = vsub.s32 2, %v1797
          %v1799 = vrot.slane %v1794, %v1798
          %v1801 = vpack.i.b16 %v1718, %v1718
          %v1803 = vlaneseq
          %v1804 = vshrl.u32 %v1803, 7
          %v1805 = vsub.s32 2, %v1804
          %v1806 = vrot.slane %v1801, %v1805
          %v1808 = vpack.i.b16 %v1719, %v1719
          %v1810 = vlaneseq
          %v1811 = vshrl.u32 %v1810, 7
          %v1812 = vsub.s32 2, %v1811
          %v1813 = vrot.slane %v1808, %v1812
          %v1815 = vpack.i.b16 %v1720, %v1720
          %v1817 = vlaneseq
          %v1818 = vshrl.u32 %v1817, 7
          %v1819 = vsub.s32 2, %v1818
          %v1820 = vrot.slane %v1815, %v1819
          %v1822 = vpack.i.b16 %v1721, %v1721
          %v1824 = vlaneseq
          %v1825 = vshrl.u32 %v1824, 7
          %v1826 = vsub.s32 2, %v1825
          %v1827 = vrot.slane %v1822, %v1826
          %v1829 = vpack.i.b16 %v1722, %v1722
          %v1831 = vlaneseq
          %v1832 = vshrl.u32 %v1831, 7
          %v1833 = vsub.s32 2, %v1832
          %v1834 = vrot.slane %v1829, %v1833
          %v1851 = vunpack.c.l.b16 %v1729
          %v1852 = vunpack.c.l.b16 %v1736
          %v1853 = vunpack.c.l.b16 %v1743
          %v1854 = vunpack.c.l.b16 %v1750
          %v1855 = vunpack.c.l.b16 %v1757
          %v1856 = vunpack.c.l.b16 %v1764
          %v1857 = vunpack.c.l.b16 %v1771
          %v1858 = vunpack.c.l.b16 %v1778
          %v1859 = vunpack.c.l.b16 %v1785
          %v1860 = vunpack.c.l.b16 %v1792
          %v1861 = vunpack.c.l.b16 %v1799
          %v1862 = vunpack.c.l.b16 %v1806
          %v1863 = vunpack.c.l.b16 %v1813
          %v1864 = vunpack.c.l.b16 %v1820
          %v1865 = vunpack.c.l.b16 %v1827
          %v1866 = vunpack.c.l.b16 %v1834
          %v1867 = vpack.c.b16 %v1852, %v1851
          %v1868 = vpack.c.b16 %v1854, %v1853
          %v1869 = vpack.c.b16 %v1856, %v1855
          %v1870 = vpack.c.b16 %v1858, %v1857
          %v1871 = vpack.c.b16 %v1860, %v1859
          %v1872 = vpack.c.b16 %v1862, %v1861
          %v1873 = vpack.c.b16 %v1864, %v1863
          %v1874 = vpack.c.b16 %v1866, %v1865
          %v1883 = vadd.bf16 %v1667, %v1867
          %v1884 = vadd.bf16 %v1668, %v1868
          %v1885 = vadd.bf16 %v1669, %v1869
          %v1886 = vadd.bf16 %v1670, %v1870
          %v1887 = vadd.bf16 %v1671, %v1871
          %v1888 = vadd.bf16 %v1672, %v1872
          %v1889 = vadd.bf16 %v1673, %v1873
          %v1890 = vadd.bf16 %v1674, %v1874
          %v1891 = vmax.bf16 %v1883, 0
          %v1892 = vmax.bf16 %v1884, 0
          %v1893 = vmax.bf16 %v1885, 0
          %v1894 = vmax.bf16 %v1886, 0
          %v1895 = vmax.bf16 %v1887, 0
          %v1896 = vmax.bf16 %v1888, 0
          %v1897 = vmax.bf16 %v1889, 0
          %v1898 = vmax.bf16 %v1890, 0
          %v1907 = vunpack.c.l.b16 %v1891
          %v1908 = vunpack.c.h.b16 %v1891
          %v1909 = vunpack.c.l.b16 %v1892
          %v1910 = vunpack.c.h.b16 %v1892
          %v1911 = vunpack.c.l.b16 %v1893
          %v1912 = vunpack.c.h.b16 %v1893
          %v1913 = vunpack.c.l.b16 %v1894
          %v1914 = vunpack.c.h.b16 %v1894
          %v1915 = vunpack.c.l.b16 %v1895
          %v1916 = vunpack.c.h.b16 %v1895
          %v1917 = vunpack.c.l.b16 %v1896
          %v1918 = vunpack.c.h.b16 %v1896
          %v1919 = vunpack.c.l.b16 %v1897
          %v1920 = vunpack.c.h.b16 %v1897
          %v1921 = vunpack.c.l.b16 %v1898
          %v1922 = vunpack.c.h.b16 %v1898
          %v1923 = vpack.c.b16 %v1907, %v1907
          %v1924 = vpack.c.b16 %v1908, %v1908
          %v1925 = vpack.c.b16 %v1909, %v1909
          %v1926 = vpack.c.b16 %v1910, %v1910
          %v1927 = vpack.c.b16 %v1911, %v1911
          %v1928 = vpack.c.b16 %v1912, %v1912
          %v1929 = vpack.c.b16 %v1913, %v1913
          %v1930 = vpack.c.b16 %v1914, %v1914
          %v1931 = vpack.c.b16 %v1915, %v1915
          %v1932 = vpack.c.b16 %v1916, %v1916
          %v1933 = vpack.c.b16 %v1917, %v1917
          %v1934 = vpack.c.b16 %v1918, %v1918
          %v1935 = vpack.c.b16 %v1919, %v1919
          %v1936 = vpack.c.b16 %v1920, %v1920
          %v1937 = vpack.c.b16 %v1921, %v1921
          %v1938 = vpack.c.b16 %v1922, %v1922
          %1955 = vst [vmem:[#allocation2 + $0x100] sm:$0xf] %v1923
          %1956 = vst [vmem:[#allocation2 + $0x108] sm:$0xf] %v1924
          %1957 = vst [vmem:[#allocation2 + $0x110] sm:$0xf] %v1925
          %1958 = vst [vmem:[#allocation2 + $0x118] sm:$0xf] %v1926
          %1959 = vst [vmem:[#allocation2 + $0x120] sm:$0xf] %v1927
          %1960 = vst [vmem:[#allocation2 + $0x128] sm:$0xf] %v1928
          %1961 = vst [vmem:[#allocation2 + $0x130] sm:$0xf] %v1929
          %1962 = vst [vmem:[#allocation2 + $0x138] sm:$0xf] %v1930
          %1963 = vst [vmem:[#allocation2 + $0x140] sm:$0xf] %v1931
          %1964 = vst [vmem:[#allocation2 + $0x148] sm:$0xf] %v1932
          %1965 = vst [vmem:[#allocation2 + $0x150] sm:$0xf] %v1933
          %1966 = vst [vmem:[#allocation2 + $0x158] sm:$0xf] %v1934
          %1967 = vst [vmem:[#allocation2 + $0x160] sm:$0xf] %v1935
          %1968 = vst [vmem:[#allocation2 + $0x168] sm:$0xf] %v1936
          %1969 = vst [vmem:[#allocation2 + $0x170] sm:$0xf] %v1937
          %1970 = vst [vmem:[#allocation2 + $0x178] sm:$0xf] %v1938
          %v1971 = vld [vmem:[#allocation6] sm:$0xff]
          %v1972 = vld [vmem:[#allocation6 + $0x8] sm:$0xff]
          %v1973 = vld [vmem:[#allocation6 + $0x10] sm:$0xff]
          %v1974 = vld [vmem:[#allocation6 + $0x18] sm:$0xff]
          %v1975 = vld [vmem:[#allocation6 + $0x20] sm:$0xff]
          %v1976 = vld [vmem:[#allocation6 + $0x28] sm:$0xff]
          %v1977 = vld [vmem:[#allocation6 + $0x30] sm:$0xff]
          %v1978 = vld [vmem:[#allocation6 + $0x38] sm:$0xff]
          %v1979 = vld [vmem:[#allocation4] sm:$0x44]
          %v1980 = vld [vmem:[#allocation4 + $0x8] sm:$0x44]
          %v1981 = vld [vmem:[#allocation4 + $0x10] sm:$0x44]
          %v1982 = vld [vmem:[#allocation4 + $0x18] sm:$0x44]
          %v1983 = vld [vmem:[#allocation4 + $0x20] sm:$0x44]
          %v1984 = vld [vmem:[#allocation4 + $0x28] sm:$0x44]
          %v1985 = vld [vmem:[#allocation4 + $0x30] sm:$0x44]
          %v1986 = vld [vmem:[#allocation4 + $0x38] sm:$0x44]
          %v1995 = vunpack.c.l.b16 %v1979
          %v1996 = vunpack.c.h.b16 %v1979
          %v1997 = vunpack.c.l.b16 %v1980
          %v1998 = vunpack.c.h.b16 %v1980
          %v1999 = vunpack.c.l.b16 %v1981
          %v2000 = vunpack.c.h.b16 %v1981
          %v2001 = vunpack.c.l.b16 %v1982
          %v2002 = vunpack.c.h.b16 %v1982
          %v2003 = vunpack.c.l.b16 %v1983
          %v2004 = vunpack.c.h.b16 %v1983
          %v2005 = vunpack.c.l.b16 %v1984
          %v2006 = vunpack.c.h.b16 %v1984
          %v2007 = vunpack.c.l.b16 %v1985
          %v2008 = vunpack.c.h.b16 %v1985
          %v2009 = vunpack.c.l.b16 %v1986
          %v2010 = vunpack.c.h.b16 %v1986
          %v2011 = vpack.c.b16 %v1995, %v1995
          %v2012 = vpack.c.b16 %v1996, %v1996
          %v2013 = vpack.c.b16 %v1997, %v1997
          %v2014 = vpack.c.b16 %v1998, %v1998
          %v2015 = vpack.c.b16 %v1999, %v1999
          %v2016 = vpack.c.b16 %v2000, %v2000
          %v2017 = vpack.c.b16 %v2001, %v2001
          %v2018 = vpack.c.b16 %v2002, %v2002
          %v2019 = vpack.c.b16 %v2003, %v2003
          %v2020 = vpack.c.b16 %v2004, %v2004
          %v2021 = vpack.c.b16 %v2005, %v2005
          %v2022 = vpack.c.b16 %v2006, %v2006
          %v2023 = vpack.c.b16 %v2007, %v2007
          %v2024 = vpack.c.b16 %v2008, %v2008
          %v2025 = vpack.c.b16 %v2009, %v2009
          %v2026 = vpack.c.b16 %v2010, %v2010
          %v2028 = vshrl.u32 %v2011, 16
          %v2029 = vpack.i.b16 %v2028, %v2028
          %v2031 = vlaneseq
          %v2032 = vshrl.u32 %v2031, 7
          %v2033 = vsub.s32 2, %v2032
          %v2034 = vrot.slane %v2029, %v2033
          %v2036 = vshrl.u32 %v2012, 16
          %v2037 = vpack.i.b16 %v2036, %v2036
          %v2039 = vlaneseq
          %v2040 = vshrl.u32 %v2039, 7
          %v2041 = vsub.s32 2, %v2040
          %v2042 = vrot.slane %v2037, %v2041
          %v2044 = vshrl.u32 %v2013, 16
          %v2045 = vpack.i.b16 %v2044, %v2044
          %v2047 = vlaneseq
          %v2048 = vshrl.u32 %v2047, 7
          %v2049 = vsub.s32 2, %v2048
          %v2050 = vrot.slane %v2045, %v2049
          %v2052 = vshrl.u32 %v2014, 16
          %v2053 = vpack.i.b16 %v2052, %v2052
          %v2055 = vlaneseq
          %v2056 = vshrl.u32 %v2055, 7
          %v2057 = vsub.s32 2, %v2056
          %v2058 = vrot.slane %v2053, %v2057
          %v2060 = vshrl.u32 %v2015, 16
          %v2061 = vpack.i.b16 %v2060, %v2060
          %v2063 = vlaneseq
          %v2064 = vshrl.u32 %v2063, 7
          %v2065 = vsub.s32 2, %v2064
          %v2066 = vrot.slane %v2061, %v2065
          %v2068 = vshrl.u32 %v2016, 16
          %v2069 = vpack.i.b16 %v2068, %v2068
          %v2071 = vlaneseq
          %v2072 = vshrl.u32 %v2071, 7
          %v2073 = vsub.s32 2, %v2072
          %v2074 = vrot.slane %v2069, %v2073
          %v2076 = vshrl.u32 %v2017, 16
          %v2077 = vpack.i.b16 %v2076, %v2076
          %v2079 = vlaneseq
          %v2080 = vshrl.u32 %v2079, 7
          %v2081 = vsub.s32 2, %v2080
          %v2082 = vrot.slane %v2077, %v2081
          %v2084 = vshrl.u32 %v2018, 16
          %v2085 = vpack.i.b16 %v2084, %v2084
          %v2087 = vlaneseq
          %v2088 = vshrl.u32 %v2087, 7
          %v2089 = vsub.s32 2, %v2088
          %v2090 = vrot.slane %v2085, %v2089
          %v2092 = vshrl.u32 %v2019, 16
          %v2093 = vpack.i.b16 %v2092, %v2092
          %v2095 = vlaneseq
          %v2096 = vshrl.u32 %v2095, 7
          %v2097 = vsub.s32 2, %v2096
          %v2098 = vrot.slane %v2093, %v2097
          %v2100 = vshrl.u32 %v2020, 16
          %v2101 = vpack.i.b16 %v2100, %v2100
          %v2103 = vlaneseq
          %v2104 = vshrl.u32 %v2103, 7
          %v2105 = vsub.s32 2, %v2104
          %v2106 = vrot.slane %v2101, %v2105
          %v2108 = vshrl.u32 %v2021, 16
          %v2109 = vpack.i.b16 %v2108, %v2108
          %v2111 = vlaneseq
          %v2112 = vshrl.u32 %v2111, 7
          %v2113 = vsub.s32 2, %v2112
          %v2114 = vrot.slane %v2109, %v2113
          %v2116 = vshrl.u32 %v2022, 16
          %v2117 = vpack.i.b16 %v2116, %v2116
          %v2119 = vlaneseq
          %v2120 = vshrl.u32 %v2119, 7
          %v2121 = vsub.s32 2, %v2120
          %v2122 = vrot.slane %v2117, %v2121
          %v2124 = vshrl.u32 %v2023, 16
          %v2125 = vpack.i.b16 %v2124, %v2124
          %v2127 = vlaneseq
          %v2128 = vshrl.u32 %v2127, 7
          %v2129 = vsub.s32 2, %v2128
          %v2130 = vrot.slane %v2125, %v2129
          %v2132 = vshrl.u32 %v2024, 16
          %v2133 = vpack.i.b16 %v2132, %v2132
          %v2135 = vlaneseq
          %v2136 = vshrl.u32 %v2135, 7
          %v2137 = vsub.s32 2, %v2136
          %v2138 = vrot.slane %v2133, %v2137
          %v2140 = vshrl.u32 %v2025, 16
          %v2141 = vpack.i.b16 %v2140, %v2140
          %v2143 = vlaneseq
          %v2144 = vshrl.u32 %v2143, 7
          %v2145 = vsub.s32 2, %v2144
          %v2146 = vrot.slane %v2141, %v2145
          %v2148 = vshrl.u32 %v2026, 16
          %v2149 = vpack.i.b16 %v2148, %v2148
          %v2151 = vlaneseq
          %v2152 = vshrl.u32 %v2151, 7
          %v2153 = vsub.s32 2, %v2152
          %v2154 = vrot.slane %v2149, %v2153
          %v2171 = vunpack.c.l.b16 %v2034
          %v2172 = vunpack.c.l.b16 %v2042
          %v2173 = vunpack.c.l.b16 %v2050
          %v2174 = vunpack.c.l.b16 %v2058
          %v2175 = vunpack.c.l.b16 %v2066
          %v2176 = vunpack.c.l.b16 %v2074
          %v2177 = vunpack.c.l.b16 %v2082
          %v2178 = vunpack.c.l.b16 %v2090
          %v2179 = vunpack.c.l.b16 %v2098
          %v2180 = vunpack.c.l.b16 %v2106
          %v2181 = vunpack.c.l.b16 %v2114
          %v2182 = vunpack.c.l.b16 %v2122
          %v2183 = vunpack.c.l.b16 %v2130
          %v2184 = vunpack.c.l.b16 %v2138
          %v2185 = vunpack.c.l.b16 %v2146
          %v2186 = vunpack.c.l.b16 %v2154
          %v2187 = vpack.c.b16 %v2172, %v2171
          %v2188 = vpack.c.b16 %v2174, %v2173
          %v2189 = vpack.c.b16 %v2176, %v2175
          %v2190 = vpack.c.b16 %v2178, %v2177
          %v2191 = vpack.c.b16 %v2180, %v2179
          %v2192 = vpack.c.b16 %v2182, %v2181
          %v2193 = vpack.c.b16 %v2184, %v2183
          %v2194 = vpack.c.b16 %v2186, %v2185
          %v2203 = vadd.bf16 %v1971, %v2187
          %v2204 = vadd.bf16 %v1972, %v2188
          %v2205 = vadd.bf16 %v1973, %v2189
          %v2206 = vadd.bf16 %v1974, %v2190
          %v2207 = vadd.bf16 %v1975, %v2191
          %v2208 = vadd.bf16 %v1976, %v2192
          %v2209 = vadd.bf16 %v1977, %v2193
          %v2210 = vadd.bf16 %v1978, %v2194
          %v2211 = vmax.bf16 %v2203, 0
          %v2212 = vmax.bf16 %v2204, 0
          %v2213 = vmax.bf16 %v2205, 0
          %v2214 = vmax.bf16 %v2206, 0
          %v2215 = vmax.bf16 %v2207, 0
          %v2216 = vmax.bf16 %v2208, 0
          %v2217 = vmax.bf16 %v2209, 0
          %v2218 = vmax.bf16 %v2210, 0
          %v2227 = vunpack.c.l.b16 %v2211
          %v2228 = vunpack.c.h.b16 %v2211
          %v2229 = vunpack.c.l.b16 %v2212
          %v2230 = vunpack.c.h.b16 %v2212
          %v2231 = vunpack.c.l.b16 %v2213
          %v2232 = vunpack.c.h.b16 %v2213
          %v2233 = vunpack.c.l.b16 %v2214
          %v2234 = vunpack.c.h.b16 %v2214
          %v2235 = vunpack.c.l.b16 %v2215
          %v2236 = vunpack.c.h.b16 %v2215
          %v2237 = vunpack.c.l.b16 %v2216
          %v2238 = vunpack.c.h.b16 %v2216
          %v2239 = vunpack.c.l.b16 %v2217
          %v2240 = vunpack.c.h.b16 %v2217
          %v2241 = vunpack.c.l.b16 %v2218
          %v2242 = vunpack.c.h.b16 %v2218
          %v2243 = vpack.c.b16 %v2227, %v2227
          %v2244 = vpack.c.b16 %v2228, %v2228
          %v2245 = vpack.c.b16 %v2229, %v2229
          %v2246 = vpack.c.b16 %v2230, %v2230
          %v2247 = vpack.c.b16 %v2231, %v2231
          %v2248 = vpack.c.b16 %v2232, %v2232
          %v2249 = vpack.c.b16 %v2233, %v2233
          %v2250 = vpack.c.b16 %v2234, %v2234
          %v2251 = vpack.c.b16 %v2235, %v2235
          %v2252 = vpack.c.b16 %v2236, %v2236
          %v2253 = vpack.c.b16 %v2237, %v2237
          %v2254 = vpack.c.b16 %v2238, %v2238
          %v2255 = vpack.c.b16 %v2239, %v2239
          %v2256 = vpack.c.b16 %v2240, %v2240
          %v2257 = vpack.c.b16 %v2241, %v2241
          %v2258 = vpack.c.b16 %v2242, %v2242
          %2275 = vst [vmem:[#allocation2 + $0x100] sm:$0xf0] %v2243
          %2276 = vst [vmem:[#allocation2 + $0x108] sm:$0xf0] %v2244
          %2277 = vst [vmem:[#allocation2 + $0x110] sm:$0xf0] %v2245
          %2278 = vst [vmem:[#allocation2 + $0x118] sm:$0xf0] %v2246
          %2279 = vst [vmem:[#allocation2 + $0x120] sm:$0xf0] %v2247
          %2280 = vst [vmem:[#allocation2 + $0x128] sm:$0xf0] %v2248
          %2281 = vst [vmem:[#allocation2 + $0x130] sm:$0xf0] %v2249
          %2282 = vst [vmem:[#allocation2 + $0x138] sm:$0xf0] %v2250
          %2283 = vst [vmem:[#allocation2 + $0x140] sm:$0xf0] %v2251
          %2284 = vst [vmem:[#allocation2 + $0x148] sm:$0xf0] %v2252
          %2285 = vst [vmem:[#allocation2 + $0x150] sm:$0xf0] %v2253
          %2286 = vst [vmem:[#allocation2 + $0x158] sm:$0xf0] %v2254
          %2287 = vst [vmem:[#allocation2 + $0x160] sm:$0xf0] %v2255
          %2288 = vst [vmem:[#allocation2 + $0x168] sm:$0xf0] %v2256
          %2289 = vst [vmem:[#allocation2 + $0x170] sm:$0xf0] %v2257
          %2290 = vst [vmem:[#allocation2 + $0x178] sm:$0xf0] %v2258
          %v2291 = vld [vmem:[#allocation6] sm:$0xff]
          %v2292 = vld [vmem:[#allocation6 + $0x8] sm:$0xff]
          %v2293 = vld [vmem:[#allocation6 + $0x10] sm:$0xff]
          %v2294 = vld [vmem:[#allocation6 + $0x18] sm:$0xff]
          %v2295 = vld [vmem:[#allocation6 + $0x20] sm:$0xff]
          %v2296 = vld [vmem:[#allocation6 + $0x28] sm:$0xff]
          %v2297 = vld [vmem:[#allocation6 + $0x30] sm:$0xff]
          %v2298 = vld [vmem:[#allocation6 + $0x38] sm:$0xff]
          %v2299 = vld [vmem:[#allocation4] sm:$0x88]
          %v2300 = vld [vmem:[#allocation4 + $0x8] sm:$0x88]
          %v2301 = vld [vmem:[#allocation4 + $0x10] sm:$0x88]
          %v2302 = vld [vmem:[#allocation4 + $0x18] sm:$0x88]
          %v2303 = vld [vmem:[#allocation4 + $0x20] sm:$0x88]
          %v2304 = vld [vmem:[#allocation4 + $0x28] sm:$0x88]
          %v2305 = vld [vmem:[#allocation4 + $0x30] sm:$0x88]
          %v2306 = vld [vmem:[#allocation4 + $0x38] sm:$0x88]
          %v2315 = vunpack.c.l.b16 %v2299
          %v2316 = vunpack.c.h.b16 %v2299
          %v2317 = vunpack.c.l.b16 %v2300
          %v2318 = vunpack.c.h.b16 %v2300
          %v2319 = vunpack.c.l.b16 %v2301
          %v2320 = vunpack.c.h.b16 %v2301
          %v2321 = vunpack.c.l.b16 %v2302
          %v2322 = vunpack.c.h.b16 %v2302
          %v2323 = vunpack.c.l.b16 %v2303
          %v2324 = vunpack.c.h.b16 %v2303
          %v2325 = vunpack.c.l.b16 %v2304
          %v2326 = vunpack.c.h.b16 %v2304
          %v2327 = vunpack.c.l.b16 %v2305
          %v2328 = vunpack.c.h.b16 %v2305
          %v2329 = vunpack.c.l.b16 %v2306
          %v2330 = vunpack.c.h.b16 %v2306
          %v2331 = vpack.c.b16 %v2315, %v2315
          %v2332 = vpack.c.b16 %v2316, %v2316
          %v2333 = vpack.c.b16 %v2317, %v2317
          %v2334 = vpack.c.b16 %v2318, %v2318
          %v2335 = vpack.c.b16 %v2319, %v2319
          %v2336 = vpack.c.b16 %v2320, %v2320
          %v2337 = vpack.c.b16 %v2321, %v2321
          %v2338 = vpack.c.b16 %v2322, %v2322
          %v2339 = vpack.c.b16 %v2323, %v2323
          %v2340 = vpack.c.b16 %v2324, %v2324
          %v2341 = vpack.c.b16 %v2325, %v2325
          %v2342 = vpack.c.b16 %v2326, %v2326
          %v2343 = vpack.c.b16 %v2327, %v2327
          %v2344 = vpack.c.b16 %v2328, %v2328
          %v2345 = vpack.c.b16 %v2329, %v2329
          %v2346 = vpack.c.b16 %v2330, %v2330
          %v2348 = vpack.i.b16 %v2331, %v2331
          %v2350 = vlaneseq
          %v2351 = vshrl.u32 %v2350, 7
          %v2352 = vsub.s32 3, %v2351
          %v2353 = vrot.slane %v2348, %v2352
          %v2355 = vpack.i.b16 %v2332, %v2332
          %v2357 = vlaneseq
          %v2358 = vshrl.u32 %v2357, 7
          %v2359 = vsub.s32 3, %v2358
          %v2360 = vrot.slane %v2355, %v2359
          %v2362 = vpack.i.b16 %v2333, %v2333
          %v2364 = vlaneseq
          %v2365 = vshrl.u32 %v2364, 7
          %v2366 = vsub.s32 3, %v2365
          %v2367 = vrot.slane %v2362, %v2366
          %v2369 = vpack.i.b16 %v2334, %v2334
          %v2371 = vlaneseq
          %v2372 = vshrl.u32 %v2371, 7
          %v2373 = vsub.s32 3, %v2372
          %v2374 = vrot.slane %v2369, %v2373
          %v2376 = vpack.i.b16 %v2335, %v2335
          %v2378 = vlaneseq
          %v2379 = vshrl.u32 %v2378, 7
          %v2380 = vsub.s32 3, %v2379
          %v2381 = vrot.slane %v2376, %v2380
          %v2383 = vpack.i.b16 %v2336, %v2336
          %v2385 = vlaneseq
          %v2386 = vshrl.u32 %v2385, 7
          %v2387 = vsub.s32 3, %v2386
          %v2388 = vrot.slane %v2383, %v2387
          %v2390 = vpack.i.b16 %v2337, %v2337
          %v2392 = vlaneseq
          %v2393 = vshrl.u32 %v2392, 7
          %v2394 = vsub.s32 3, %v2393
          %v2395 = vrot.slane %v2390, %v2394
          %v2397 = vpack.i.b16 %v2338, %v2338
          %v2399 = vlaneseq
          %v2400 = vshrl.u32 %v2399, 7
          %v2401 = vsub.s32 3, %v2400
          %v2402 = vrot.slane %v2397, %v2401
          %v2404 = vpack.i.b16 %v2339, %v2339
          %v2406 = vlaneseq
          %v2407 = vshrl.u32 %v2406, 7
          %v2408 = vsub.s32 3, %v2407
          %v2409 = vrot.slane %v2404, %v2408
          %v2411 = vpack.i.b16 %v2340, %v2340
          %v2413 = vlaneseq
          %v2414 = vshrl.u32 %v2413, 7
          %v2415 = vsub.s32 3, %v2414
          %v2416 = vrot.slane %v2411, %v2415
          %v2418 = vpack.i.b16 %v2341, %v2341
          %v2420 = vlaneseq
          %v2421 = vshrl.u32 %v2420, 7
          %v2422 = vsub.s32 3, %v2421
          %v2423 = vrot.slane %v2418, %v2422
          %v2425 = vpack.i.b16 %v2342, %v2342
          %v2427 = vlaneseq
          %v2428 = vshrl.u32 %v2427, 7
          %v2429 = vsub.s32 3, %v2428
          %v2430 = vrot.slane %v2425, %v2429
          %v2432 = vpack.i.b16 %v2343, %v2343
          %v2434 = vlaneseq
          %v2435 = vshrl.u32 %v2434, 7
          %v2436 = vsub.s32 3, %v2435
          %v2437 = vrot.slane %v2432, %v2436
          %v2439 = vpack.i.b16 %v2344, %v2344
          %v2441 = vlaneseq
          %v2442 = vshrl.u32 %v2441, 7
          %v2443 = vsub.s32 3, %v2442
          %v2444 = vrot.slane %v2439, %v2443
          %v2446 = vpack.i.b16 %v2345, %v2345
          %v2448 = vlaneseq
          %v2449 = vshrl.u32 %v2448, 7
          %v2450 = vsub.s32 3, %v2449
          %v2451 = vrot.slane %v2446, %v2450
          %v2453 = vpack.i.b16 %v2346, %v2346
          %v2455 = vlaneseq
          %v2456 = vshrl.u32 %v2455, 7
          %v2457 = vsub.s32 3, %v2456
          %v2458 = vrot.slane %v2453, %v2457
          %v2475 = vunpack.c.l.b16 %v2353
          %v2476 = vunpack.c.l.b16 %v2360
          %v2477 = vunpack.c.l.b16 %v2367
          %v2478 = vunpack.c.l.b16 %v2374
          %v2479 = vunpack.c.l.b16 %v2381
          %v2480 = vunpack.c.l.b16 %v2388
          %v2481 = vunpack.c.l.b16 %v2395
          %v2482 = vunpack.c.l.b16 %v2402
          %v2483 = vunpack.c.l.b16 %v2409
          %v2484 = vunpack.c.l.b16 %v2416
          %v2485 = vunpack.c.l.b16 %v2423
          %v2486 = vunpack.c.l.b16 %v2430
          %v2487 = vunpack.c.l.b16 %v2437
          %v2488 = vunpack.c.l.b16 %v2444
          %v2489 = vunpack.c.l.b16 %v2451
          %v2490 = vunpack.c.l.b16 %v2458
          %v2491 = vpack.c.b16 %v2476, %v2475
          %v2492 = vpack.c.b16 %v2478, %v2477
          %v2493 = vpack.c.b16 %v2480, %v2479
          %v2494 = vpack.c.b16 %v2482, %v2481
          %v2495 = vpack.c.b16 %v2484, %v2483
          %v2496 = vpack.c.b16 %v2486, %v2485
          %v2497 = vpack.c.b16 %v2488, %v2487
          %v2498 = vpack.c.b16 %v2490, %v2489
          %v2507 = vadd.bf16 %v2291, %v2491
          %v2508 = vadd.bf16 %v2292, %v2492
          %v2509 = vadd.bf16 %v2293, %v2493
          %v2510 = vadd.bf16 %v2294, %v2494
          %v2511 = vadd.bf16 %v2295, %v2495
          %v2512 = vadd.bf16 %v2296, %v2496
          %v2513 = vadd.bf16 %v2297, %v2497
          %v2514 = vadd.bf16 %v2298, %v2498
          %v2515 = vmax.bf16 %v2507, 0
          %v2516 = vmax.bf16 %v2508, 0
          %v2517 = vmax.bf16 %v2509, 0
          %v2518 = vmax.bf16 %v2510, 0
          %v2519 = vmax.bf16 %v2511, 0
          %v2520 = vmax.bf16 %v2512, 0
          %v2521 = vmax.bf16 %v2513, 0
          %v2522 = vmax.bf16 %v2514, 0
          %v2531 = vunpack.c.l.b16 %v2515
          %v2532 = vunpack.c.h.b16 %v2515
          %v2533 = vunpack.c.l.b16 %v2516
          %v2534 = vunpack.c.h.b16 %v2516
          %v2535 = vunpack.c.l.b16 %v2517
          %v2536 = vunpack.c.h.b16 %v2517
          %v2537 = vunpack.c.l.b16 %v2518
          %v2538 = vunpack.c.h.b16 %v2518
          %v2539 = vunpack.c.l.b16 %v2519
          %v2540 = vunpack.c.h.b16 %v2519
          %v2541 = vunpack.c.l.b16 %v2520
          %v2542 = vunpack.c.h.b16 %v2520
          %v2543 = vunpack.c.l.b16 %v2521
          %v2544 = vunpack.c.h.b16 %v2521
          %v2545 = vunpack.c.l.b16 %v2522
          %v2546 = vunpack.c.h.b16 %v2522
          %v2547 = vpack.c.b16 %v2531, %v2531
          %v2548 = vpack.c.b16 %v2532, %v2532
          %v2549 = vpack.c.b16 %v2533, %v2533
          %v2550 = vpack.c.b16 %v2534, %v2534
          %v2551 = vpack.c.b16 %v2535, %v2535
          %v2552 = vpack.c.b16 %v2536, %v2536
          %v2553 = vpack.c.b16 %v2537, %v2537
          %v2554 = vpack.c.b16 %v2538, %v2538
          %v2555 = vpack.c.b16 %v2539, %v2539
          %v2556 = vpack.c.b16 %v2540, %v2540
          %v2557 = vpack.c.b16 %v2541, %v2541
          %v2558 = vpack.c.b16 %v2542, %v2542
          %v2559 = vpack.c.b16 %v2543, %v2543
          %v2560 = vpack.c.b16 %v2544, %v2544
          %v2561 = vpack.c.b16 %v2545, %v2545
          %v2562 = vpack.c.b16 %v2546, %v2546
          %2579 = vst [vmem:[#allocation2 + $0x180] sm:$0xf] %v2547
          %2580 = vst [vmem:[#allocation2 + $0x188] sm:$0xf] %v2548
          %2581 = vst [vmem:[#allocation2 + $0x190] sm:$0xf] %v2549
          %2582 = vst [vmem:[#allocation2 + $0x198] sm:$0xf] %v2550
          %2583 = vst [vmem:[#allocation2 + $0x1a0] sm:$0xf] %v2551
          %2584 = vst [vmem:[#allocation2 + $0x1a8] sm:$0xf] %v2552
          %2585 = vst [vmem:[#allocation2 + $0x1b0] sm:$0xf] %v2553
          %2586 = vst [vmem:[#allocation2 + $0x1b8] sm:$0xf] %v2554
          %2587 = vst [vmem:[#allocation2 + $0x1c0] sm:$0xf] %v2555
          %2588 = vst [vmem:[#allocation2 + $0x1c8] sm:$0xf] %v2556
          %2589 = vst [vmem:[#allocation2 + $0x1d0] sm:$0xf] %v2557
          %2590 = vst [vmem:[#allocation2 + $0x1d8] sm:$0xf] %v2558
          %2591 = vst [vmem:[#allocation2 + $0x1e0] sm:$0xf] %v2559
          %2592 = vst [vmem:[#allocation2 + $0x1e8] sm:$0xf] %v2560
          %2593 = vst [vmem:[#allocation2 + $0x1f0] sm:$0xf] %v2561
          %2594 = vst [vmem:[#allocation2 + $0x1f8] sm:$0xf] %v2562
          %v2595 = vld [vmem:[#allocation6] sm:$0xff]
          %v2596 = vld [vmem:[#allocation6 + $0x8] sm:$0xff]
          %v2597 = vld [vmem:[#allocation6 + $0x10] sm:$0xff]
          %v2598 = vld [vmem:[#allocation6 + $0x18] sm:$0xff]
          %v2599 = vld [vmem:[#allocation6 + $0x20] sm:$0xff]
          %v2600 = vld [vmem:[#allocation6 + $0x28] sm:$0xff]
          %v2601 = vld [vmem:[#allocation6 + $0x30] sm:$0xff]
          %v2602 = vld [vmem:[#allocation6 + $0x38] sm:$0xff]
          %v2603 = vld [vmem:[#allocation4] sm:$0x88]
          %v2604 = vld [vmem:[#allocation4 + $0x8] sm:$0x88]
          %v2605 = vld [vmem:[#allocation4 + $0x10] sm:$0x88]
          %v2606 = vld [vmem:[#allocation4 + $0x18] sm:$0x88]
          %v2607 = vld [vmem:[#allocation4 + $0x20] sm:$0x88]
          %v2608 = vld [vmem:[#allocation4 + $0x28] sm:$0x88]
          %v2609 = vld [vmem:[#allocation4 + $0x30] sm:$0x88]
          %v2610 = vld [vmem:[#allocation4 + $0x38] sm:$0x88]
          %v2619 = vunpack.c.l.b16 %v2603
          %v2620 = vunpack.c.h.b16 %v2603
          %v2621 = vunpack.c.l.b16 %v2604
          %v2622 = vunpack.c.h.b16 %v2604
          %v2623 = vunpack.c.l.b16 %v2605
          %v2624 = vunpack.c.h.b16 %v2605
          %v2625 = vunpack.c.l.b16 %v2606
          %v2626 = vunpack.c.h.b16 %v2606
          %v2627 = vunpack.c.l.b16 %v2607
          %v2628 = vunpack.c.h.b16 %v2607
          %v2629 = vunpack.c.l.b16 %v2608
          %v2630 = vunpack.c.h.b16 %v2608
          %v2631 = vunpack.c.l.b16 %v2609
          %v2632 = vunpack.c.h.b16 %v2609
          %v2633 = vunpack.c.l.b16 %v2610
          %v2634 = vunpack.c.h.b16 %v2610
          %v2635 = vpack.c.b16 %v2619, %v2619
          %v2636 = vpack.c.b16 %v2620, %v2620
          %v2637 = vpack.c.b16 %v2621, %v2621
          %v2638 = vpack.c.b16 %v2622, %v2622
          %v2639 = vpack.c.b16 %v2623, %v2623
          %v2640 = vpack.c.b16 %v2624, %v2624
          %v2641 = vpack.c.b16 %v2625, %v2625
          %v2642 = vpack.c.b16 %v2626, %v2626
          %v2643 = vpack.c.b16 %v2627, %v2627
          %v2644 = vpack.c.b16 %v2628, %v2628
          %v2645 = vpack.c.b16 %v2629, %v2629
          %v2646 = vpack.c.b16 %v2630, %v2630
          %v2647 = vpack.c.b16 %v2631, %v2631
          %v2648 = vpack.c.b16 %v2632, %v2632
          %v2649 = vpack.c.b16 %v2633, %v2633
          %v2650 = vpack.c.b16 %v2634, %v2634
          %v2652 = vshrl.u32 %v2635, 16
          %v2653 = vpack.i.b16 %v2652, %v2652
          %v2655 = vlaneseq
          %v2656 = vshrl.u32 %v2655, 7
          %v2657 = vsub.s32 3, %v2656
          %v2658 = vrot.slane %v2653, %v2657
          %v2660 = vshrl.u32 %v2636, 16
          %v2661 = vpack.i.b16 %v2660, %v2660
          %v2663 = vlaneseq
          %v2664 = vshrl.u32 %v2663, 7
          %v2665 = vsub.s32 3, %v2664
          %v2666 = vrot.slane %v2661, %v2665
          %v2668 = vshrl.u32 %v2637, 16
          %v2669 = vpack.i.b16 %v2668, %v2668
          %v2671 = vlaneseq
          %v2672 = vshrl.u32 %v2671, 7
          %v2673 = vsub.s32 3, %v2672
          %v2674 = vrot.slane %v2669, %v2673
          %v2676 = vshrl.u32 %v2638, 16
          %v2677 = vpack.i.b16 %v2676, %v2676
          %v2679 = vlaneseq
          %v2680 = vshrl.u32 %v2679, 7
          %v2681 = vsub.s32 3, %v2680
          %v2682 = vrot.slane %v2677, %v2681
          %v2684 = vshrl.u32 %v2639, 16
          %v2685 = vpack.i.b16 %v2684, %v2684
          %v2687 = vlaneseq
          %v2688 = vshrl.u32 %v2687, 7
          %v2689 = vsub.s32 3, %v2688
          %v2690 = vrot.slane %v2685, %v2689
          %v2692 = vshrl.u32 %v2640, 16
          %v2693 = vpack.i.b16 %v2692, %v2692
          %v2695 = vlaneseq
          %v2696 = vshrl.u32 %v2695, 7
          %v2697 = vsub.s32 3, %v2696
          %v2698 = vrot.slane %v2693, %v2697
          %v2700 = vshrl.u32 %v2641, 16
          %v2701 = vpack.i.b16 %v2700, %v2700
          %v2703 = vlaneseq
          %v2704 = vshrl.u32 %v2703, 7
          %v2705 = vsub.s32 3, %v2704
          %v2706 = vrot.slane %v2701, %v2705
          %v2708 = vshrl.u32 %v2642, 16
          %v2709 = vpack.i.b16 %v2708, %v2708
          %v2711 = vlaneseq
          %v2712 = vshrl.u32 %v2711, 7
          %v2713 = vsub.s32 3, %v2712
          %v2714 = vrot.slane %v2709, %v2713
          %v2716 = vshrl.u32 %v2643, 16
          %v2717 = vpack.i.b16 %v2716, %v2716
          %v2719 = vlaneseq
          %v2720 = vshrl.u32 %v2719, 7
          %v2721 = vsub.s32 3, %v2720
          %v2722 = vrot.slane %v2717, %v2721
          %v2724 = vshrl.u32 %v2644, 16
          %v2725 = vpack.i.b16 %v2724, %v2724
          %v2727 = vlaneseq
          %v2728 = vshrl.u32 %v2727, 7
          %v2729 = vsub.s32 3, %v2728
          %v2730 = vrot.slane %v2725, %v2729
          %v2732 = vshrl.u32 %v2645, 16
          %v2733 = vpack.i.b16 %v2732, %v2732
          %v2735 = vlaneseq
          %v2736 = vshrl.u32 %v2735, 7
          %v2737 = vsub.s32 3, %v2736
          %v2738 = vrot.slane %v2733, %v2737
          %v2740 = vshrl.u32 %v2646, 16
          %v2741 = vpack.i.b16 %v2740, %v2740
          %v2743 = vlaneseq
          %v2744 = vshrl.u32 %v2743, 7
          %v2745 = vsub.s32 3, %v2744
          %v2746 = vrot.slane %v2741, %v2745
          %v2748 = vshrl.u32 %v2647, 16
          %v2749 = vpack.i.b16 %v2748, %v2748
          %v2751 = vlaneseq
          %v2752 = vshrl.u32 %v2751, 7
          %v2753 = vsub.s32 3, %v2752
          %v2754 = vrot.slane %v2749, %v2753
          %v2756 = vshrl.u32 %v2648, 16
          %v2757 = vpack.i.b16 %v2756, %v2756
          %v2759 = vlaneseq
          %v2760 = vshrl.u32 %v2759, 7
          %v2761 = vsub.s32 3, %v2760
          %v2762 = vrot.slane %v2757, %v2761
          %v2764 = vshrl.u32 %v2649, 16
          %v2765 = vpack.i.b16 %v2764, %v2764
          %v2767 = vlaneseq
          %v2768 = vshrl.u32 %v2767, 7
          %v2769 = vsub.s32 3, %v2768
          %v2770 = vrot.slane %v2765, %v2769
          %v2772 = vshrl.u32 %v2650, 16
          %v2773 = vpack.i.b16 %v2772, %v2772
          %v2775 = vlaneseq
          %v2776 = vshrl.u32 %v2775, 7
          %v2777 = vsub.s32 3, %v2776
          %v2778 = vrot.slane %v2773, %v2777
          %v2795 = vunpack.c.l.b16 %v2658
          %v2796 = vunpack.c.l.b16 %v2666
          %v2797 = vunpack.c.l.b16 %v2674
          %v2798 = vunpack.c.l.b16 %v2682
          %v2799 = vunpack.c.l.b16 %v2690
          %v2800 = vunpack.c.l.b16 %v2698
          %v2801 = vunpack.c.l.b16 %v2706
          %v2802 = vunpack.c.l.b16 %v2714
          %v2803 = vunpack.c.l.b16 %v2722
          %v2804 = vunpack.c.l.b16 %v2730
          %v2805 = vunpack.c.l.b16 %v2738
          %v2806 = vunpack.c.l.b16 %v2746
          %v2807 = vunpack.c.l.b16 %v2754
          %v2808 = vunpack.c.l.b16 %v2762
          %v2809 = vunpack.c.l.b16 %v2770
          %v2810 = vunpack.c.l.b16 %v2778
          %v2811 = vpack.c.b16 %v2796, %v2795
          %v2812 = vpack.c.b16 %v2798, %v2797
          %v2813 = vpack.c.b16 %v2800, %v2799
          %v2814 = vpack.c.b16 %v2802, %v2801
          %v2815 = vpack.c.b16 %v2804, %v2803
          %v2816 = vpack.c.b16 %v2806, %v2805
          %v2817 = vpack.c.b16 %v2808, %v2807
          %v2818 = vpack.c.b16 %v2810, %v2809
          %v2827 = vadd.bf16 %v2595, %v2811
          %v2828 = vadd.bf16 %v2596, %v2812
          %v2829 = vadd.bf16 %v2597, %v2813
          %v2830 = vadd.bf16 %v2598, %v2814
          %v2831 = vadd.bf16 %v2599, %v2815
          %v2832 = vadd.bf16 %v2600, %v2816
          %v2833 = vadd.bf16 %v2601, %v2817
          %v2834 = vadd.bf16 %v2602, %v2818
          %v2835 = vmax.bf16 %v2827, 0
          %v2836 = vmax.bf16 %v2828, 0
          %v2837 = vmax.bf16 %v2829, 0
          %v2838 = vmax.bf16 %v2830, 0
          %v2839 = vmax.bf16 %v2831, 0
          %v2840 = vmax.bf16 %v2832, 0
          %v2841 = vmax.bf16 %v2833, 0
          %v2842 = vmax.bf16 %v2834, 0
          %v2851 = vunpack.c.l.b16 %v2835
          %v2852 = vunpack.c.h.b16 %v2835
          %v2853 = vunpack.c.l.b16 %v2836
          %v2854 = vunpack.c.h.b16 %v2836
          %v2855 = vunpack.c.l.b16 %v2837
          %v2856 = vunpack.c.h.b16 %v2837
          %v2857 = vunpack.c.l.b16 %v2838
          %v2858 = vunpack.c.h.b16 %v2838
          %v2859 = vunpack.c.l.b16 %v2839
          %v2860 = vunpack.c.h.b16 %v2839
          %v2861 = vunpack.c.l.b16 %v2840
          %v2862 = vunpack.c.h.b16 %v2840
          %v2863 = vunpack.c.l.b16 %v2841
          %v2864 = vunpack.c.h.b16 %v2841
          %v2865 = vunpack.c.l.b16 %v2842
          %v2866 = vunpack.c.h.b16 %v2842
          %v2867 = vpack.c.b16 %v2851, %v2851
          %v2868 = vpack.c.b16 %v2852, %v2852
          %v2869 = vpack.c.b16 %v2853, %v2853
          %v2870 = vpack.c.b16 %v2854, %v2854
          %v2871 = vpack.c.b16 %v2855, %v2855
          %v2872 = vpack.c.b16 %v2856, %v2856
          %v2873 = vpack.c.b16 %v2857, %v2857
          %v2874 = vpack.c.b16 %v2858, %v2858
          %v2875 = vpack.c.b16 %v2859, %v2859
          %v2876 = vpack.c.b16 %v2860, %v2860
          %v2877 = vpack.c.b16 %v2861, %v2861
          %v2878 = vpack.c.b16 %v2862, %v2862
          %v2879 = vpack.c.b16 %v2863, %v2863
          %v2880 = vpack.c.b16 %v2864, %v2864
          %v2881 = vpack.c.b16 %v2865, %v2865
          %v2882 = vpack.c.b16 %v2866, %v2866
          %2899 = vst [vmem:[#allocation2 + $0x180] sm:$0xf0] %v2867
          %2900 = vst [vmem:[#allocation2 + $0x188] sm:$0xf0] %v2868
          %2901 = vst [vmem:[#allocation2 + $0x190] sm:$0xf0] %v2869
          %2902 = vst [vmem:[#allocation2 + $0x198] sm:$0xf0] %v2870
          %2903 = vst [vmem:[#allocation2 + $0x1a0] sm:$0xf0] %v2871
          %2904 = vst [vmem:[#allocation2 + $0x1a8] sm:$0xf0] %v2872
          %2905 = vst [vmem:[#allocation2 + $0x1b0] sm:$0xf0] %v2873
          %2906 = vst [vmem:[#allocation2 + $0x1b8] sm:$0xf0] %v2874
          %2907 = vst [vmem:[#allocation2 + $0x1c0] sm:$0xf0] %v2875
          %2908 = vst [vmem:[#allocation2 + $0x1c8] sm:$0xf0] %v2876
          %2909 = vst [vmem:[#allocation2 + $0x1d0] sm:$0xf0] %v2877
          %2910 = vst [vmem:[#allocation2 + $0x1d8] sm:$0xf0] %v2878
          %2911 = vst [vmem:[#allocation2 + $0x1e0] sm:$0xf0] %v2879
          %2912 = vst [vmem:[#allocation2 + $0x1e8] sm:$0xf0] %v2880
          %2913 = vst [vmem:[#allocation2 + $0x1f0] sm:$0xf0] %v2881
          %2914 = vst [vmem:[#allocation2 + $0x1f8] sm:$0xf0] %v2882
          %v2915 = vld [vmem:[#allocation3] sm:$0x1]
          %v2917 = vlaneseq
          %v2918 = vshrl.u32 %v2917, 7
          %v2919 = vsub.s32 0, %v2918
          %v2920 = vrot.slane %v2915, %v2919
          %vm2922 = vcmask 7168
          %2923 = vst.msk [vmem:[%s412] sm:$0xff] %vm2922, %v2920
          %2924 = vst.msk [vmem:[%s412 + $0x8] sm:$0xff] %vm2922, %v2920
          %2925 = vst.msk [vmem:[%s412 + $0x10] sm:$0xff] %vm2922, %v2920
          %2926 = vst.msk [vmem:[%s412 + $0x18] sm:$0xff] %vm2922, %v2920
          %2927 = vst.msk [vmem:[%s412 + $0x20] sm:$0xff] %vm2922, %v2920
          %2928 = vst.msk [vmem:[%s412 + $0x28] sm:$0xff] %vm2922, %v2920
          %2929 = vst.msk [vmem:[%s412 + $0x30] sm:$0xff] %vm2922, %v2920
          %2930 = vst.msk [vmem:[%s412 + $0x38] sm:$0xff] %vm2922, %v2920
        $region68: #{tpu_custom_call.1} parent=43 // pred_fallthru
          _
        %v2931 = vld [vmem:[#allocation2] sm:$0xff]
        %v2932 = vld [vmem:[#allocation2 + $0x8] sm:$0xff]
        %v2933 = vld [vmem:[#allocation2 + $0x10] sm:$0xff]
        %v2934 = vld [vmem:[#allocation2 + $0x18] sm:$0xff]
        %v2935 = vld [vmem:[#allocation2 + $0x20] sm:$0xff]
        %v2936 = vld [vmem:[#allocation2 + $0x28] sm:$0xff]
        %v2937 = vld [vmem:[#allocation2 + $0x30] sm:$0xff]
        %v2938 = vld [vmem:[#allocation2 + $0x38] sm:$0xff]
        %v2939 = vld [vmem:[#allocation2 + $0x40] sm:$0xff]
        %v2940 = vld [vmem:[#allocation2 + $0x48] sm:$0xff]
        %v2941 = vld [vmem:[#allocation2 + $0x50] sm:$0xff]
        %v2942 = vld [vmem:[#allocation2 + $0x58] sm:$0xff]
        %v2943 = vld [vmem:[#allocation2 + $0x60] sm:$0xff]
        %v2944 = vld [vmem:[#allocation2 + $0x68] sm:$0xff]
        %v2945 = vld [vmem:[#allocation2 + $0x70] sm:$0xff]
        %v2946 = vld [vmem:[#allocation2 + $0x78] sm:$0xff]
        %v2947 = vld [vmem:[#allocation2 + $0x80] sm:$0xff]
        %v2948 = vld [vmem:[#allocation2 + $0x88] sm:$0xff]
        %v2949 = vld [vmem:[#allocation2 + $0x90] sm:$0xff]
        %v2950 = vld [vmem:[#allocation2 + $0x98] sm:$0xff]
        %v2951 = vld [vmem:[#allocation2 + $0xa0] sm:$0xff]
        %v2952 = vld [vmem:[#allocation2 + $0xa8] sm:$0xff]
        %v2953 = vld [vmem:[#allocation2 + $0xb0] sm:$0xff]
        %v2954 = vld [vmem:[#allocation2 + $0xb8] sm:$0xff]
        %v2955 = vld [vmem:[#allocation2 + $0xc0] sm:$0xff]
        %v2956 = vld [vmem:[#allocation2 + $0xc8] sm:$0xff]
        %v2957 = vld [vmem:[#allocation2 + $0xd0] sm:$0xff]
        %v2958 = vld [vmem:[#allocation2 + $0xd8] sm:$0xff]
        %v2959 = vld [vmem:[#allocation2 + $0xe0] sm:$0xff]
        %v2960 = vld [vmem:[#allocation2 + $0xe8] sm:$0xff]
        %v2961 = vld [vmem:[#allocation2 + $0xf0] sm:$0xff]
        %v2962 = vld [vmem:[#allocation2 + $0xf8] sm:$0xff]
        %v2963 = vld [vmem:[#allocation2 + $0x100] sm:$0xff]
        %v2964 = vld [vmem:[#allocation2 + $0x108] sm:$0xff]
        %v2965 = vld [vmem:[#allocation2 + $0x110] sm:$0xff]
        %v2966 = vld [vmem:[#allocation2 + $0x118] sm:$0xff]
        %v2967 = vld [vmem:[#allocation2 + $0x120] sm:$0xff]
        %v2968 = vld [vmem:[#allocation2 + $0x128] sm:$0xff]
        %v2969 = vld [vmem:[#allocation2 + $0x130] sm:$0xff]
        %v2970 = vld [vmem:[#allocation2 + $0x138] sm:$0xff]
        %v2971 = vld [vmem:[#allocation2 + $0x140] sm:$0xff]
        %v2972 = vld [vmem:[#allocation2 + $0x148] sm:$0xff]
        %v2973 = vld [vmem:[#allocation2 + $0x150] sm:$0xff]
        %v2974 = vld [vmem:[#allocation2 + $0x158] sm:$0xff]
        %v2975 = vld [vmem:[#allocation2 + $0x160] sm:$0xff]
        %v2976 = vld [vmem:[#allocation2 + $0x168] sm:$0xff]
        %v2977 = vld [vmem:[#allocation2 + $0x170] sm:$0xff]
        %v2978 = vld [vmem:[#allocation2 + $0x178] sm:$0xff]
        %v2979 = vld [vmem:[#allocation2 + $0x180] sm:$0xff]
        %v2980 = vld [vmem:[#allocation2 + $0x188] sm:$0xff]
        %v2981 = vld [vmem:[#allocation2 + $0x190] sm:$0xff]
        %v2982 = vld [vmem:[#allocation2 + $0x198] sm:$0xff]
        %v2983 = vld [vmem:[#allocation2 + $0x1a0] sm:$0xff]
        %v2984 = vld [vmem:[#allocation2 + $0x1a8] sm:$0xff]
        %v2985 = vld [vmem:[#allocation2 + $0x1b0] sm:$0xff]
        %v2986 = vld [vmem:[#allocation2 + $0x1b8] sm:$0xff]
        %v2987 = vld [vmem:[#allocation2 + $0x1c0] sm:$0xff]
        %v2988 = vld [vmem:[#allocation2 + $0x1c8] sm:$0xff]
        %v2989 = vld [vmem:[#allocation2 + $0x1d0] sm:$0xff]
        %v2990 = vld [vmem:[#allocation2 + $0x1d8] sm:$0xff]
        %v2991 = vld [vmem:[#allocation2 + $0x1e0] sm:$0xff]
        %v2992 = vld [vmem:[#allocation2 + $0x1e8] sm:$0xff]
        %v2993 = vld [vmem:[#allocation2 + $0x1f0] sm:$0xff]
        %v2994 = vld [vmem:[#allocation2 + $0x1f8] sm:$0xff]
        %v2995 = vld [vmem:[%s342] sm:$0xff]
        %v2996 = vld [vmem:[%s342 + $0x8] sm:$0xff]
        %v2997 = vld [vmem:[%s342 + $0x10] sm:$0xff]
        %v2998 = vld [vmem:[%s342 + $0x18] sm:$0xff]
        %v2999 = vld [vmem:[%s342 + $0x20] sm:$0xff]
        %v3000 = vld [vmem:[%s342 + $0x28] sm:$0xff]
        %v3001 = vld [vmem:[%s342 + $0x30] sm:$0xff]
        %v3002 = vld [vmem:[%s342 + $0x38] sm:$0xff]
        %v3003 = vld [vmem:[%s342 + $0x40] sm:$0xff]
        %v3004 = vld [vmem:[%s342 + $0x48] sm:$0xff]
        %v3005 = vld [vmem:[%s342 + $0x50] sm:$0xff]
        %v3006 = vld [vmem:[%s342 + $0x58] sm:$0xff]
        %v3007 = vld [vmem:[%s342 + $0x60] sm:$0xff]
        %v3008 = vld [vmem:[%s342 + $0x68] sm:$0xff]
        %v3009 = vld [vmem:[%s342 + $0x70] sm:$0xff]
        %v3010 = vld [vmem:[%s342 + $0x78] sm:$0xff]
        %v3011 = vld [vmem:[%s342 + $0x80] sm:$0xff]
        %v3012 = vld [vmem:[%s342 + $0x88] sm:$0xff]
        %v3013 = vld [vmem:[%s342 + $0x90] sm:$0xff]
        %v3014 = vld [vmem:[%s342 + $0x98] sm:$0xff]
        %v3015 = vld [vmem:[%s342 + $0xa0] sm:$0xff]
        %v3016 = vld [vmem:[%s342 + $0xa8] sm:$0xff]
        %v3017 = vld [vmem:[%s342 + $0xb0] sm:$0xff]
        %v3018 = vld [vmem:[%s342 + $0xb8] sm:$0xff]
        %v3019 = vld [vmem:[%s342 + $0xc0] sm:$0xff]
        %v3020 = vld [vmem:[%s342 + $0xc8] sm:$0xff]
        %v3021 = vld [vmem:[%s342 + $0xd0] sm:$0xff]
        %v3022 = vld [vmem:[%s342 + $0xd8] sm:$0xff]
        %v3023 = vld [vmem:[%s342 + $0xe0] sm:$0xff]
        %v3024 = vld [vmem:[%s342 + $0xe8] sm:$0xff]
        %v3025 = vld [vmem:[%s342 + $0xf0] sm:$0xff]
        %v3026 = vld [vmem:[%s342 + $0xf8] sm:$0xff]
        %v3027 = vld [vmem:[%s342 + $0x100] sm:$0xff]
        %v3028 = vld [vmem:[%s342 + $0x108] sm:$0xff]
        %v3029 = vld [vmem:[%s342 + $0x110] sm:$0xff]
        %v3030 = vld [vmem:[%s342 + $0x118] sm:$0xff]
        %v3031 = vld [vmem:[%s342 + $0x120] sm:$0xff]
        %v3032 = vld [vmem:[%s342 + $0x128] sm:$0xff]
        %v3033 = vld [vmem:[%s342 + $0x130] sm:$0xff]
        %v3034 = vld [vmem:[%s342 + $0x138] sm:$0xff]
        %v3035 = vld [vmem:[%s342 + $0x140] sm:$0xff]
        %v3036 = vld [vmem:[%s342 + $0x148] sm:$0xff]
        %v3037 = vld [vmem:[%s342 + $0x150] sm:$0xff]
        %v3038 = vld [vmem:[%s342 + $0x158] sm:$0xff]
        %v3039 = vld [vmem:[%s342 + $0x160] sm:$0xff]
        %v3040 = vld [vmem:[%s342 + $0x168] sm:$0xff]
        %v3041 = vld [vmem:[%s342 + $0x170] sm:$0xff]
        %v3042 = vld [vmem:[%s342 + $0x178] sm:$0xff]
        %v3043 = vld [vmem:[%s342 + $0x180] sm:$0xff]
        %v3044 = vld [vmem:[%s342 + $0x188] sm:$0xff]
        %v3045 = vld [vmem:[%s342 + $0x190] sm:$0xff]
        %v3046 = vld [vmem:[%s342 + $0x198] sm:$0xff]
        %v3047 = vld [vmem:[%s342 + $0x1a0] sm:$0xff]
        %v3048 = vld [vmem:[%s342 + $0x1a8] sm:$0xff]
        %v3049 = vld [vmem:[%s342 + $0x1b0] sm:$0xff]
        %v3050 = vld [vmem:[%s342 + $0x1b8] sm:$0xff]
        %v3051 = vld [vmem:[%s342 + $0x1c0] sm:$0xff]
        %v3052 = vld [vmem:[%s342 + $0x1c8] sm:$0xff]
        %v3053 = vld [vmem:[%s342 + $0x1d0] sm:$0xff]
        %v3054 = vld [vmem:[%s342 + $0x1d8] sm:$0xff]
        %v3055 = vld [vmem:[%s342 + $0x1e0] sm:$0xff]
        %v3056 = vld [vmem:[%s342 + $0x1e8] sm:$0xff]
        %v3057 = vld [vmem:[%s342 + $0x1f0] sm:$0xff]
        %v3058 = vld [vmem:[%s342 + $0x1f8] sm:$0xff]
        %v3059 = vld [vmem:[%s342 + $0x200] sm:$0xff]
        %v3060 = vld [vmem:[%s342 + $0x208] sm:$0xff]
        %v3061 = vld [vmem:[%s342 + $0x210] sm:$0xff]
        %v3062 = vld [vmem:[%s342 + $0x218] sm:$0xff]
        %v3063 = vld [vmem:[%s342 + $0x220] sm:$0xff]
        %v3064 = vld [vmem:[%s342 + $0x228] sm:$0xff]
        %v3065 = vld [vmem:[%s342 + $0x230] sm:$0xff]
        %v3066 = vld [vmem:[%s342 + $0x238] sm:$0xff]
        %v3067 = vld [vmem:[%s342 + $0x240] sm:$0xff]
        %v3068 = vld [vmem:[%s342 + $0x248] sm:$0xff]
        %v3069 = vld [vmem:[%s342 + $0x250] sm:$0xff]
        %v3070 = vld [vmem:[%s342 + $0x258] sm:$0xff]
        %v3071 = vld [vmem:[%s342 + $0x260] sm:$0xff]
        %v3072 = vld [vmem:[%s342 + $0x268] sm:$0xff]
        %v3073 = vld [vmem:[%s342 + $0x270] sm:$0xff]
        %v3074 = vld [vmem:[%s342 + $0x278] sm:$0xff]
        %v3075 = vld [vmem:[%s342 + $0x280] sm:$0xff]
        %v3076 = vld [vmem:[%s342 + $0x288] sm:$0xff]
        %v3077 = vld [vmem:[%s342 + $0x290] sm:$0xff]
        %v3078 = vld [vmem:[%s342 + $0x298] sm:$0xff]
        %v3079 = vld [vmem:[%s342 + $0x2a0] sm:$0xff]
        %v3080 = vld [vmem:[%s342 + $0x2a8] sm:$0xff]
        %v3081 = vld [vmem:[%s342 + $0x2b0] sm:$0xff]
        %v3082 = vld [vmem:[%s342 + $0x2b8] sm:$0xff]
        %v3083 = vld [vmem:[%s342 + $0x2c0] sm:$0xff]
        %v3084 = vld [vmem:[%s342 + $0x2c8] sm:$0xff]
        %v3085 = vld [vmem:[%s342 + $0x2d0] sm:$0xff]
        %v3086 = vld [vmem:[%s342 + $0x2d8] sm:$0xff]
        %v3087 = vld [vmem:[%s342 + $0x2e0] sm:$0xff]
        %v3088 = vld [vmem:[%s342 + $0x2e8] sm:$0xff]
        %v3089 = vld [vmem:[%s342 + $0x2f0] sm:$0xff]
        %v3090 = vld [vmem:[%s342 + $0x2f8] sm:$0xff]
        %v3091 = vld [vmem:[%s342 + $0x300] sm:$0xff]
        %v3092 = vld [vmem:[%s342 + $0x308] sm:$0xff]
        %v3093 = vld [vmem:[%s342 + $0x310] sm:$0xff]
        %v3094 = vld [vmem:[%s342 + $0x318] sm:$0xff]
        %v3095 = vld [vmem:[%s342 + $0x320] sm:$0xff]
        %v3096 = vld [vmem:[%s342 + $0x328] sm:$0xff]
        %v3097 = vld [vmem:[%s342 + $0x330] sm:$0xff]
        %v3098 = vld [vmem:[%s342 + $0x338] sm:$0xff]
        %v3099 = vld [vmem:[%s342 + $0x340] sm:$0xff]
        %v3100 = vld [vmem:[%s342 + $0x348] sm:$0xff]
        %v3101 = vld [vmem:[%s342 + $0x350] sm:$0xff]
        %v3102 = vld [vmem:[%s342 + $0x358] sm:$0xff]
        %v3103 = vld [vmem:[%s342 + $0x360] sm:$0xff]
        %v3104 = vld [vmem:[%s342 + $0x368] sm:$0xff]
        %v3105 = vld [vmem:[%s342 + $0x370] sm:$0xff]
        %v3106 = vld [vmem:[%s342 + $0x378] sm:$0xff]
        %v3107 = vld [vmem:[%s342 + $0x380] sm:$0xff]
        %v3108 = vld [vmem:[%s342 + $0x388] sm:$0xff]
        %v3109 = vld [vmem:[%s342 + $0x390] sm:$0xff]
        %v3110 = vld [vmem:[%s342 + $0x398] sm:$0xff]
        %v3111 = vld [vmem:[%s342 + $0x3a0] sm:$0xff]
        %v3112 = vld [vmem:[%s342 + $0x3a8] sm:$0xff]
        %v3113 = vld [vmem:[%s342 + $0x3b0] sm:$0xff]
        %v3114 = vld [vmem:[%s342 + $0x3b8] sm:$0xff]
        %v3115 = vld [vmem:[%s342 + $0x3c0] sm:$0xff]
        %v3116 = vld [vmem:[%s342 + $0x3c8] sm:$0xff]
        %v3117 = vld [vmem:[%s342 + $0x3d0] sm:$0xff]
        %v3118 = vld [vmem:[%s342 + $0x3d8] sm:$0xff]
        %v3119 = vld [vmem:[%s342 + $0x3e0] sm:$0xff]
        %v3120 = vld [vmem:[%s342 + $0x3e8] sm:$0xff]
        %v3121 = vld [vmem:[%s342 + $0x3f0] sm:$0xff]
        %v3122 = vld [vmem:[%s342 + $0x3f8] sm:$0xff]
        %v3123 = vld [vmem:[%s342 + $0x400] sm:$0xff]
        %v3124 = vld [vmem:[%s342 + $0x408] sm:$0xff]
        %v3125 = vld [vmem:[%s342 + $0x410] sm:$0xff]
        %v3126 = vld [vmem:[%s342 + $0x418] sm:$0xff]
        %v3127 = vld [vmem:[%s342 + $0x420] sm:$0xff]
        %v3128 = vld [vmem:[%s342 + $0x428] sm:$0xff]
        %v3129 = vld [vmem:[%s342 + $0x430] sm:$0xff]
        %v3130 = vld [vmem:[%s342 + $0x438] sm:$0xff]
        %v3131 = vld [vmem:[%s342 + $0x440] sm:$0xff]
        %v3132 = vld [vmem:[%s342 + $0x448] sm:$0xff]
        %v3133 = vld [vmem:[%s342 + $0x450] sm:$0xff]
        %v3134 = vld [vmem:[%s342 + $0x458] sm:$0xff]
        %v3135 = vld [vmem:[%s342 + $0x460] sm:$0xff]
        %v3136 = vld [vmem:[%s342 + $0x468] sm:$0xff]
        %v3137 = vld [vmem:[%s342 + $0x470] sm:$0xff]
        %v3138 = vld [vmem:[%s342 + $0x478] sm:$0xff]
        %v3139 = vld [vmem:[%s342 + $0x480] sm:$0xff]
        %v3140 = vld [vmem:[%s342 + $0x488] sm:$0xff]
        %v3141 = vld [vmem:[%s342 + $0x490] sm:$0xff]
        %v3142 = vld [vmem:[%s342 + $0x498] sm:$0xff]
        %v3143 = vld [vmem:[%s342 + $0x4a0] sm:$0xff]
        %v3144 = vld [vmem:[%s342 + $0x4a8] sm:$0xff]
        %v3145 = vld [vmem:[%s342 + $0x4b0] sm:$0xff]
        %v3146 = vld [vmem:[%s342 + $0x4b8] sm:$0xff]
        %v3147 = vld [vmem:[%s342 + $0x4c0] sm:$0xff]
        %v3148 = vld [vmem:[%s342 + $0x4c8] sm:$0xff]
        %v3149 = vld [vmem:[%s342 + $0x4d0] sm:$0xff]
        %v3150 = vld [vmem:[%s342 + $0x4d8] sm:$0xff]
        %v3151 = vld [vmem:[%s342 + $0x4e0] sm:$0xff]
        %v3152 = vld [vmem:[%s342 + $0x4e8] sm:$0xff]
        %v3153 = vld [vmem:[%s342 + $0x4f0] sm:$0xff]
        %v3154 = vld [vmem:[%s342 + $0x4f8] sm:$0xff]
        %v3155 = vld [vmem:[%s342 + $0x500] sm:$0xff]
        %v3156 = vld [vmem:[%s342 + $0x508] sm:$0xff]
        %v3157 = vld [vmem:[%s342 + $0x510] sm:$0xff]
        %v3158 = vld [vmem:[%s342 + $0x518] sm:$0xff]
        %v3159 = vld [vmem:[%s342 + $0x520] sm:$0xff]
        %v3160 = vld [vmem:[%s342 + $0x528] sm:$0xff]
        %v3161 = vld [vmem:[%s342 + $0x530] sm:$0xff]
        %v3162 = vld [vmem:[%s342 + $0x538] sm:$0xff]
        %v3163 = vld [vmem:[%s342 + $0x540] sm:$0xff]
        %v3164 = vld [vmem:[%s342 + $0x548] sm:$0xff]
        %v3165 = vld [vmem:[%s342 + $0x550] sm:$0xff]
        %v3166 = vld [vmem:[%s342 + $0x558] sm:$0xff]
        %v3167 = vld [vmem:[%s342 + $0x560] sm:$0xff]
        %v3168 = vld [vmem:[%s342 + $0x568] sm:$0xff]
        %v3169 = vld [vmem:[%s342 + $0x570] sm:$0xff]
        %v3170 = vld [vmem:[%s342 + $0x578] sm:$0xff]
        %v3171 = vld [vmem:[%s342 + $0x580] sm:$0xff]
        %v3172 = vld [vmem:[%s342 + $0x588] sm:$0xff]
        %v3173 = vld [vmem:[%s342 + $0x590] sm:$0xff]
        %v3174 = vld [vmem:[%s342 + $0x598] sm:$0xff]
        %v3175 = vld [vmem:[%s342 + $0x5a0] sm:$0xff]
        %v3176 = vld [vmem:[%s342 + $0x5a8] sm:$0xff]
        %v3177 = vld [vmem:[%s342 + $0x5b0] sm:$0xff]
        %v3178 = vld [vmem:[%s342 + $0x5b8] sm:$0xff]
        %v3179 = vld [vmem:[%s342 + $0x5c0] sm:$0xff]
        %v3180 = vld [vmem:[%s342 + $0x5c8] sm:$0xff]
        %v3181 = vld [vmem:[%s342 + $0x5d0] sm:$0xff]
        %v3182 = vld [vmem:[%s342 + $0x5d8] sm:$0xff]
        %v3183 = vld [vmem:[%s342 + $0x5e0] sm:$0xff]
        %v3184 = vld [vmem:[%s342 + $0x5e8] sm:$0xff]
        %v3185 = vld [vmem:[%s342 + $0x5f0] sm:$0xff]
        %v3186 = vld [vmem:[%s342 + $0x5f8] sm:$0xff]
        %v3187 = vld [vmem:[%s342 + $0x600] sm:$0xff]
        %v3188 = vld [vmem:[%s342 + $0x608] sm:$0xff]
        %v3189 = vld [vmem:[%s342 + $0x610] sm:$0xff]
        %v3190 = vld [vmem:[%s342 + $0x618] sm:$0xff]
        %v3191 = vld [vmem:[%s342 + $0x620] sm:$0xff]
        %v3192 = vld [vmem:[%s342 + $0x628] sm:$0xff]
        %v3193 = vld [vmem:[%s342 + $0x630] sm:$0xff]
        %v3194 = vld [vmem:[%s342 + $0x638] sm:$0xff]
        %v3195 = vld [vmem:[%s342 + $0x640] sm:$0xff]
        %v3196 = vld [vmem:[%s342 + $0x648] sm:$0xff]
        %v3197 = vld [vmem:[%s342 + $0x650] sm:$0xff]
        %v3198 = vld [vmem:[%s342 + $0x658] sm:$0xff]
        %v3199 = vld [vmem:[%s342 + $0x660] sm:$0xff]
        %v3200 = vld [vmem:[%s342 + $0x668] sm:$0xff]
        %v3201 = vld [vmem:[%s342 + $0x670] sm:$0xff]
        %v3202 = vld [vmem:[%s342 + $0x678] sm:$0xff]
        %v3203 = vld [vmem:[%s342 + $0x680] sm:$0xff]
        %v3204 = vld [vmem:[%s342 + $0x688] sm:$0xff]
        %v3205 = vld [vmem:[%s342 + $0x690] sm:$0xff]
        %v3206 = vld [vmem:[%s342 + $0x698] sm:$0xff]
        %v3207 = vld [vmem:[%s342 + $0x6a0] sm:$0xff]
        %v3208 = vld [vmem:[%s342 + $0x6a8] sm:$0xff]
        %v3209 = vld [vmem:[%s342 + $0x6b0] sm:$0xff]
        %v3210 = vld [vmem:[%s342 + $0x6b8] sm:$0xff]
        %v3211 = vld [vmem:[%s342 + $0x6c0] sm:$0xff]
        %v3212 = vld [vmem:[%s342 + $0x6c8] sm:$0xff]
        %v3213 = vld [vmem:[%s342 + $0x6d0] sm:$0xff]
        %v3214 = vld [vmem:[%s342 + $0x6d8] sm:$0xff]
        %v3215 = vld [vmem:[%s342 + $0x6e0] sm:$0xff]
        %v3216 = vld [vmem:[%s342 + $0x6e8] sm:$0xff]
        %v3217 = vld [vmem:[%s342 + $0x6f0] sm:$0xff]
        %v3218 = vld [vmem:[%s342 + $0x6f8] sm:$0xff]
        %v3219 = vld [vmem:[%s342 + $0x700] sm:$0xff]
        %v3220 = vld [vmem:[%s342 + $0x708] sm:$0xff]
        %v3221 = vld [vmem:[%s342 + $0x710] sm:$0xff]
        %v3222 = vld [vmem:[%s342 + $0x718] sm:$0xff]
        %v3223 = vld [vmem:[%s342 + $0x720] sm:$0xff]
        %v3224 = vld [vmem:[%s342 + $0x728] sm:$0xff]
        %v3225 = vld [vmem:[%s342 + $0x730] sm:$0xff]
        %v3226 = vld [vmem:[%s342 + $0x738] sm:$0xff]
        %v3227 = vld [vmem:[%s342 + $0x740] sm:$0xff]
        %v3228 = vld [vmem:[%s342 + $0x748] sm:$0xff]
        %v3229 = vld [vmem:[%s342 + $0x750] sm:$0xff]
        %v3230 = vld [vmem:[%s342 + $0x758] sm:$0xff]
        %v3231 = vld [vmem:[%s342 + $0x760] sm:$0xff]
        %v3232 = vld [vmem:[%s342 + $0x768] sm:$0xff]
        %v3233 = vld [vmem:[%s342 + $0x770] sm:$0xff]
        %v3234 = vld [vmem:[%s342 + $0x778] sm:$0xff]
        %v3235 = vld [vmem:[%s342 + $0x780] sm:$0xff]
        %v3236 = vld [vmem:[%s342 + $0x788] sm:$0xff]
        %v3237 = vld [vmem:[%s342 + $0x790] sm:$0xff]
        %v3238 = vld [vmem:[%s342 + $0x798] sm:$0xff]
        %v3239 = vld [vmem:[%s342 + $0x7a0] sm:$0xff]
        %v3240 = vld [vmem:[%s342 + $0x7a8] sm:$0xff]
        %v3241 = vld [vmem:[%s342 + $0x7b0] sm:$0xff]
        %v3242 = vld [vmem:[%s342 + $0x7b8] sm:$0xff]
        %v3243 = vld [vmem:[%s342 + $0x7c0] sm:$0xff]
        %v3244 = vld [vmem:[%s342 + $0x7c8] sm:$0xff]
        %v3245 = vld [vmem:[%s342 + $0x7d0] sm:$0xff]
        %v3246 = vld [vmem:[%s342 + $0x7d8] sm:$0xff]
        %v3247 = vld [vmem:[%s342 + $0x7e0] sm:$0xff]
        %v3248 = vld [vmem:[%s342 + $0x7e8] sm:$0xff]
        %v3249 = vld [vmem:[%s342 + $0x7f0] sm:$0xff]
        %v3250 = vld [vmem:[%s342 + $0x7f8] sm:$0xff]
        %v3251 = vld [vmem:[%s342 + $0x800] sm:$0xff]
        %v3252 = vld [vmem:[%s342 + $0x808] sm:$0xff]
        %v3253 = vld [vmem:[%s342 + $0x810] sm:$0xff]
        %v3254 = vld [vmem:[%s342 + $0x818] sm:$0xff]
        %v3255 = vld [vmem:[%s342 + $0x820] sm:$0xff]
        %v3256 = vld [vmem:[%s342 + $0x828] sm:$0xff]
        %v3257 = vld [vmem:[%s342 + $0x830] sm:$0xff]
        %v3258 = vld [vmem:[%s342 + $0x838] sm:$0xff]
        %v3259 = vld [vmem:[%s342 + $0x840] sm:$0xff]
        %v3260 = vld [vmem:[%s342 + $0x848] sm:$0xff]
        %v3261 = vld [vmem:[%s342 + $0x850] sm:$0xff]
        %v3262 = vld [vmem:[%s342 + $0x858] sm:$0xff]
        %v3263 = vld [vmem:[%s342 + $0x860] sm:$0xff]
        %v3264 = vld [vmem:[%s342 + $0x868] sm:$0xff]
        %v3265 = vld [vmem:[%s342 + $0x870] sm:$0xff]
        %v3266 = vld [vmem:[%s342 + $0x878] sm:$0xff]
        %v3267 = vld [vmem:[%s342 + $0x880] sm:$0xff]
        %v3268 = vld [vmem:[%s342 + $0x888] sm:$0xff]
        %v3269 = vld [vmem:[%s342 + $0x890] sm:$0xff]
        %v3270 = vld [vmem:[%s342 + $0x898] sm:$0xff]
        %v3271 = vld [vmem:[%s342 + $0x8a0] sm:$0xff]
        %v3272 = vld [vmem:[%s342 + $0x8a8] sm:$0xff]
        %v3273 = vld [vmem:[%s342 + $0x8b0] sm:$0xff]
        %v3274 = vld [vmem:[%s342 + $0x8b8] sm:$0xff]
        %v3275 = vld [vmem:[%s342 + $0x8c0] sm:$0xff]
        %v3276 = vld [vmem:[%s342 + $0x8c8] sm:$0xff]
        %v3277 = vld [vmem:[%s342 + $0x8d0] sm:$0xff]
        %v3278 = vld [vmem:[%s342 + $0x8d8] sm:$0xff]
        %v3279 = vld [vmem:[%s342 + $0x8e0] sm:$0xff]
        %v3280 = vld [vmem:[%s342 + $0x8e8] sm:$0xff]
        %v3281 = vld [vmem:[%s342 + $0x8f0] sm:$0xff]
        %v3282 = vld [vmem:[%s342 + $0x8f8] sm:$0xff]
        %v3283 = vld [vmem:[%s342 + $0x900] sm:$0xff]
        %v3284 = vld [vmem:[%s342 + $0x908] sm:$0xff]
        %v3285 = vld [vmem:[%s342 + $0x910] sm:$0xff]
        %v3286 = vld [vmem:[%s342 + $0x918] sm:$0xff]
        %v3287 = vld [vmem:[%s342 + $0x920] sm:$0xff]
        %v3288 = vld [vmem:[%s342 + $0x928] sm:$0xff]
        %v3289 = vld [vmem:[%s342 + $0x930] sm:$0xff]
        %v3290 = vld [vmem:[%s342 + $0x938] sm:$0xff]
        %v3291 = vld [vmem:[%s342 + $0x940] sm:$0xff]
        %v3292 = vld [vmem:[%s342 + $0x948] sm:$0xff]
        %v3293 = vld [vmem:[%s342 + $0x950] sm:$0xff]
        %v3294 = vld [vmem:[%s342 + $0x958] sm:$0xff]
        %v3295 = vld [vmem:[%s342 + $0x960] sm:$0xff]
        %v3296 = vld [vmem:[%s342 + $0x968] sm:$0xff]
        %v3297 = vld [vmem:[%s342 + $0x970] sm:$0xff]
        %v3298 = vld [vmem:[%s342 + $0x978] sm:$0xff]
        %v3299 = vld [vmem:[%s342 + $0x980] sm:$0xff]
        %v3300 = vld [vmem:[%s342 + $0x988] sm:$0xff]
        %v3301 = vld [vmem:[%s342 + $0x990] sm:$0xff]
        %v3302 = vld [vmem:[%s342 + $0x998] sm:$0xff]
        %v3303 = vld [vmem:[%s342 + $0x9a0] sm:$0xff]
        %v3304 = vld [vmem:[%s342 + $0x9a8] sm:$0xff]
        %v3305 = vld [vmem:[%s342 + $0x9b0] sm:$0xff]
        %v3306 = vld [vmem:[%s342 + $0x9b8] sm:$0xff]
        %v3307 = vld [vmem:[%s342 + $0x9c0] sm:$0xff]
        %v3308 = vld [vmem:[%s342 + $0x9c8] sm:$0xff]
        %v3309 = vld [vmem:[%s342 + $0x9d0] sm:$0xff]
        %v3310 = vld [vmem:[%s342 + $0x9d8] sm:$0xff]
        %v3311 = vld [vmem:[%s342 + $0x9e0] sm:$0xff]
        %v3312 = vld [vmem:[%s342 + $0x9e8] sm:$0xff]
        %v3313 = vld [vmem:[%s342 + $0x9f0] sm:$0xff]
        %v3314 = vld [vmem:[%s342 + $0x9f8] sm:$0xff]
        %v3315 = vld [vmem:[%s342 + $0xa00] sm:$0xff]
        %v3316 = vld [vmem:[%s342 + $0xa08] sm:$0xff]
        %v3317 = vld [vmem:[%s342 + $0xa10] sm:$0xff]
        %v3318 = vld [vmem:[%s342 + $0xa18] sm:$0xff]
        %v3319 = vld [vmem:[%s342 + $0xa20] sm:$0xff]
        %v3320 = vld [vmem:[%s342 + $0xa28] sm:$0xff]
        %v3321 = vld [vmem:[%s342 + $0xa30] sm:$0xff]
        %v3322 = vld [vmem:[%s342 + $0xa38] sm:$0xff]
        %v3323 = vld [vmem:[%s342 + $0xa40] sm:$0xff]
        %v3324 = vld [vmem:[%s342 + $0xa48] sm:$0xff]
        %v3325 = vld [vmem:[%s342 + $0xa50] sm:$0xff]
        %v3326 = vld [vmem:[%s342 + $0xa58] sm:$0xff]
        %v3327 = vld [vmem:[%s342 + $0xa60] sm:$0xff]
        %v3328 = vld [vmem:[%s342 + $0xa68] sm:$0xff]
        %v3329 = vld [vmem:[%s342 + $0xa70] sm:$0xff]
        %v3330 = vld [vmem:[%s342 + $0xa78] sm:$0xff]
        %v3331 = vld [vmem:[%s342 + $0xa80] sm:$0xff]
        %v3332 = vld [vmem:[%s342 + $0xa88] sm:$0xff]
        %v3333 = vld [vmem:[%s342 + $0xa90] sm:$0xff]
        %v3334 = vld [vmem:[%s342 + $0xa98] sm:$0xff]
        %v3335 = vld [vmem:[%s342 + $0xaa0] sm:$0xff]
        %v3336 = vld [vmem:[%s342 + $0xaa8] sm:$0xff]
        %v3337 = vld [vmem:[%s342 + $0xab0] sm:$0xff]
        %v3338 = vld [vmem:[%s342 + $0xab8] sm:$0xff]
        %v3339 = vld [vmem:[%s342 + $0xac0] sm:$0xff]
        %v3340 = vld [vmem:[%s342 + $0xac8] sm:$0xff]
        %v3341 = vld [vmem:[%s342 + $0xad0] sm:$0xff]
        %v3342 = vld [vmem:[%s342 + $0xad8] sm:$0xff]
        %v3343 = vld [vmem:[%s342 + $0xae0] sm:$0xff]
        %v3344 = vld [vmem:[%s342 + $0xae8] sm:$0xff]
        %v3345 = vld [vmem:[%s342 + $0xaf0] sm:$0xff]
        %v3346 = vld [vmem:[%s342 + $0xaf8] sm:$0xff]
        %v3347 = vld [vmem:[%s342 + $0xb00] sm:$0xff]
        %v3348 = vld [vmem:[%s342 + $0xb08] sm:$0xff]
        %v3349 = vld [vmem:[%s342 + $0xb10] sm:$0xff]
        %v3350 = vld [vmem:[%s342 + $0xb18] sm:$0xff]
        %v3351 = vld [vmem:[%s342 + $0xb20] sm:$0xff]
        %v3352 = vld [vmem:[%s342 + $0xb28] sm:$0xff]
        %v3353 = vld [vmem:[%s342 + $0xb30] sm:$0xff]
        %v3354 = vld [vmem:[%s342 + $0xb38] sm:$0xff]
        %v3355 = vld [vmem:[%s342 + $0xb40] sm:$0xff]
        %v3356 = vld [vmem:[%s342 + $0xb48] sm:$0xff]
        %v3357 = vld [vmem:[%s342 + $0xb50] sm:$0xff]
        %v3358 = vld [vmem:[%s342 + $0xb58] sm:$0xff]
        %v3359 = vld [vmem:[%s342 + $0xb60] sm:$0xff]
        %v3360 = vld [vmem:[%s342 + $0xb68] sm:$0xff]
        %v3361 = vld [vmem:[%s342 + $0xb70] sm:$0xff]
        %v3362 = vld [vmem:[%s342 + $0xb78] sm:$0xff]
        %v3363 = vld [vmem:[%s342 + $0xb80] sm:$0xff]
        %v3364 = vld [vmem:[%s342 + $0xb88] sm:$0xff]
        %v3365 = vld [vmem:[%s342 + $0xb90] sm:$0xff]
        %v3366 = vld [vmem:[%s342 + $0xb98] sm:$0xff]
        %v3367 = vld [vmem:[%s342 + $0xba0] sm:$0xff]
        %v3368 = vld [vmem:[%s342 + $0xba8] sm:$0xff]
        %v3369 = vld [vmem:[%s342 + $0xbb0] sm:$0xff]
        %v3370 = vld [vmem:[%s342 + $0xbb8] sm:$0xff]
        %v3371 = vld [vmem:[%s342 + $0xbc0] sm:$0xff]
        %v3372 = vld [vmem:[%s342 + $0xbc8] sm:$0xff]
        %v3373 = vld [vmem:[%s342 + $0xbd0] sm:$0xff]
        %v3374 = vld [vmem:[%s342 + $0xbd8] sm:$0xff]
        %v3375 = vld [vmem:[%s342 + $0xbe0] sm:$0xff]
        %v3376 = vld [vmem:[%s342 + $0xbe8] sm:$0xff]
        %v3377 = vld [vmem:[%s342 + $0xbf0] sm:$0xff]
        %v3378 = vld [vmem:[%s342 + $0xbf8] sm:$0xff]
        %v3379 = vld [vmem:[%s342 + $0xc00] sm:$0xff]
        %v3380 = vld [vmem:[%s342 + $0xc08] sm:$0xff]
        %v3381 = vld [vmem:[%s342 + $0xc10] sm:$0xff]
        %v3382 = vld [vmem:[%s342 + $0xc18] sm:$0xff]
        %v3383 = vld [vmem:[%s342 + $0xc20] sm:$0xff]
        %v3384 = vld [vmem:[%s342 + $0xc28] sm:$0xff]
        %v3385 = vld [vmem:[%s342 + $0xc30] sm:$0xff]
        %v3386 = vld [vmem:[%s342 + $0xc38] sm:$0xff]
        %v3387 = vld [vmem:[%s342 + $0xc40] sm:$0xff]
        %v3388 = vld [vmem:[%s342 + $0xc48] sm:$0xff]
        %v3389 = vld [vmem:[%s342 + $0xc50] sm:$0xff]
        %v3390 = vld [vmem:[%s342 + $0xc58] sm:$0xff]
        %v3391 = vld [vmem:[%s342 + $0xc60] sm:$0xff]
        %v3392 = vld [vmem:[%s342 + $0xc68] sm:$0xff]
        %v3393 = vld [vmem:[%s342 + $0xc70] sm:$0xff]
        %v3394 = vld [vmem:[%s342 + $0xc78] sm:$0xff]
        %v3395 = vld [vmem:[%s342 + $0xc80] sm:$0xff]
        %v3396 = vld [vmem:[%s342 + $0xc88] sm:$0xff]
        %v3397 = vld [vmem:[%s342 + $0xc90] sm:$0xff]
        %v3398 = vld [vmem:[%s342 + $0xc98] sm:$0xff]
        %v3399 = vld [vmem:[%s342 + $0xca0] sm:$0xff]
        %v3400 = vld [vmem:[%s342 + $0xca8] sm:$0xff]
        %v3401 = vld [vmem:[%s342 + $0xcb0] sm:$0xff]
        %v3402 = vld [vmem:[%s342 + $0xcb8] sm:$0xff]
        %v3403 = vld [vmem:[%s342 + $0xcc0] sm:$0xff]
        %v3404 = vld [vmem:[%s342 + $0xcc8] sm:$0xff]
        %v3405 = vld [vmem:[%s342 + $0xcd0] sm:$0xff]
        %v3406 = vld [vmem:[%s342 + $0xcd8] sm:$0xff]
        %v3407 = vld [vmem:[%s342 + $0xce0] sm:$0xff]
        %v3408 = vld [vmem:[%s342 + $0xce8] sm:$0xff]
        %v3409 = vld [vmem:[%s342 + $0xcf0] sm:$0xff]
        %v3410 = vld [vmem:[%s342 + $0xcf8] sm:$0xff]
        %v3411 = vld [vmem:[%s342 + $0xd00] sm:$0xff]
        %v3412 = vld [vmem:[%s342 + $0xd08] sm:$0xff]
        %v3413 = vld [vmem:[%s342 + $0xd10] sm:$0xff]
        %v3414 = vld [vmem:[%s342 + $0xd18] sm:$0xff]
        %v3415 = vld [vmem:[%s342 + $0xd20] sm:$0xff]
        %v3416 = vld [vmem:[%s342 + $0xd28] sm:$0xff]
        %v3417 = vld [vmem:[%s342 + $0xd30] sm:$0xff]
        %v3418 = vld [vmem:[%s342 + $0xd38] sm:$0xff]
        %v3419 = vld [vmem:[%s342 + $0xd40] sm:$0xff]
        %v3420 = vld [vmem:[%s342 + $0xd48] sm:$0xff]
        %v3421 = vld [vmem:[%s342 + $0xd50] sm:$0xff]
        %v3422 = vld [vmem:[%s342 + $0xd58] sm:$0xff]
        %v3423 = vld [vmem:[%s342 + $0xd60] sm:$0xff]
        %v3424 = vld [vmem:[%s342 + $0xd68] sm:$0xff]
        %v3425 = vld [vmem:[%s342 + $0xd70] sm:$0xff]
        %v3426 = vld [vmem:[%s342 + $0xd78] sm:$0xff]
        %v3427 = vld [vmem:[%s342 + $0xd80] sm:$0xff]
        %v3428 = vld [vmem:[%s342 + $0xd88] sm:$0xff]
        %v3429 = vld [vmem:[%s342 + $0xd90] sm:$0xff]
        %v3430 = vld [vmem:[%s342 + $0xd98] sm:$0xff]
        %v3431 = vld [vmem:[%s342 + $0xda0] sm:$0xff]
        %v3432 = vld [vmem:[%s342 + $0xda8] sm:$0xff]
        %v3433 = vld [vmem:[%s342 + $0xdb0] sm:$0xff]
        %v3434 = vld [vmem:[%s342 + $0xdb8] sm:$0xff]
        %v3435 = vld [vmem:[%s342 + $0xdc0] sm:$0xff]
        %v3436 = vld [vmem:[%s342 + $0xdc8] sm:$0xff]
        %v3437 = vld [vmem:[%s342 + $0xdd0] sm:$0xff]
        %v3438 = vld [vmem:[%s342 + $0xdd8] sm:$0xff]
        %v3439 = vld [vmem:[%s342 + $0xde0] sm:$0xff]
        %v3440 = vld [vmem:[%s342 + $0xde8] sm:$0xff]
        %v3441 = vld [vmem:[%s342 + $0xdf0] sm:$0xff]
        %v3442 = vld [vmem:[%s342 + $0xdf8] sm:$0xff]
        %v3443 = vld [vmem:[%s342 + $0xe00] sm:$0xff]
        %v3444 = vld [vmem:[%s342 + $0xe08] sm:$0xff]
        %v3445 = vld [vmem:[%s342 + $0xe10] sm:$0xff]
        %v3446 = vld [vmem:[%s342 + $0xe18] sm:$0xff]
        %v3447 = vld [vmem:[%s342 + $0xe20] sm:$0xff]
        %v3448 = vld [vmem:[%s342 + $0xe28] sm:$0xff]
        %v3449 = vld [vmem:[%s342 + $0xe30] sm:$0xff]
        %v3450 = vld [vmem:[%s342 + $0xe38] sm:$0xff]
        %v3451 = vld [vmem:[%s342 + $0xe40] sm:$0xff]
        %v3452 = vld [vmem:[%s342 + $0xe48] sm:$0xff]
        %v3453 = vld [vmem:[%s342 + $0xe50] sm:$0xff]
        %v3454 = vld [vmem:[%s342 + $0xe58] sm:$0xff]
        %v3455 = vld [vmem:[%s342 + $0xe60] sm:$0xff]
        %v3456 = vld [vmem:[%s342 + $0xe68] sm:$0xff]
        %v3457 = vld [vmem:[%s342 + $0xe70] sm:$0xff]
        %v3458 = vld [vmem:[%s342 + $0xe78] sm:$0xff]
        %v3459 = vld [vmem:[%s342 + $0xe80] sm:$0xff]
        %v3460 = vld [vmem:[%s342 + $0xe88] sm:$0xff]
        %v3461 = vld [vmem:[%s342 + $0xe90] sm:$0xff]
        %v3462 = vld [vmem:[%s342 + $0xe98] sm:$0xff]
        %v3463 = vld [vmem:[%s342 + $0xea0] sm:$0xff]
        %v3464 = vld [vmem:[%s342 + $0xea8] sm:$0xff]
        %v3465 = vld [vmem:[%s342 + $0xeb0] sm:$0xff]
        %v3466 = vld [vmem:[%s342 + $0xeb8] sm:$0xff]
        %v3467 = vld [vmem:[%s342 + $0xec0] sm:$0xff]
        %v3468 = vld [vmem:[%s342 + $0xec8] sm:$0xff]
        %v3469 = vld [vmem:[%s342 + $0xed0] sm:$0xff]
        %v3470 = vld [vmem:[%s342 + $0xed8] sm:$0xff]
        %v3471 = vld [vmem:[%s342 + $0xee0] sm:$0xff]
        %v3472 = vld [vmem:[%s342 + $0xee8] sm:$0xff]
        %v3473 = vld [vmem:[%s342 + $0xef0] sm:$0xff]
        %v3474 = vld [vmem:[%s342 + $0xef8] sm:$0xff]
        %v3475 = vld [vmem:[%s342 + $0xf00] sm:$0xff]
        %v3476 = vld [vmem:[%s342 + $0xf08] sm:$0xff]
        %v3477 = vld [vmem:[%s342 + $0xf10] sm:$0xff]
        %v3478 = vld [vmem:[%s342 + $0xf18] sm:$0xff]
        %v3479 = vld [vmem:[%s342 + $0xf20] sm:$0xff]
        %v3480 = vld [vmem:[%s342 + $0xf28] sm:$0xff]
        %v3481 = vld [vmem:[%s342 + $0xf30] sm:$0xff]
        %v3482 = vld [vmem:[%s342 + $0xf38] sm:$0xff]
        %v3483 = vld [vmem:[%s342 + $0xf40] sm:$0xff]
        %v3484 = vld [vmem:[%s342 + $0xf48] sm:$0xff]
        %v3485 = vld [vmem:[%s342 + $0xf50] sm:$0xff]
        %v3486 = vld [vmem:[%s342 + $0xf58] sm:$0xff]
        %v3487 = vld [vmem:[%s342 + $0xf60] sm:$0xff]
        %v3488 = vld [vmem:[%s342 + $0xf68] sm:$0xff]
        %v3489 = vld [vmem:[%s342 + $0xf70] sm:$0xff]
        %v3490 = vld [vmem:[%s342 + $0xf78] sm:$0xff]
        %v3491 = vld [vmem:[%s342 + $0xf80] sm:$0xff]
        %v3492 = vld [vmem:[%s342 + $0xf88] sm:$0xff]
        %v3493 = vld [vmem:[%s342 + $0xf90] sm:$0xff]
        %v3494 = vld [vmem:[%s342 + $0xf98] sm:$0xff]
        %v3495 = vld [vmem:[%s342 + $0xfa0] sm:$0xff]
        %v3496 = vld [vmem:[%s342 + $0xfa8] sm:$0xff]
        %v3497 = vld [vmem:[%s342 + $0xfb0] sm:$0xff]
        %v3498 = vld [vmem:[%s342 + $0xfb8] sm:$0xff]
        %v3499 = vld [vmem:[%s342 + $0xfc0] sm:$0xff]
        %v3500 = vld [vmem:[%s342 + $0xfc8] sm:$0xff]
        %v3501 = vld [vmem:[%s342 + $0xfd0] sm:$0xff]
        %v3502 = vld [vmem:[%s342 + $0xfd8] sm:$0xff]
        %v3503 = vld [vmem:[%s342 + $0xfe0] sm:$0xff]
        %v3504 = vld [vmem:[%s342 + $0xfe8] sm:$0xff]
        %v3505 = vld [vmem:[%s342 + $0xff0] sm:$0xff]
        %v3506 = vld [vmem:[%s342 + $0xff8] sm:$0xff]
        %v3507 = vld [vmem:[%s351] sm:$0xf]
        %v3509 = vlaneseq
        %v3510 = vshrl.u32 %v3509, 7
        %v3511 = vsub.s32 0, %v3510
        %v3512 = vrot.slane %v3507, %v3511
        %v3513 = vlaneseq
        %v3514 = vshrl.u32 %v3513, 7
        %v3515 = vsub.s32 1, %v3514
        %v3516 = vrot.slane %v3507, %v3515
        %v3517 = vlaneseq
        %v3518 = vshrl.u32 %v3517, 7
        %v3519 = vsub.s32 2, %v3518
        %v3520 = vrot.slane %v3507, %v3519
        %v3521 = vlaneseq
        %v3522 = vshrl.u32 %v3521, 7
        %v3523 = vsub.s32 3, %v3522
        %v3524 = vrot.slane %v3507, %v3523
        %v4041 = vunpack.c.l.b16 %v2995
        %v4042 = vunpack.c.h.b16 %v2995
        %v4043 = vunpack.c.l.b16 %v2996
        %v4044 = vunpack.c.h.b16 %v2996
        %v4045 = vunpack.c.l.b16 %v2997
        %v4046 = vunpack.c.h.b16 %v2997
        %v4047 = vunpack.c.l.b16 %v2998
        %v4048 = vunpack.c.h.b16 %v2998
        %v4049 = vunpack.c.l.b16 %v2999
        %v4050 = vunpack.c.h.b16 %v2999
        %v4051 = vunpack.c.l.b16 %v3000
        %v4052 = vunpack.c.h.b16 %v3000
        %v4053 = vunpack.c.l.b16 %v3001
        %v4054 = vunpack.c.h.b16 %v3001
        %v4055 = vunpack.c.l.b16 %v3002
        %v4056 = vunpack.c.h.b16 %v3002
        %v4057 = vunpack.c.l.b16 %v3003
        %v4058 = vunpack.c.h.b16 %v3003
        %v4059 = vunpack.c.l.b16 %v3004
        %v4060 = vunpack.c.h.b16 %v3004
        %v4061 = vunpack.c.l.b16 %v3005
        %v4062 = vunpack.c.h.b16 %v3005
        %v4063 = vunpack.c.l.b16 %v3006
        %v4064 = vunpack.c.h.b16 %v3006
        %v4065 = vunpack.c.l.b16 %v3007
        %v4066 = vunpack.c.h.b16 %v3007
        %v4067 = vunpack.c.l.b16 %v3008
        %v4068 = vunpack.c.h.b16 %v3008
        %v4069 = vunpack.c.l.b16 %v3009
        %v4070 = vunpack.c.h.b16 %v3009
        %v4071 = vunpack.c.l.b16 %v3010
        %v4072 = vunpack.c.h.b16 %v3010
        %v4073 = vunpack.c.l.b16 %v3011
        %v4074 = vunpack.c.h.b16 %v3011
        %v4075 = vunpack.c.l.b16 %v3012
        %v4076 = vunpack.c.h.b16 %v3012
        %v4077 = vunpack.c.l.b16 %v3013
        %v4078 = vunpack.c.h.b16 %v3013
        %v4079 = vunpack.c.l.b16 %v3014
        %v4080 = vunpack.c.h.b16 %v3014
        %v4081 = vunpack.c.l.b16 %v3015
        %v4082 = vunpack.c.h.b16 %v3015
        %v4083 = vunpack.c.l.b16 %v3016
        %v4084 = vunpack.c.h.b16 %v3016
        %v4085 = vunpack.c.l.b16 %v3017
        %v4086 = vunpack.c.h.b16 %v3017
        %v4087 = vunpack.c.l.b16 %v3018
        %v4088 = vunpack.c.h.b16 %v3018
        %v4089 = vunpack.c.l.b16 %v3019
        %v4090 = vunpack.c.h.b16 %v3019
        %v4091 = vunpack.c.l.b16 %v3020
        %v4092 = vunpack.c.h.b16 %v3020
        %v4093 = vunpack.c.l.b16 %v3021
        %v4094 = vunpack.c.h.b16 %v3021
        %v4095 = vunpack.c.l.b16 %v3022
        %v4096 = vunpack.c.h.b16 %v3022
        %v4097 = vunpack.c.l.b16 %v3023
        %v4098 = vunpack.c.h.b16 %v3023
        %v4099 = vunpack.c.l.b16 %v3024
        %v4100 = vunpack.c.h.b16 %v3024
        %v4101 = vunpack.c.l.b16 %v3025
        %v4102 = vunpack.c.h.b16 %v3025
        %v4103 = vunpack.c.l.b16 %v3026
        %v4104 = vunpack.c.h.b16 %v3026
        %v4105 = vunpack.c.l.b16 %v3027
        %v4106 = vunpack.c.h.b16 %v3027
        %v4107 = vunpack.c.l.b16 %v3028
        %v4108 = vunpack.c.h.b16 %v3028
        %v4109 = vunpack.c.l.b16 %v3029
        %v4110 = vunpack.c.h.b16 %v3029
        %v4111 = vunpack.c.l.b16 %v3030
        %v4112 = vunpack.c.h.b16 %v3030
        %v4113 = vunpack.c.l.b16 %v3031
        %v4114 = vunpack.c.h.b16 %v3031
        %v4115 = vunpack.c.l.b16 %v3032
        %v4116 = vunpack.c.h.b16 %v3032
        %v4117 = vunpack.c.l.b16 %v3033
        %v4118 = vunpack.c.h.b16 %v3033
        %v4119 = vunpack.c.l.b16 %v3034
        %v4120 = vunpack.c.h.b16 %v3034
        %v4121 = vunpack.c.l.b16 %v3035
        %v4122 = vunpack.c.h.b16 %v3035
        %v4123 = vunpack.c.l.b16 %v3036
        %v4124 = vunpack.c.h.b16 %v3036
        %v4125 = vunpack.c.l.b16 %v3037
        %v4126 = vunpack.c.h.b16 %v3037
        %v4127 = vunpack.c.l.b16 %v3038
        %v4128 = vunpack.c.h.b16 %v3038
        %v4129 = vunpack.c.l.b16 %v3039
        %v4130 = vunpack.c.h.b16 %v3039
        %v4131 = vunpack.c.l.b16 %v3040
        %v4132 = vunpack.c.h.b16 %v3040
        %v4133 = vunpack.c.l.b16 %v3041
        %v4134 = vunpack.c.h.b16 %v3041
        %v4135 = vunpack.c.l.b16 %v3042
        %v4136 = vunpack.c.h.b16 %v3042
        %v4137 = vunpack.c.l.b16 %v3043
        %v4138 = vunpack.c.h.b16 %v3043
        %v4139 = vunpack.c.l.b16 %v3044
        %v4140 = vunpack.c.h.b16 %v3044
        %v4141 = vunpack.c.l.b16 %v3045
        %v4142 = vunpack.c.h.b16 %v3045
        %v4143 = vunpack.c.l.b16 %v3046
        %v4144 = vunpack.c.h.b16 %v3046
        %v4145 = vunpack.c.l.b16 %v3047
        %v4146 = vunpack.c.h.b16 %v3047
        %v4147 = vunpack.c.l.b16 %v3048
        %v4148 = vunpack.c.h.b16 %v3048
        %v4149 = vunpack.c.l.b16 %v3049
        %v4150 = vunpack.c.h.b16 %v3049
        %v4151 = vunpack.c.l.b16 %v3050
        %v4152 = vunpack.c.h.b16 %v3050
        %v4153 = vunpack.c.l.b16 %v3051
        %v4154 = vunpack.c.h.b16 %v3051
        %v4155 = vunpack.c.l.b16 %v3052
        %v4156 = vunpack.c.h.b16 %v3052
        %v4157 = vunpack.c.l.b16 %v3053
        %v4158 = vunpack.c.h.b16 %v3053
        %v4159 = vunpack.c.l.b16 %v3054
        %v4160 = vunpack.c.h.b16 %v3054
        %v4161 = vunpack.c.l.b16 %v3055
        %v4162 = vunpack.c.h.b16 %v3055
        %v4163 = vunpack.c.l.b16 %v3056
        %v4164 = vunpack.c.h.b16 %v3056
        %v4165 = vunpack.c.l.b16 %v3057
        %v4166 = vunpack.c.h.b16 %v3057
        %v4167 = vunpack.c.l.b16 %v3058
        %v4168 = vunpack.c.h.b16 %v3058
        %v4169 = vunpack.c.l.b16 %v3059
        %v4170 = vunpack.c.h.b16 %v3059
        %v4171 = vunpack.c.l.b16 %v3060
        %v4172 = vunpack.c.h.b16 %v3060
        %v4173 = vunpack.c.l.b16 %v3061
        %v4174 = vunpack.c.h.b16 %v3061
        %v4175 = vunpack.c.l.b16 %v3062
        %v4176 = vunpack.c.h.b16 %v3062
        %v4177 = vunpack.c.l.b16 %v3063
        %v4178 = vunpack.c.h.b16 %v3063
        %v4179 = vunpack.c.l.b16 %v3064
        %v4180 = vunpack.c.h.b16 %v3064
        %v4181 = vunpack.c.l.b16 %v3065
        %v4182 = vunpack.c.h.b16 %v3065
        %v4183 = vunpack.c.l.b16 %v3066
        %v4184 = vunpack.c.h.b16 %v3066
        %v4185 = vunpack.c.l.b16 %v3067
        %v4186 = vunpack.c.h.b16 %v3067
        %v4187 = vunpack.c.l.b16 %v3068
        %v4188 = vunpack.c.h.b16 %v3068
        %v4189 = vunpack.c.l.b16 %v3069
        %v4190 = vunpack.c.h.b16 %v3069
        %v4191 = vunpack.c.l.b16 %v3070
        %v4192 = vunpack.c.h.b16 %v3070
        %v4193 = vunpack.c.l.b16 %v3071
        %v4194 = vunpack.c.h.b16 %v3071
        %v4195 = vunpack.c.l.b16 %v3072
        %v4196 = vunpack.c.h.b16 %v3072
        %v4197 = vunpack.c.l.b16 %v3073
        %v4198 = vunpack.c.h.b16 %v3073
        %v4199 = vunpack.c.l.b16 %v3074
        %v4200 = vunpack.c.h.b16 %v3074
        %v4201 = vunpack.c.l.b16 %v3075
        %v4202 = vunpack.c.h.b16 %v3075
        %v4203 = vunpack.c.l.b16 %v3076
        %v4204 = vunpack.c.h.b16 %v3076
        %v4205 = vunpack.c.l.b16 %v3077
        %v4206 = vunpack.c.h.b16 %v3077
        %v4207 = vunpack.c.l.b16 %v3078
        %v4208 = vunpack.c.h.b16 %v3078
        %v4209 = vunpack.c.l.b16 %v3079
        %v4210 = vunpack.c.h.b16 %v3079
        %v4211 = vunpack.c.l.b16 %v3080
        %v4212 = vunpack.c.h.b16 %v3080
        %v4213 = vunpack.c.l.b16 %v3081
        %v4214 = vunpack.c.h.b16 %v3081
        %v4215 = vunpack.c.l.b16 %v3082
        %v4216 = vunpack.c.h.b16 %v3082
        %v4217 = vunpack.c.l.b16 %v3083
        %v4218 = vunpack.c.h.b16 %v3083
        %v4219 = vunpack.c.l.b16 %v3084
        %v4220 = vunpack.c.h.b16 %v3084
        %v4221 = vunpack.c.l.b16 %v3085
        %v4222 = vunpack.c.h.b16 %v3085
        %v4223 = vunpack.c.l.b16 %v3086
        %v4224 = vunpack.c.h.b16 %v3086
        %v4225 = vunpack.c.l.b16 %v3087
        %v4226 = vunpack.c.h.b16 %v3087
        %v4227 = vunpack.c.l.b16 %v3088
        %v4228 = vunpack.c.h.b16 %v3088
        %v4229 = vunpack.c.l.b16 %v3089
        %v4230 = vunpack.c.h.b16 %v3089
        %v4231 = vunpack.c.l.b16 %v3090
        %v4232 = vunpack.c.h.b16 %v3090
        %v4233 = vunpack.c.l.b16 %v3091
        %v4234 = vunpack.c.h.b16 %v3091
        %v4235 = vunpack.c.l.b16 %v3092
        %v4236 = vunpack.c.h.b16 %v3092
        %v4237 = vunpack.c.l.b16 %v3093
        %v4238 = vunpack.c.h.b16 %v3093
        %v4239 = vunpack.c.l.b16 %v3094
        %v4240 = vunpack.c.h.b16 %v3094
        %v4241 = vunpack.c.l.b16 %v3095
        %v4242 = vunpack.c.h.b16 %v3095
        %v4243 = vunpack.c.l.b16 %v3096
        %v4244 = vunpack.c.h.b16 %v3096
        %v4245 = vunpack.c.l.b16 %v3097
        %v4246 = vunpack.c.h.b16 %v3097
        %v4247 = vunpack.c.l.b16 %v3098
        %v4248 = vunpack.c.h.b16 %v3098
        %v4249 = vunpack.c.l.b16 %v3099
        %v4250 = vunpack.c.h.b16 %v3099
        %v4251 = vunpack.c.l.b16 %v3100
        %v4252 = vunpack.c.h.b16 %v3100
        %v4253 = vunpack.c.l.b16 %v3101
        %v4254 = vunpack.c.h.b16 %v3101
        %v4255 = vunpack.c.l.b16 %v3102
        %v4256 = vunpack.c.h.b16 %v3102
        %v4257 = vunpack.c.l.b16 %v3103
        %v4258 = vunpack.c.h.b16 %v3103
        %v4259 = vunpack.c.l.b16 %v3104
        %v4260 = vunpack.c.h.b16 %v3104
        %v4261 = vunpack.c.l.b16 %v3105
        %v4262 = vunpack.c.h.b16 %v3105
        %v4263 = vunpack.c.l.b16 %v3106
        %v4264 = vunpack.c.h.b16 %v3106
        %v4265 = vunpack.c.l.b16 %v3107
        %v4266 = vunpack.c.h.b16 %v3107
        %v4267 = vunpack.c.l.b16 %v3108
        %v4268 = vunpack.c.h.b16 %v3108
        %v4269 = vunpack.c.l.b16 %v3109
        %v4270 = vunpack.c.h.b16 %v3109
        %v4271 = vunpack.c.l.b16 %v3110
        %v4272 = vunpack.c.h.b16 %v3110
        %v4273 = vunpack.c.l.b16 %v3111
        %v4274 = vunpack.c.h.b16 %v3111
        %v4275 = vunpack.c.l.b16 %v3112
        %v4276 = vunpack.c.h.b16 %v3112
        %v4277 = vunpack.c.l.b16 %v3113
        %v4278 = vunpack.c.h.b16 %v3113
        %v4279 = vunpack.c.l.b16 %v3114
        %v4280 = vunpack.c.h.b16 %v3114
        %v4281 = vunpack.c.l.b16 %v3115
        %v4282 = vunpack.c.h.b16 %v3115
        %v4283 = vunpack.c.l.b16 %v3116
        %v4284 = vunpack.c.h.b16 %v3116
        %v4285 = vunpack.c.l.b16 %v3117
        %v4286 = vunpack.c.h.b16 %v3117
        %v4287 = vunpack.c.l.b16 %v3118
        %v4288 = vunpack.c.h.b16 %v3118
        %v4289 = vunpack.c.l.b16 %v3119
        %v4290 = vunpack.c.h.b16 %v3119
        %v4291 = vunpack.c.l.b16 %v3120
        %v4292 = vunpack.c.h.b16 %v3120
        %v4293 = vunpack.c.l.b16 %v3121
        %v4294 = vunpack.c.h.b16 %v3121
        %v4295 = vunpack.c.l.b16 %v3122
        %v4296 = vunpack.c.h.b16 %v3122
        %v4297 = vunpack.c.l.b16 %v3123
        %v4298 = vunpack.c.h.b16 %v3123
        %v4299 = vunpack.c.l.b16 %v3124
        %v4300 = vunpack.c.h.b16 %v3124
        %v4301 = vunpack.c.l.b16 %v3125
        %v4302 = vunpack.c.h.b16 %v3125
        %v4303 = vunpack.c.l.b16 %v3126
        %v4304 = vunpack.c.h.b16 %v3126
        %v4305 = vunpack.c.l.b16 %v3127
        %v4306 = vunpack.c.h.b16 %v3127
        %v4307 = vunpack.c.l.b16 %v3128
        %v4308 = vunpack.c.h.b16 %v3128
        %v4309 = vunpack.c.l.b16 %v3129
        %v4310 = vunpack.c.h.b16 %v3129
        %v4311 = vunpack.c.l.b16 %v3130
        %v4312 = vunpack.c.h.b16 %v3130
        %v4313 = vunpack.c.l.b16 %v3131
        %v4314 = vunpack.c.h.b16 %v3131
        %v4315 = vunpack.c.l.b16 %v3132
        %v4316 = vunpack.c.h.b16 %v3132
        %v4317 = vunpack.c.l.b16 %v3133
        %v4318 = vunpack.c.h.b16 %v3133
        %v4319 = vunpack.c.l.b16 %v3134
        %v4320 = vunpack.c.h.b16 %v3134
        %v4321 = vunpack.c.l.b16 %v3135
        %v4322 = vunpack.c.h.b16 %v3135
        %v4323 = vunpack.c.l.b16 %v3136
        %v4324 = vunpack.c.h.b16 %v3136
        %v4325 = vunpack.c.l.b16 %v3137
        %v4326 = vunpack.c.h.b16 %v3137
        %v4327 = vunpack.c.l.b16 %v3138
        %v4328 = vunpack.c.h.b16 %v3138
        %v4329 = vunpack.c.l.b16 %v3139
        %v4330 = vunpack.c.h.b16 %v3139
        %v4331 = vunpack.c.l.b16 %v3140
        %v4332 = vunpack.c.h.b16 %v3140
        %v4333 = vunpack.c.l.b16 %v3141
        %v4334 = vunpack.c.h.b16 %v3141
        %v4335 = vunpack.c.l.b16 %v3142
        %v4336 = vunpack.c.h.b16 %v3142
        %v4337 = vunpack.c.l.b16 %v3143
        %v4338 = vunpack.c.h.b16 %v3143
        %v4339 = vunpack.c.l.b16 %v3144
        %v4340 = vunpack.c.h.b16 %v3144
        %v4341 = vunpack.c.l.b16 %v3145
        %v4342 = vunpack.c.h.b16 %v3145
        %v4343 = vunpack.c.l.b16 %v3146
        %v4344 = vunpack.c.h.b16 %v3146
        %v4345 = vunpack.c.l.b16 %v3147
        %v4346 = vunpack.c.h.b16 %v3147
        %v4347 = vunpack.c.l.b16 %v3148
        %v4348 = vunpack.c.h.b16 %v3148
        %v4349 = vunpack.c.l.b16 %v3149
        %v4350 = vunpack.c.h.b16 %v3149
        %v4351 = vunpack.c.l.b16 %v3150
        %v4352 = vunpack.c.h.b16 %v3150
        %v4353 = vunpack.c.l.b16 %v3151
        %v4354 = vunpack.c.h.b16 %v3151
        %v4355 = vunpack.c.l.b16 %v3152
        %v4356 = vunpack.c.h.b16 %v3152
        %v4357 = vunpack.c.l.b16 %v3153
        %v4358 = vunpack.c.h.b16 %v3153
        %v4359 = vunpack.c.l.b16 %v3154
        %v4360 = vunpack.c.h.b16 %v3154
        %v4361 = vunpack.c.l.b16 %v3155
        %v4362 = vunpack.c.h.b16 %v3155
        %v4363 = vunpack.c.l.b16 %v3156
        %v4364 = vunpack.c.h.b16 %v3156
        %v4365 = vunpack.c.l.b16 %v3157
        %v4366 = vunpack.c.h.b16 %v3157
        %v4367 = vunpack.c.l.b16 %v3158
        %v4368 = vunpack.c.h.b16 %v3158
        %v4369 = vunpack.c.l.b16 %v3159
        %v4370 = vunpack.c.h.b16 %v3159
        %v4371 = vunpack.c.l.b16 %v3160
        %v4372 = vunpack.c.h.b16 %v3160
        %v4373 = vunpack.c.l.b16 %v3161
        %v4374 = vunpack.c.h.b16 %v3161
        %v4375 = vunpack.c.l.b16 %v3162
        %v4376 = vunpack.c.h.b16 %v3162
        %v4377 = vunpack.c.l.b16 %v3163
        %v4378 = vunpack.c.h.b16 %v3163
        %v4379 = vunpack.c.l.b16 %v3164
        %v4380 = vunpack.c.h.b16 %v3164
        %v4381 = vunpack.c.l.b16 %v3165
        %v4382 = vunpack.c.h.b16 %v3165
        %v4383 = vunpack.c.l.b16 %v3166
        %v4384 = vunpack.c.h.b16 %v3166
        %v4385 = vunpack.c.l.b16 %v3167
        %v4386 = vunpack.c.h.b16 %v3167
        %v4387 = vunpack.c.l.b16 %v3168
        %v4388 = vunpack.c.h.b16 %v3168
        %v4389 = vunpack.c.l.b16 %v3169
        %v4390 = vunpack.c.h.b16 %v3169
        %v4391 = vunpack.c.l.b16 %v3170
        %v4392 = vunpack.c.h.b16 %v3170
        %v4393 = vunpack.c.l.b16 %v3171
        %v4394 = vunpack.c.h.b16 %v3171
        %v4395 = vunpack.c.l.b16 %v3172
        %v4396 = vunpack.c.h.b16 %v3172
        %v4397 = vunpack.c.l.b16 %v3173
        %v4398 = vunpack.c.h.b16 %v3173
        %v4399 = vunpack.c.l.b16 %v3174
        %v4400 = vunpack.c.h.b16 %v3174
        %v4401 = vunpack.c.l.b16 %v3175
        %v4402 = vunpack.c.h.b16 %v3175
        %v4403 = vunpack.c.l.b16 %v3176
        %v4404 = vunpack.c.h.b16 %v3176
        %v4405 = vunpack.c.l.b16 %v3177
        %v4406 = vunpack.c.h.b16 %v3177
        %v4407 = vunpack.c.l.b16 %v3178
        %v4408 = vunpack.c.h.b16 %v3178
        %v4409 = vunpack.c.l.b16 %v3179
        %v4410 = vunpack.c.h.b16 %v3179
        %v4411 = vunpack.c.l.b16 %v3180
        %v4412 = vunpack.c.h.b16 %v3180
        %v4413 = vunpack.c.l.b16 %v3181
        %v4414 = vunpack.c.h.b16 %v3181
        %v4415 = vunpack.c.l.b16 %v3182
        %v4416 = vunpack.c.h.b16 %v3182
        %v4417 = vunpack.c.l.b16 %v3183
        %v4418 = vunpack.c.h.b16 %v3183
        %v4419 = vunpack.c.l.b16 %v3184
        %v4420 = vunpack.c.h.b16 %v3184
        %v4421 = vunpack.c.l.b16 %v3185
        %v4422 = vunpack.c.h.b16 %v3185
        %v4423 = vunpack.c.l.b16 %v3186
        %v4424 = vunpack.c.h.b16 %v3186
        %v4425 = vunpack.c.l.b16 %v3187
        %v4426 = vunpack.c.h.b16 %v3187
        %v4427 = vunpack.c.l.b16 %v3188
        %v4428 = vunpack.c.h.b16 %v3188
        %v4429 = vunpack.c.l.b16 %v3189
        %v4430 = vunpack.c.h.b16 %v3189
        %v4431 = vunpack.c.l.b16 %v3190
        %v4432 = vunpack.c.h.b16 %v3190
        %v4433 = vunpack.c.l.b16 %v3191
        %v4434 = vunpack.c.h.b16 %v3191
        %v4435 = vunpack.c.l.b16 %v3192
        %v4436 = vunpack.c.h.b16 %v3192
        %v4437 = vunpack.c.l.b16 %v3193
        %v4438 = vunpack.c.h.b16 %v3193
        %v4439 = vunpack.c.l.b16 %v3194
        %v4440 = vunpack.c.h.b16 %v3194
        %v4441 = vunpack.c.l.b16 %v3195
        %v4442 = vunpack.c.h.b16 %v3195
        %v4443 = vunpack.c.l.b16 %v3196
        %v4444 = vunpack.c.h.b16 %v3196
        %v4445 = vunpack.c.l.b16 %v3197
        %v4446 = vunpack.c.h.b16 %v3197
        %v4447 = vunpack.c.l.b16 %v3198
        %v4448 = vunpack.c.h.b16 %v3198
        %v4449 = vunpack.c.l.b16 %v3199
        %v4450 = vunpack.c.h.b16 %v3199
        %v4451 = vunpack.c.l.b16 %v3200
        %v4452 = vunpack.c.h.b16 %v3200
        %v4453 = vunpack.c.l.b16 %v3201
        %v4454 = vunpack.c.h.b16 %v3201
        %v4455 = vunpack.c.l.b16 %v3202
        %v4456 = vunpack.c.h.b16 %v3202
        %v4457 = vunpack.c.l.b16 %v3203
        %v4458 = vunpack.c.h.b16 %v3203
        %v4459 = vunpack.c.l.b16 %v3204
        %v4460 = vunpack.c.h.b16 %v3204
        %v4461 = vunpack.c.l.b16 %v3205
        %v4462 = vunpack.c.h.b16 %v3205
        %v4463 = vunpack.c.l.b16 %v3206
        %v4464 = vunpack.c.h.b16 %v3206
        %v4465 = vunpack.c.l.b16 %v3207
        %v4466 = vunpack.c.h.b16 %v3207
        %v4467 = vunpack.c.l.b16 %v3208
        %v4468 = vunpack.c.h.b16 %v3208
        %v4469 = vunpack.c.l.b16 %v3209
        %v4470 = vunpack.c.h.b16 %v3209
        %v4471 = vunpack.c.l.b16 %v3210
        %v4472 = vunpack.c.h.b16 %v3210
        %v4473 = vunpack.c.l.b16 %v3211
        %v4474 = vunpack.c.h.b16 %v3211
        %v4475 = vunpack.c.l.b16 %v3212
        %v4476 = vunpack.c.h.b16 %v3212
        %v4477 = vunpack.c.l.b16 %v3213
        %v4478 = vunpack.c.h.b16 %v3213
        %v4479 = vunpack.c.l.b16 %v3214
        %v4480 = vunpack.c.h.b16 %v3214
        %v4481 = vunpack.c.l.b16 %v3215
        %v4482 = vunpack.c.h.b16 %v3215
        %v4483 = vunpack.c.l.b16 %v3216
        %v4484 = vunpack.c.h.b16 %v3216
        %v4485 = vunpack.c.l.b16 %v3217
        %v4486 = vunpack.c.h.b16 %v3217
        %v4487 = vunpack.c.l.b16 %v3218
        %v4488 = vunpack.c.h.b16 %v3218
        %v4489 = vunpack.c.l.b16 %v3219
        %v4490 = vunpack.c.h.b16 %v3219
        %v4491 = vunpack.c.l.b16 %v3220
        %v4492 = vunpack.c.h.b16 %v3220
        %v4493 = vunpack.c.l.b16 %v3221
        %v4494 = vunpack.c.h.b16 %v3221
        %v4495 = vunpack.c.l.b16 %v3222
        %v4496 = vunpack.c.h.b16 %v3222
        %v4497 = vunpack.c.l.b16 %v3223
        %v4498 = vunpack.c.h.b16 %v3223
        %v4499 = vunpack.c.l.b16 %v3224
        %v4500 = vunpack.c.h.b16 %v3224
        %v4501 = vunpack.c.l.b16 %v3225
        %v4502 = vunpack.c.h.b16 %v3225
        %v4503 = vunpack.c.l.b16 %v3226
        %v4504 = vunpack.c.h.b16 %v3226
        %v4505 = vunpack.c.l.b16 %v3227
        %v4506 = vunpack.c.h.b16 %v3227
        %v4507 = vunpack.c.l.b16 %v3228
        %v4508 = vunpack.c.h.b16 %v3228
        %v4509 = vunpack.c.l.b16 %v3229
        %v4510 = vunpack.c.h.b16 %v3229
        %v4511 = vunpack.c.l.b16 %v3230
        %v4512 = vunpack.c.h.b16 %v3230
        %v4513 = vunpack.c.l.b16 %v3231
        %v4514 = vunpack.c.h.b16 %v3231
        %v4515 = vunpack.c.l.b16 %v3232
        %v4516 = vunpack.c.h.b16 %v3232
        %v4517 = vunpack.c.l.b16 %v3233
        %v4518 = vunpack.c.h.b16 %v3233
        %v4519 = vunpack.c.l.b16 %v3234
        %v4520 = vunpack.c.h.b16 %v3234
        %v4521 = vunpack.c.l.b16 %v3235
        %v4522 = vunpack.c.h.b16 %v3235
        %v4523 = vunpack.c.l.b16 %v3236
        %v4524 = vunpack.c.h.b16 %v3236
        %v4525 = vunpack.c.l.b16 %v3237
        %v4526 = vunpack.c.h.b16 %v3237
        %v4527 = vunpack.c.l.b16 %v3238
        %v4528 = vunpack.c.h.b16 %v3238
        %v4529 = vunpack.c.l.b16 %v3239
        %v4530 = vunpack.c.h.b16 %v3239
        %v4531 = vunpack.c.l.b16 %v3240
        %v4532 = vunpack.c.h.b16 %v3240
        %v4533 = vunpack.c.l.b16 %v3241
        %v4534 = vunpack.c.h.b16 %v3241
        %v4535 = vunpack.c.l.b16 %v3242
        %v4536 = vunpack.c.h.b16 %v3242
        %v4537 = vunpack.c.l.b16 %v3243
        %v4538 = vunpack.c.h.b16 %v3243
        %v4539 = vunpack.c.l.b16 %v3244
        %v4540 = vunpack.c.h.b16 %v3244
        %v4541 = vunpack.c.l.b16 %v3245
        %v4542 = vunpack.c.h.b16 %v3245
        %v4543 = vunpack.c.l.b16 %v3246
        %v4544 = vunpack.c.h.b16 %v3246
        %v4545 = vunpack.c.l.b16 %v3247
        %v4546 = vunpack.c.h.b16 %v3247
        %v4547 = vunpack.c.l.b16 %v3248
        %v4548 = vunpack.c.h.b16 %v3248
        %v4549 = vunpack.c.l.b16 %v3249
        %v4550 = vunpack.c.h.b16 %v3249
        %v4551 = vunpack.c.l.b16 %v3250
        %v4552 = vunpack.c.h.b16 %v3250
        %v4553 = vunpack.c.l.b16 %v3251
        %v4554 = vunpack.c.h.b16 %v3251
        %v4555 = vunpack.c.l.b16 %v3252
        %v4556 = vunpack.c.h.b16 %v3252
        %v4557 = vunpack.c.l.b16 %v3253
        %v4558 = vunpack.c.h.b16 %v3253
        %v4559 = vunpack.c.l.b16 %v3254
        %v4560 = vunpack.c.h.b16 %v3254
        %v4561 = vunpack.c.l.b16 %v3255
        %v4562 = vunpack.c.h.b16 %v3255
        %v4563 = vunpack.c.l.b16 %v3256
        %v4564 = vunpack.c.h.b16 %v3256
        %v4565 = vunpack.c.l.b16 %v3257
        %v4566 = vunpack.c.h.b16 %v3257
        %v4567 = vunpack.c.l.b16 %v3258
        %v4568 = vunpack.c.h.b16 %v3258
        %v4569 = vunpack.c.l.b16 %v3259
        %v4570 = vunpack.c.h.b16 %v3259
        %v4571 = vunpack.c.l.b16 %v3260
        %v4572 = vunpack.c.h.b16 %v3260
        %v4573 = vunpack.c.l.b16 %v3261
        %v4574 = vunpack.c.h.b16 %v3261
        %v4575 = vunpack.c.l.b16 %v3262
        %v4576 = vunpack.c.h.b16 %v3262
        %v4577 = vunpack.c.l.b16 %v3263
        %v4578 = vunpack.c.h.b16 %v3263
        %v4579 = vunpack.c.l.b16 %v3264
        %v4580 = vunpack.c.h.b16 %v3264
        %v4581 = vunpack.c.l.b16 %v3265
        %v4582 = vunpack.c.h.b16 %v3265
        %v4583 = vunpack.c.l.b16 %v3266
        %v4584 = vunpack.c.h.b16 %v3266
        %v4585 = vunpack.c.l.b16 %v3267
        %v4586 = vunpack.c.h.b16 %v3267
        %v4587 = vunpack.c.l.b16 %v3268
        %v4588 = vunpack.c.h.b16 %v3268
        %v4589 = vunpack.c.l.b16 %v3269
        %v4590 = vunpack.c.h.b16 %v3269
        %v4591 = vunpack.c.l.b16 %v3270
        %v4592 = vunpack.c.h.b16 %v3270
        %v4593 = vunpack.c.l.b16 %v3271
        %v4594 = vunpack.c.h.b16 %v3271
        %v4595 = vunpack.c.l.b16 %v3272
        %v4596 = vunpack.c.h.b16 %v3272
        %v4597 = vunpack.c.l.b16 %v3273
        %v4598 = vunpack.c.h.b16 %v3273
        %v4599 = vunpack.c.l.b16 %v3274
        %v4600 = vunpack.c.h.b16 %v3274
        %v4601 = vunpack.c.l.b16 %v3275
        %v4602 = vunpack.c.h.b16 %v3275
        %v4603 = vunpack.c.l.b16 %v3276
        %v4604 = vunpack.c.h.b16 %v3276
        %v4605 = vunpack.c.l.b16 %v3277
        %v4606 = vunpack.c.h.b16 %v3277
        %v4607 = vunpack.c.l.b16 %v3278
        %v4608 = vunpack.c.h.b16 %v3278
        %v4609 = vunpack.c.l.b16 %v3279
        %v4610 = vunpack.c.h.b16 %v3279
        %v4611 = vunpack.c.l.b16 %v3280
        %v4612 = vunpack.c.h.b16 %v3280
        %v4613 = vunpack.c.l.b16 %v3281
        %v4614 = vunpack.c.h.b16 %v3281
        %v4615 = vunpack.c.l.b16 %v3282
        %v4616 = vunpack.c.h.b16 %v3282
        %v4617 = vunpack.c.l.b16 %v3283
        %v4618 = vunpack.c.h.b16 %v3283
        %v4619 = vunpack.c.l.b16 %v3284
        %v4620 = vunpack.c.h.b16 %v3284
        %v4621 = vunpack.c.l.b16 %v3285
        %v4622 = vunpack.c.h.b16 %v3285
        %v4623 = vunpack.c.l.b16 %v3286
        %v4624 = vunpack.c.h.b16 %v3286
        %v4625 = vunpack.c.l.b16 %v3287
        %v4626 = vunpack.c.h.b16 %v3287
        %v4627 = vunpack.c.l.b16 %v3288
        %v4628 = vunpack.c.h.b16 %v3288
        %v4629 = vunpack.c.l.b16 %v3289
        %v4630 = vunpack.c.h.b16 %v3289
        %v4631 = vunpack.c.l.b16 %v3290
        %v4632 = vunpack.c.h.b16 %v3290
        %v4633 = vunpack.c.l.b16 %v3291
        %v4634 = vunpack.c.h.b16 %v3291
        %v4635 = vunpack.c.l.b16 %v3292
        %v4636 = vunpack.c.h.b16 %v3292
        %v4637 = vunpack.c.l.b16 %v3293
        %v4638 = vunpack.c.h.b16 %v3293
        %v4639 = vunpack.c.l.b16 %v3294
        %v4640 = vunpack.c.h.b16 %v3294
        %v4641 = vunpack.c.l.b16 %v3295
        %v4642 = vunpack.c.h.b16 %v3295
        %v4643 = vunpack.c.l.b16 %v3296
        %v4644 = vunpack.c.h.b16 %v3296
        %v4645 = vunpack.c.l.b16 %v3297
        %v4646 = vunpack.c.h.b16 %v3297
        %v4647 = vunpack.c.l.b16 %v3298
        %v4648 = vunpack.c.h.b16 %v3298
        %v4649 = vunpack.c.l.b16 %v3299
        %v4650 = vunpack.c.h.b16 %v3299
        %v4651 = vunpack.c.l.b16 %v3300
        %v4652 = vunpack.c.h.b16 %v3300
        %v4653 = vunpack.c.l.b16 %v3301
        %v4654 = vunpack.c.h.b16 %v3301
        %v4655 = vunpack.c.l.b16 %v3302
        %v4656 = vunpack.c.h.b16 %v3302
        %v4657 = vunpack.c.l.b16 %v3303
        %v4658 = vunpack.c.h.b16 %v3303
        %v4659 = vunpack.c.l.b16 %v3304
        %v4660 = vunpack.c.h.b16 %v3304
        %v4661 = vunpack.c.l.b16 %v3305
        %v4662 = vunpack.c.h.b16 %v3305
        %v4663 = vunpack.c.l.b16 %v3306
        %v4664 = vunpack.c.h.b16 %v3306
        %v4665 = vunpack.c.l.b16 %v3307
        %v4666 = vunpack.c.h.b16 %v3307
        %v4667 = vunpack.c.l.b16 %v3308
        %v4668 = vunpack.c.h.b16 %v3308
        %v4669 = vunpack.c.l.b16 %v3309
        %v4670 = vunpack.c.h.b16 %v3309
        %v4671 = vunpack.c.l.b16 %v3310
        %v4672 = vunpack.c.h.b16 %v3310
        %v4673 = vunpack.c.l.b16 %v3311
        %v4674 = vunpack.c.h.b16 %v3311
        %v4675 = vunpack.c.l.b16 %v3312
        %v4676 = vunpack.c.h.b16 %v3312
        %v4677 = vunpack.c.l.b16 %v3313
        %v4678 = vunpack.c.h.b16 %v3313
        %v4679 = vunpack.c.l.b16 %v3314
        %v4680 = vunpack.c.h.b16 %v3314
        %v4681 = vunpack.c.l.b16 %v3315
        %v4682 = vunpack.c.h.b16 %v3315
        %v4683 = vunpack.c.l.b16 %v3316
        %v4684 = vunpack.c.h.b16 %v3316
        %v4685 = vunpack.c.l.b16 %v3317
        %v4686 = vunpack.c.h.b16 %v3317
        %v4687 = vunpack.c.l.b16 %v3318
        %v4688 = vunpack.c.h.b16 %v3318
        %v4689 = vunpack.c.l.b16 %v3319
        %v4690 = vunpack.c.h.b16 %v3319
        %v4691 = vunpack.c.l.b16 %v3320
        %v4692 = vunpack.c.h.b16 %v3320
        %v4693 = vunpack.c.l.b16 %v3321
        %v4694 = vunpack.c.h.b16 %v3321
        %v4695 = vunpack.c.l.b16 %v3322
        %v4696 = vunpack.c.h.b16 %v3322
        %v4697 = vunpack.c.l.b16 %v3323
        %v4698 = vunpack.c.h.b16 %v3323
        %v4699 = vunpack.c.l.b16 %v3324
        %v4700 = vunpack.c.h.b16 %v3324
        %v4701 = vunpack.c.l.b16 %v3325
        %v4702 = vunpack.c.h.b16 %v3325
        %v4703 = vunpack.c.l.b16 %v3326
        %v4704 = vunpack.c.h.b16 %v3326
        %v4705 = vunpack.c.l.b16 %v3327
        %v4706 = vunpack.c.h.b16 %v3327
        %v4707 = vunpack.c.l.b16 %v3328
        %v4708 = vunpack.c.h.b16 %v3328
        %v4709 = vunpack.c.l.b16 %v3329
        %v4710 = vunpack.c.h.b16 %v3329
        %v4711 = vunpack.c.l.b16 %v3330
        %v4712 = vunpack.c.h.b16 %v3330
        %v4713 = vunpack.c.l.b16 %v3331
        %v4714 = vunpack.c.h.b16 %v3331
        %v4715 = vunpack.c.l.b16 %v3332
        %v4716 = vunpack.c.h.b16 %v3332
        %v4717 = vunpack.c.l.b16 %v3333
        %v4718 = vunpack.c.h.b16 %v3333
        %v4719 = vunpack.c.l.b16 %v3334
        %v4720 = vunpack.c.h.b16 %v3334
        %v4721 = vunpack.c.l.b16 %v3335
        %v4722 = vunpack.c.h.b16 %v3335
        %v4723 = vunpack.c.l.b16 %v3336
        %v4724 = vunpack.c.h.b16 %v3336
        %v4725 = vunpack.c.l.b16 %v3337
        %v4726 = vunpack.c.h.b16 %v3337
        %v4727 = vunpack.c.l.b16 %v3338
        %v4728 = vunpack.c.h.b16 %v3338
        %v4729 = vunpack.c.l.b16 %v3339
        %v4730 = vunpack.c.h.b16 %v3339
        %v4731 = vunpack.c.l.b16 %v3340
        %v4732 = vunpack.c.h.b16 %v3340
        %v4733 = vunpack.c.l.b16 %v3341
        %v4734 = vunpack.c.h.b16 %v3341
        %v4735 = vunpack.c.l.b16 %v3342
        %v4736 = vunpack.c.h.b16 %v3342
        %v4737 = vunpack.c.l.b16 %v3343
        %v4738 = vunpack.c.h.b16 %v3343
        %v4739 = vunpack.c.l.b16 %v3344
        %v4740 = vunpack.c.h.b16 %v3344
        %v4741 = vunpack.c.l.b16 %v3345
        %v4742 = vunpack.c.h.b16 %v3345
        %v4743 = vunpack.c.l.b16 %v3346
        %v4744 = vunpack.c.h.b16 %v3346
        %v4745 = vunpack.c.l.b16 %v3347
        %v4746 = vunpack.c.h.b16 %v3347
        %v4747 = vunpack.c.l.b16 %v3348
        %v4748 = vunpack.c.h.b16 %v3348
        %v4749 = vunpack.c.l.b16 %v3349
        %v4750 = vunpack.c.h.b16 %v3349
        %v4751 = vunpack.c.l.b16 %v3350
        %v4752 = vunpack.c.h.b16 %v3350
        %v4753 = vunpack.c.l.b16 %v3351
        %v4754 = vunpack.c.h.b16 %v3351
        %v4755 = vunpack.c.l.b16 %v3352
        %v4756 = vunpack.c.h.b16 %v3352
        %v4757 = vunpack.c.l.b16 %v3353
        %v4758 = vunpack.c.h.b16 %v3353
        %v4759 = vunpack.c.l.b16 %v3354
        %v4760 = vunpack.c.h.b16 %v3354
        %v4761 = vunpack.c.l.b16 %v3355
        %v4762 = vunpack.c.h.b16 %v3355
        %v4763 = vunpack.c.l.b16 %v3356
        %v4764 = vunpack.c.h.b16 %v3356
        %v4765 = vunpack.c.l.b16 %v3357
        %v4766 = vunpack.c.h.b16 %v3357
        %v4767 = vunpack.c.l.b16 %v3358
        %v4768 = vunpack.c.h.b16 %v3358
        %v4769 = vunpack.c.l.b16 %v3359
        %v4770 = vunpack.c.h.b16 %v3359
        %v4771 = vunpack.c.l.b16 %v3360
        %v4772 = vunpack.c.h.b16 %v3360
        %v4773 = vunpack.c.l.b16 %v3361
        %v4774 = vunpack.c.h.b16 %v3361
        %v4775 = vunpack.c.l.b16 %v3362
        %v4776 = vunpack.c.h.b16 %v3362
        %v4777 = vunpack.c.l.b16 %v3363
        %v4778 = vunpack.c.h.b16 %v3363
        %v4779 = vunpack.c.l.b16 %v3364
        %v4780 = vunpack.c.h.b16 %v3364
        %v4781 = vunpack.c.l.b16 %v3365
        %v4782 = vunpack.c.h.b16 %v3365
        %v4783 = vunpack.c.l.b16 %v3366
        %v4784 = vunpack.c.h.b16 %v3366
        %v4785 = vunpack.c.l.b16 %v3367
        %v4786 = vunpack.c.h.b16 %v3367
        %v4787 = vunpack.c.l.b16 %v3368
        %v4788 = vunpack.c.h.b16 %v3368
        %v4789 = vunpack.c.l.b16 %v3369
        %v4790 = vunpack.c.h.b16 %v3369
        %v4791 = vunpack.c.l.b16 %v3370
        %v4792 = vunpack.c.h.b16 %v3370
        %v4793 = vunpack.c.l.b16 %v3371
        %v4794 = vunpack.c.h.b16 %v3371
        %v4795 = vunpack.c.l.b16 %v3372
        %v4796 = vunpack.c.h.b16 %v3372
        %v4797 = vunpack.c.l.b16 %v3373
        %v4798 = vunpack.c.h.b16 %v3373
        %v4799 = vunpack.c.l.b16 %v3374
        %v4800 = vunpack.c.h.b16 %v3374
        %v4801 = vunpack.c.l.b16 %v3375
        %v4802 = vunpack.c.h.b16 %v3375
        %v4803 = vunpack.c.l.b16 %v3376
        %v4804 = vunpack.c.h.b16 %v3376
        %v4805 = vunpack.c.l.b16 %v3377
        %v4806 = vunpack.c.h.b16 %v3377
        %v4807 = vunpack.c.l.b16 %v3378
        %v4808 = vunpack.c.h.b16 %v3378
        %v4809 = vunpack.c.l.b16 %v3379
        %v4810 = vunpack.c.h.b16 %v3379
        %v4811 = vunpack.c.l.b16 %v3380
        %v4812 = vunpack.c.h.b16 %v3380
        %v4813 = vunpack.c.l.b16 %v3381
        %v4814 = vunpack.c.h.b16 %v3381
        %v4815 = vunpack.c.l.b16 %v3382
        %v4816 = vunpack.c.h.b16 %v3382
        %v4817 = vunpack.c.l.b16 %v3383
        %v4818 = vunpack.c.h.b16 %v3383
        %v4819 = vunpack.c.l.b16 %v3384
        %v4820 = vunpack.c.h.b16 %v3384
        %v4821 = vunpack.c.l.b16 %v3385
        %v4822 = vunpack.c.h.b16 %v3385
        %v4823 = vunpack.c.l.b16 %v3386
        %v4824 = vunpack.c.h.b16 %v3386
        %v4825 = vunpack.c.l.b16 %v3387
        %v4826 = vunpack.c.h.b16 %v3387
        %v4827 = vunpack.c.l.b16 %v3388
        %v4828 = vunpack.c.h.b16 %v3388
        %v4829 = vunpack.c.l.b16 %v3389
        %v4830 = vunpack.c.h.b16 %v3389
        %v4831 = vunpack.c.l.b16 %v3390
        %v4832 = vunpack.c.h.b16 %v3390
        %v4833 = vunpack.c.l.b16 %v3391
        %v4834 = vunpack.c.h.b16 %v3391
        %v4835 = vunpack.c.l.b16 %v3392
        %v4836 = vunpack.c.h.b16 %v3392
        %v4837 = vunpack.c.l.b16 %v3393
        %v4838 = vunpack.c.h.b16 %v3393
        %v4839 = vunpack.c.l.b16 %v3394
        %v4840 = vunpack.c.h.b16 %v3394
        %v4841 = vunpack.c.l.b16 %v3395
        %v4842 = vunpack.c.h.b16 %v3395
        %v4843 = vunpack.c.l.b16 %v3396
        %v4844 = vunpack.c.h.b16 %v3396
        %v4845 = vunpack.c.l.b16 %v3397
        %v4846 = vunpack.c.h.b16 %v3397
        %v4847 = vunpack.c.l.b16 %v3398
        %v4848 = vunpack.c.h.b16 %v3398
        %v4849 = vunpack.c.l.b16 %v3399
        %v4850 = vunpack.c.h.b16 %v3399
        %v4851 = vunpack.c.l.b16 %v3400
        %v4852 = vunpack.c.h.b16 %v3400
        %v4853 = vunpack.c.l.b16 %v3401
        %v4854 = vunpack.c.h.b16 %v3401
        %v4855 = vunpack.c.l.b16 %v3402
        %v4856 = vunpack.c.h.b16 %v3402
        %v4857 = vunpack.c.l.b16 %v3403
        %v4858 = vunpack.c.h.b16 %v3403
        %v4859 = vunpack.c.l.b16 %v3404
        %v4860 = vunpack.c.h.b16 %v3404
        %v4861 = vunpack.c.l.b16 %v3405
        %v4862 = vunpack.c.h.b16 %v3405
        %v4863 = vunpack.c.l.b16 %v3406
        %v4864 = vunpack.c.h.b16 %v3406
        %v4865 = vunpack.c.l.b16 %v3407
        %v4866 = vunpack.c.h.b16 %v3407
        %v4867 = vunpack.c.l.b16 %v3408
        %v4868 = vunpack.c.h.b16 %v3408
        %v4869 = vunpack.c.l.b16 %v3409
        %v4870 = vunpack.c.h.b16 %v3409
        %v4871 = vunpack.c.l.b16 %v3410
        %v4872 = vunpack.c.h.b16 %v3410
        %v4873 = vunpack.c.l.b16 %v3411
        %v4874 = vunpack.c.h.b16 %v3411
        %v4875 = vunpack.c.l.b16 %v3412
        %v4876 = vunpack.c.h.b16 %v3412
        %v4877 = vunpack.c.l.b16 %v3413
        %v4878 = vunpack.c.h.b16 %v3413
        %v4879 = vunpack.c.l.b16 %v3414
        %v4880 = vunpack.c.h.b16 %v3414
        %v4881 = vunpack.c.l.b16 %v3415
        %v4882 = vunpack.c.h.b16 %v3415
        %v4883 = vunpack.c.l.b16 %v3416
        %v4884 = vunpack.c.h.b16 %v3416
        %v4885 = vunpack.c.l.b16 %v3417
        %v4886 = vunpack.c.h.b16 %v3417
        %v4887 = vunpack.c.l.b16 %v3418
        %v4888 = vunpack.c.h.b16 %v3418
        %v4889 = vunpack.c.l.b16 %v3419
        %v4890 = vunpack.c.h.b16 %v3419
        %v4891 = vunpack.c.l.b16 %v3420
        %v4892 = vunpack.c.h.b16 %v3420
        %v4893 = vunpack.c.l.b16 %v3421
        %v4894 = vunpack.c.h.b16 %v3421
        %v4895 = vunpack.c.l.b16 %v3422
        %v4896 = vunpack.c.h.b16 %v3422
        %v4897 = vunpack.c.l.b16 %v3423
        %v4898 = vunpack.c.h.b16 %v3423
        %v4899 = vunpack.c.l.b16 %v3424
        %v4900 = vunpack.c.h.b16 %v3424
        %v4901 = vunpack.c.l.b16 %v3425
        %v4902 = vunpack.c.h.b16 %v3425
        %v4903 = vunpack.c.l.b16 %v3426
        %v4904 = vunpack.c.h.b16 %v3426
        %v4905 = vunpack.c.l.b16 %v3427
        %v4906 = vunpack.c.h.b16 %v3427
        %v4907 = vunpack.c.l.b16 %v3428
        %v4908 = vunpack.c.h.b16 %v3428
        %v4909 = vunpack.c.l.b16 %v3429
        %v4910 = vunpack.c.h.b16 %v3429
        %v4911 = vunpack.c.l.b16 %v3430
        %v4912 = vunpack.c.h.b16 %v3430
        %v4913 = vunpack.c.l.b16 %v3431
        %v4914 = vunpack.c.h.b16 %v3431
        %v4915 = vunpack.c.l.b16 %v3432
        %v4916 = vunpack.c.h.b16 %v3432
        %v4917 = vunpack.c.l.b16 %v3433
        %v4918 = vunpack.c.h.b16 %v3433
        %v4919 = vunpack.c.l.b16 %v3434
        %v4920 = vunpack.c.h.b16 %v3434
        %v4921 = vunpack.c.l.b16 %v3435
        %v4922 = vunpack.c.h.b16 %v3435
        %v4923 = vunpack.c.l.b16 %v3436
        %v4924 = vunpack.c.h.b16 %v3436
        %v4925 = vunpack.c.l.b16 %v3437
        %v4926 = vunpack.c.h.b16 %v3437
        %v4927 = vunpack.c.l.b16 %v3438
        %v4928 = vunpack.c.h.b16 %v3438
        %v4929 = vunpack.c.l.b16 %v3439
        %v4930 = vunpack.c.h.b16 %v3439
        %v4931 = vunpack.c.l.b16 %v3440
        %v4932 = vunpack.c.h.b16 %v3440
        %v4933 = vunpack.c.l.b16 %v3441
        %v4934 = vunpack.c.h.b16 %v3441
        %v4935 = vunpack.c.l.b16 %v3442
        %v4936 = vunpack.c.h.b16 %v3442
        %v4937 = vunpack.c.l.b16 %v3443
        %v4938 = vunpack.c.h.b16 %v3443
        %v4939 = vunpack.c.l.b16 %v3444
        %v4940 = vunpack.c.h.b16 %v3444
        %v4941 = vunpack.c.l.b16 %v3445
        %v4942 = vunpack.c.h.b16 %v3445
        %v4943 = vunpack.c.l.b16 %v3446
        %v4944 = vunpack.c.h.b16 %v3446
        %v4945 = vunpack.c.l.b16 %v3447
        %v4946 = vunpack.c.h.b16 %v3447
        %v4947 = vunpack.c.l.b16 %v3448
        %v4948 = vunpack.c.h.b16 %v3448
        %v4949 = vunpack.c.l.b16 %v3449
        %v4950 = vunpack.c.h.b16 %v3449
        %v4951 = vunpack.c.l.b16 %v3450
        %v4952 = vunpack.c.h.b16 %v3450
        %v4953 = vunpack.c.l.b16 %v3451
        %v4954 = vunpack.c.h.b16 %v3451
        %v4955 = vunpack.c.l.b16 %v3452
        %v4956 = vunpack.c.h.b16 %v3452
        %v4957 = vunpack.c.l.b16 %v3453
        %v4958 = vunpack.c.h.b16 %v3453
        %v4959 = vunpack.c.l.b16 %v3454
        %v4960 = vunpack.c.h.b16 %v3454
        %v4961 = vunpack.c.l.b16 %v3455
        %v4962 = vunpack.c.h.b16 %v3455
        %v4963 = vunpack.c.l.b16 %v3456
        %v4964 = vunpack.c.h.b16 %v3456
        %v4965 = vunpack.c.l.b16 %v3457
        %v4966 = vunpack.c.h.b16 %v3457
        %v4967 = vunpack.c.l.b16 %v3458
        %v4968 = vunpack.c.h.b16 %v3458
        %v4969 = vunpack.c.l.b16 %v3459
        %v4970 = vunpack.c.h.b16 %v3459
        %v4971 = vunpack.c.l.b16 %v3460
        %v4972 = vunpack.c.h.b16 %v3460
        %v4973 = vunpack.c.l.b16 %v3461
        %v4974 = vunpack.c.h.b16 %v3461
        %v4975 = vunpack.c.l.b16 %v3462
        %v4976 = vunpack.c.h.b16 %v3462
        %v4977 = vunpack.c.l.b16 %v3463
        %v4978 = vunpack.c.h.b16 %v3463
        %v4979 = vunpack.c.l.b16 %v3464
        %v4980 = vunpack.c.h.b16 %v3464
        %v4981 = vunpack.c.l.b16 %v3465
        %v4982 = vunpack.c.h.b16 %v3465
        %v4983 = vunpack.c.l.b16 %v3466
        %v4984 = vunpack.c.h.b16 %v3466
        %v4985 = vunpack.c.l.b16 %v3467
        %v4986 = vunpack.c.h.b16 %v3467
        %v4987 = vunpack.c.l.b16 %v3468
        %v4988 = vunpack.c.h.b16 %v3468
        %v4989 = vunpack.c.l.b16 %v3469
        %v4990 = vunpack.c.h.b16 %v3469
        %v4991 = vunpack.c.l.b16 %v3470
        %v4992 = vunpack.c.h.b16 %v3470
        %v4993 = vunpack.c.l.b16 %v3471
        %v4994 = vunpack.c.h.b16 %v3471
        %v4995 = vunpack.c.l.b16 %v3472
        %v4996 = vunpack.c.h.b16 %v3472
        %v4997 = vunpack.c.l.b16 %v3473
        %v4998 = vunpack.c.h.b16 %v3473
        %v4999 = vunpack.c.l.b16 %v3474
        %v5000 = vunpack.c.h.b16 %v3474
        %v5001 = vunpack.c.l.b16 %v3475
        %v5002 = vunpack.c.h.b16 %v3475
        %v5003 = vunpack.c.l.b16 %v3476
        %v5004 = vunpack.c.h.b16 %v3476
        %v5005 = vunpack.c.l.b16 %v3477
        %v5006 = vunpack.c.h.b16 %v3477
        %v5007 = vunpack.c.l.b16 %v3478
        %v5008 = vunpack.c.h.b16 %v3478
        %v5009 = vunpack.c.l.b16 %v3479
        %v5010 = vunpack.c.h.b16 %v3479
        %v5011 = vunpack.c.l.b16 %v3480
        %v5012 = vunpack.c.h.b16 %v3480
        %v5013 = vunpack.c.l.b16 %v3481
        %v5014 = vunpack.c.h.b16 %v3481
        %v5015 = vunpack.c.l.b16 %v3482
        %v5016 = vunpack.c.h.b16 %v3482
        %v5017 = vunpack.c.l.b16 %v3483
        %v5018 = vunpack.c.h.b16 %v3483
        %v5019 = vunpack.c.l.b16 %v3484
        %v5020 = vunpack.c.h.b16 %v3484
        %v5021 = vunpack.c.l.b16 %v3485
        %v5022 = vunpack.c.h.b16 %v3485
        %v5023 = vunpack.c.l.b16 %v3486
        %v5024 = vunpack.c.h.b16 %v3486
        %v5025 = vunpack.c.l.b16 %v3487
        %v5026 = vunpack.c.h.b16 %v3487
        %v5027 = vunpack.c.l.b16 %v3488
        %v5028 = vunpack.c.h.b16 %v3488
        %v5029 = vunpack.c.l.b16 %v3489
        %v5030 = vunpack.c.h.b16 %v3489
        %v5031 = vunpack.c.l.b16 %v3490
        %v5032 = vunpack.c.h.b16 %v3490
        %v5033 = vunpack.c.l.b16 %v3491
        %v5034 = vunpack.c.h.b16 %v3491
        %v5035 = vunpack.c.l.b16 %v3492
        %v5036 = vunpack.c.h.b16 %v3492
        %v5037 = vunpack.c.l.b16 %v3493
        %v5038 = vunpack.c.h.b16 %v3493
        %v5039 = vunpack.c.l.b16 %v3494
        %v5040 = vunpack.c.h.b16 %v3494
        %v5041 = vunpack.c.l.b16 %v3495
        %v5042 = vunpack.c.h.b16 %v3495
        %v5043 = vunpack.c.l.b16 %v3496
        %v5044 = vunpack.c.h.b16 %v3496
        %v5045 = vunpack.c.l.b16 %v3497
        %v5046 = vunpack.c.h.b16 %v3497
        %v5047 = vunpack.c.l.b16 %v3498
        %v5048 = vunpack.c.h.b16 %v3498
        %v5049 = vunpack.c.l.b16 %v3499
        %v5050 = vunpack.c.h.b16 %v3499
        %v5051 = vunpack.c.l.b16 %v3500
        %v5052 = vunpack.c.h.b16 %v3500
        %v5053 = vunpack.c.l.b16 %v3501
        %v5054 = vunpack.c.h.b16 %v3501
        %v5055 = vunpack.c.l.b16 %v3502
        %v5056 = vunpack.c.h.b16 %v3502
        %v5057 = vunpack.c.l.b16 %v3503
        %v5058 = vunpack.c.h.b16 %v3503
        %v5059 = vunpack.c.l.b16 %v3504
        %v5060 = vunpack.c.h.b16 %v3504
        %v5061 = vunpack.c.l.b16 %v3505
        %v5062 = vunpack.c.h.b16 %v3505
        %v5063 = vunpack.c.l.b16 %v3506
        %v5064 = vunpack.c.h.b16 %v3506
        %v5065 = vpack.c.b16 %v4045, %v4041
        %v5066 = vpack.c.b16 %v4046, %v4042
        %v5067 = vpack.c.b16 %v4047, %v4043
        %v5068 = vpack.c.b16 %v4048, %v4044
        %v5069 = vpack.c.b16 %v4053, %v4049
        %v5070 = vpack.c.b16 %v4054, %v4050
        %v5071 = vpack.c.b16 %v4055, %v4051
        %v5072 = vpack.c.b16 %v4056, %v4052
        %v5073 = vpack.c.b16 %v4061, %v4057
        %v5074 = vpack.c.b16 %v4062, %v4058
        %v5075 = vpack.c.b16 %v4063, %v4059
        %v5076 = vpack.c.b16 %v4064, %v4060
        %v5077 = vpack.c.b16 %v4069, %v4065
        %v5078 = vpack.c.b16 %v4070, %v4066
        %v5079 = vpack.c.b16 %v4071, %v4067
        %v5080 = vpack.c.b16 %v4072, %v4068
        %v5081 = vpack.c.b16 %v4077, %v4073
        %v5082 = vpack.c.b16 %v4078, %v4074
        %v5083 = vpack.c.b16 %v4079, %v4075
        %v5084 = vpack.c.b16 %v4080, %v4076
        %v5085 = vpack.c.b16 %v4085, %v4081
        %v5086 = vpack.c.b16 %v4086, %v4082
        %v5087 = vpack.c.b16 %v4087, %v4083
        %v5088 = vpack.c.b16 %v4088, %v4084
        %v5089 = vpack.c.b16 %v4093, %v4089
        %v5090 = vpack.c.b16 %v4094, %v4090
        %v5091 = vpack.c.b16 %v4095, %v4091
        %v5092 = vpack.c.b16 %v4096, %v4092
        %v5093 = vpack.c.b16 %v4101, %v4097
        %v5094 = vpack.c.b16 %v4102, %v4098
        %v5095 = vpack.c.b16 %v4103, %v4099
        %v5096 = vpack.c.b16 %v4104, %v4100
        %v5097 = vpack.c.b16 %v4109, %v4105
        %v5098 = vpack.c.b16 %v4110, %v4106
        %v5099 = vpack.c.b16 %v4111, %v4107
        %v5100 = vpack.c.b16 %v4112, %v4108
        %v5101 = vpack.c.b16 %v4117, %v4113
        %v5102 = vpack.c.b16 %v4118, %v4114
        %v5103 = vpack.c.b16 %v4119, %v4115
        %v5104 = vpack.c.b16 %v4120, %v4116
        %v5105 = vpack.c.b16 %v4125, %v4121
        %v5106 = vpack.c.b16 %v4126, %v4122
        %v5107 = vpack.c.b16 %v4127, %v4123
        %v5108 = vpack.c.b16 %v4128, %v4124
        %v5109 = vpack.c.b16 %v4133, %v4129
        %v5110 = vpack.c.b16 %v4134, %v4130
        %v5111 = vpack.c.b16 %v4135, %v4131
        %v5112 = vpack.c.b16 %v4136, %v4132
        %v5113 = vpack.c.b16 %v4141, %v4137
        %v5114 = vpack.c.b16 %v4142, %v4138
        %v5115 = vpack.c.b16 %v4143, %v4139
        %v5116 = vpack.c.b16 %v4144, %v4140
        %v5117 = vpack.c.b16 %v4149, %v4145
        %v5118 = vpack.c.b16 %v4150, %v4146
        %v5119 = vpack.c.b16 %v4151, %v4147
        %v5120 = vpack.c.b16 %v4152, %v4148
        %v5121 = vpack.c.b16 %v4157, %v4153
        %v5122 = vpack.c.b16 %v4158, %v4154
        %v5123 = vpack.c.b16 %v4159, %v4155
        %v5124 = vpack.c.b16 %v4160, %v4156
        %v5125 = vpack.c.b16 %v4165, %v4161
        %v5126 = vpack.c.b16 %v4166, %v4162
        %v5127 = vpack.c.b16 %v4167, %v4163
        %v5128 = vpack.c.b16 %v4168, %v4164
        %v5129 = vpack.c.b16 %v4173, %v4169
        %v5130 = vpack.c.b16 %v4174, %v4170
        %v5131 = vpack.c.b16 %v4175, %v4171
        %v5132 = vpack.c.b16 %v4176, %v4172
        %v5133 = vpack.c.b16 %v4181, %v4177
        %v5134 = vpack.c.b16 %v4182, %v4178
        %v5135 = vpack.c.b16 %v4183, %v4179
        %v5136 = vpack.c.b16 %v4184, %v4180
        %v5137 = vpack.c.b16 %v4189, %v4185
        %v5138 = vpack.c.b16 %v4190, %v4186
        %v5139 = vpack.c.b16 %v4191, %v4187
        %v5140 = vpack.c.b16 %v4192, %v4188
        %v5141 = vpack.c.b16 %v4197, %v4193
        %v5142 = vpack.c.b16 %v4198, %v4194
        %v5143 = vpack.c.b16 %v4199, %v4195
        %v5144 = vpack.c.b16 %v4200, %v4196
        %v5145 = vpack.c.b16 %v4205, %v4201
        %v5146 = vpack.c.b16 %v4206, %v4202
        %v5147 = vpack.c.b16 %v4207, %v4203
        %v5148 = vpack.c.b16 %v4208, %v4204
        %v5149 = vpack.c.b16 %v4213, %v4209
        %v5150 = vpack.c.b16 %v4214, %v4210
        %v5151 = vpack.c.b16 %v4215, %v4211
        %v5152 = vpack.c.b16 %v4216, %v4212
        %v5153 = vpack.c.b16 %v4221, %v4217
        %v5154 = vpack.c.b16 %v4222, %v4218
        %v5155 = vpack.c.b16 %v4223, %v4219
        %v5156 = vpack.c.b16 %v4224, %v4220
        %v5157 = vpack.c.b16 %v4229, %v4225
        %v5158 = vpack.c.b16 %v4230, %v4226
        %v5159 = vpack.c.b16 %v4231, %v4227
        %v5160 = vpack.c.b16 %v4232, %v4228
        %v5161 = vpack.c.b16 %v4237, %v4233
        %v5162 = vpack.c.b16 %v4238, %v4234
        %v5163 = vpack.c.b16 %v4239, %v4235
        %v5164 = vpack.c.b16 %v4240, %v4236
        %v5165 = vpack.c.b16 %v4245, %v4241
        %v5166 = vpack.c.b16 %v4246, %v4242
        %v5167 = vpack.c.b16 %v4247, %v4243
        %v5168 = vpack.c.b16 %v4248, %v4244
        %v5169 = vpack.c.b16 %v4253, %v4249
        %v5170 = vpack.c.b16 %v4254, %v4250
        %v5171 = vpack.c.b16 %v4255, %v4251
        %v5172 = vpack.c.b16 %v4256, %v4252
        %v5173 = vpack.c.b16 %v4261, %v4257
        %v5174 = vpack.c.b16 %v4262, %v4258
        %v5175 = vpack.c.b16 %v4263, %v4259
        %v5176 = vpack.c.b16 %v4264, %v4260
        %v5177 = vpack.c.b16 %v4269, %v4265
        %v5178 = vpack.c.b16 %v4270, %v4266
        %v5179 = vpack.c.b16 %v4271, %v4267
        %v5180 = vpack.c.b16 %v4272, %v4268
        %v5181 = vpack.c.b16 %v4277, %v4273
        %v5182 = vpack.c.b16 %v4278, %v4274
        %v5183 = vpack.c.b16 %v4279, %v4275
        %v5184 = vpack.c.b16 %v4280, %v4276
        %v5185 = vpack.c.b16 %v4285, %v4281
        %v5186 = vpack.c.b16 %v4286, %v4282
        %v5187 = vpack.c.b16 %v4287, %v4283
        %v5188 = vpack.c.b16 %v4288, %v4284
        %v5189 = vpack.c.b16 %v4293, %v4289
        %v5190 = vpack.c.b16 %v4294, %v4290
        %v5191 = vpack.c.b16 %v4295, %v4291
        %v5192 = vpack.c.b16 %v4296, %v4292
        %v5193 = vpack.c.b16 %v4301, %v4297
        %v5194 = vpack.c.b16 %v4302, %v4298
        %v5195 = vpack.c.b16 %v4303, %v4299
        %v5196 = vpack.c.b16 %v4304, %v4300
        %v5197 = vpack.c.b16 %v4309, %v4305
        %v5198 = vpack.c.b16 %v4310, %v4306
        %v5199 = vpack.c.b16 %v4311, %v4307
        %v5200 = vpack.c.b16 %v4312, %v4308
        %v5201 = vpack.c.b16 %v4317, %v4313
        %v5202 = vpack.c.b16 %v4318, %v4314
        %v5203 = vpack.c.b16 %v4319, %v4315
        %v5204 = vpack.c.b16 %v4320, %v4316
        %v5205 = vpack.c.b16 %v4325, %v4321
        %v5206 = vpack.c.b16 %v4326, %v4322
        %v5207 = vpack.c.b16 %v4327, %v4323
        %v5208 = vpack.c.b16 %v4328, %v4324
        %v5209 = vpack.c.b16 %v4333, %v4329
        %v5210 = vpack.c.b16 %v4334, %v4330
        %v5211 = vpack.c.b16 %v4335, %v4331
        %v5212 = vpack.c.b16 %v4336, %v4332
        %v5213 = vpack.c.b16 %v4341, %v4337
        %v5214 = vpack.c.b16 %v4342, %v4338
        %v5215 = vpack.c.b16 %v4343, %v4339
        %v5216 = vpack.c.b16 %v4344, %v4340
        %v5217 = vpack.c.b16 %v4349, %v4345
        %v5218 = vpack.c.b16 %v4350, %v4346
        %v5219 = vpack.c.b16 %v4351, %v4347
        %v5220 = vpack.c.b16 %v4352, %v4348
        %v5221 = vpack.c.b16 %v4357, %v4353
        %v5222 = vpack.c.b16 %v4358, %v4354
        %v5223 = vpack.c.b16 %v4359, %v4355
        %v5224 = vpack.c.b16 %v4360, %v4356
        %v5225 = vpack.c.b16 %v4365, %v4361
        %v5226 = vpack.c.b16 %v4366, %v4362
        %v5227 = vpack.c.b16 %v4367, %v4363
        %v5228 = vpack.c.b16 %v4368, %v4364
        %v5229 = vpack.c.b16 %v4373, %v4369
        %v5230 = vpack.c.b16 %v4374, %v4370
        %v5231 = vpack.c.b16 %v4375, %v4371
        %v5232 = vpack.c.b16 %v4376, %v4372
        %v5233 = vpack.c.b16 %v4381, %v4377
        %v5234 = vpack.c.b16 %v4382, %v4378
        %v5235 = vpack.c.b16 %v4383, %v4379
        %v5236 = vpack.c.b16 %v4384, %v4380
        %v5237 = vpack.c.b16 %v4389, %v4385
        %v5238 = vpack.c.b16 %v4390, %v4386
        %v5239 = vpack.c.b16 %v4391, %v4387
        %v5240 = vpack.c.b16 %v4392, %v4388
        %v5241 = vpack.c.b16 %v4397, %v4393
        %v5242 = vpack.c.b16 %v4398, %v4394
        %v5243 = vpack.c.b16 %v4399, %v4395
        %v5244 = vpack.c.b16 %v4400, %v4396
        %v5245 = vpack.c.b16 %v4405, %v4401
        %v5246 = vpack.c.b16 %v4406, %v4402
        %v5247 = vpack.c.b16 %v4407, %v4403
        %v5248 = vpack.c.b16 %v4408, %v4404
        %v5249 = vpack.c.b16 %v4413, %v4409
        %v5250 = vpack.c.b16 %v4414, %v4410
        %v5251 = vpack.c.b16 %v4415, %v4411
        %v5252 = vpack.c.b16 %v4416, %v4412
        %v5253 = vpack.c.b16 %v4421, %v4417
        %v5254 = vpack.c.b16 %v4422, %v4418
        %v5255 = vpack.c.b16 %v4423, %v4419
        %v5256 = vpack.c.b16 %v4424, %v4420
        %v5257 = vpack.c.b16 %v4429, %v4425
        %v5258 = vpack.c.b16 %v4430, %v4426
        %v5259 = vpack.c.b16 %v4431, %v4427
        %v5260 = vpack.c.b16 %v4432, %v4428
        %v5261 = vpack.c.b16 %v4437, %v4433
        %v5262 = vpack.c.b16 %v4438, %v4434
        %v5263 = vpack.c.b16 %v4439, %v4435
        %v5264 = vpack.c.b16 %v4440, %v4436
        %v5265 = vpack.c.b16 %v4445, %v4441
        %v5266 = vpack.c.b16 %v4446, %v4442
        %v5267 = vpack.c.b16 %v4447, %v4443
        %v5268 = vpack.c.b16 %v4448, %v4444
        %v5269 = vpack.c.b16 %v4453, %v4449
        %v5270 = vpack.c.b16 %v4454, %v4450
        %v5271 = vpack.c.b16 %v4455, %v4451
        %v5272 = vpack.c.b16 %v4456, %v4452
        %v5273 = vpack.c.b16 %v4461, %v4457
        %v5274 = vpack.c.b16 %v4462, %v4458
        %v5275 = vpack.c.b16 %v4463, %v4459
        %v5276 = vpack.c.b16 %v4464, %v4460
        %v5277 = vpack.c.b16 %v4469, %v4465
        %v5278 = vpack.c.b16 %v4470, %v4466
        %v5279 = vpack.c.b16 %v4471, %v4467
        %v5280 = vpack.c.b16 %v4472, %v4468
        %v5281 = vpack.c.b16 %v4477, %v4473
        %v5282 = vpack.c.b16 %v4478, %v4474
        %v5283 = vpack.c.b16 %v4479, %v4475
        %v5284 = vpack.c.b16 %v4480, %v4476
        %v5285 = vpack.c.b16 %v4485, %v4481
        %v5286 = vpack.c.b16 %v4486, %v4482
        %v5287 = vpack.c.b16 %v4487, %v4483
        %v5288 = vpack.c.b16 %v4488, %v4484
        %v5289 = vpack.c.b16 %v4493, %v4489
        %v5290 = vpack.c.b16 %v4494, %v4490
        %v5291 = vpack.c.b16 %v4495, %v4491
        %v5292 = vpack.c.b16 %v4496, %v4492
        %v5293 = vpack.c.b16 %v4501, %v4497
        %v5294 = vpack.c.b16 %v4502, %v4498
        %v5295 = vpack.c.b16 %v4503, %v4499
        %v5296 = vpack.c.b16 %v4504, %v4500
        %v5297 = vpack.c.b16 %v4509, %v4505
        %v5298 = vpack.c.b16 %v4510, %v4506
        %v5299 = vpack.c.b16 %v4511, %v4507
        %v5300 = vpack.c.b16 %v4512, %v4508
        %v5301 = vpack.c.b16 %v4517, %v4513
        %v5302 = vpack.c.b16 %v4518, %v4514
        %v5303 = vpack.c.b16 %v4519, %v4515
        %v5304 = vpack.c.b16 %v4520, %v4516
        %v5305 = vpack.c.b16 %v4525, %v4521
        %v5306 = vpack.c.b16 %v4526, %v4522
        %v5307 = vpack.c.b16 %v4527, %v4523
        %v5308 = vpack.c.b16 %v4528, %v4524
        %v5309 = vpack.c.b16 %v4533, %v4529
        %v5310 = vpack.c.b16 %v4534, %v4530
        %v5311 = vpack.c.b16 %v4535, %v4531
        %v5312 = vpack.c.b16 %v4536, %v4532
        %v5313 = vpack.c.b16 %v4541, %v4537
        %v5314 = vpack.c.b16 %v4542, %v4538
        %v5315 = vpack.c.b16 %v4543, %v4539
        %v5316 = vpack.c.b16 %v4544, %v4540
        %v5317 = vpack.c.b16 %v4549, %v4545
        %v5318 = vpack.c.b16 %v4550, %v4546
        %v5319 = vpack.c.b16 %v4551, %v4547
        %v5320 = vpack.c.b16 %v4552, %v4548
        %v5321 = vpack.c.b16 %v4557, %v4553
        %v5322 = vpack.c.b16 %v4558, %v4554
        %v5323 = vpack.c.b16 %v4559, %v4555
        %v5324 = vpack.c.b16 %v4560, %v4556
        %v5325 = vpack.c.b16 %v4565, %v4561
        %v5326 = vpack.c.b16 %v4566, %v4562
        %v5327 = vpack.c.b16 %v4567, %v4563
        %v5328 = vpack.c.b16 %v4568, %v4564
        %v5329 = vpack.c.b16 %v4573, %v4569
        %v5330 = vpack.c.b16 %v4574, %v4570
        %v5331 = vpack.c.b16 %v4575, %v4571
        %v5332 = vpack.c.b16 %v4576, %v4572
        %v5333 = vpack.c.b16 %v4581, %v4577
        %v5334 = vpack.c.b16 %v4582, %v4578
        %v5335 = vpack.c.b16 %v4583, %v4579
        %v5336 = vpack.c.b16 %v4584, %v4580
        %v5337 = vpack.c.b16 %v4589, %v4585
        %v5338 = vpack.c.b16 %v4590, %v4586
        %v5339 = vpack.c.b16 %v4591, %v4587
        %v5340 = vpack.c.b16 %v4592, %v4588
        %v5341 = vpack.c.b16 %v4597, %v4593
        %v5342 = vpack.c.b16 %v4598, %v4594
        %v5343 = vpack.c.b16 %v4599, %v4595
        %v5344 = vpack.c.b16 %v4600, %v4596
        %v5345 = vpack.c.b16 %v4605, %v4601
        %v5346 = vpack.c.b16 %v4606, %v4602
        %v5347 = vpack.c.b16 %v4607, %v4603
        %v5348 = vpack.c.b16 %v4608, %v4604
        %v5349 = vpack.c.b16 %v4613, %v4609
        %v5350 = vpack.c.b16 %v4614, %v4610
        %v5351 = vpack.c.b16 %v4615, %v4611
        %v5352 = vpack.c.b16 %v4616, %v4612
        %v5353 = vpack.c.b16 %v4621, %v4617
        %v5354 = vpack.c.b16 %v4622, %v4618
        %v5355 = vpack.c.b16 %v4623, %v4619
        %v5356 = vpack.c.b16 %v4624, %v4620
        %v5357 = vpack.c.b16 %v4629, %v4625
        %v5358 = vpack.c.b16 %v4630, %v4626
        %v5359 = vpack.c.b16 %v4631, %v4627
        %v5360 = vpack.c.b16 %v4632, %v4628
        %v5361 = vpack.c.b16 %v4637, %v4633
        %v5362 = vpack.c.b16 %v4638, %v4634
        %v5363 = vpack.c.b16 %v4639, %v4635
        %v5364 = vpack.c.b16 %v4640, %v4636
        %v5365 = vpack.c.b16 %v4645, %v4641
        %v5366 = vpack.c.b16 %v4646, %v4642
        %v5367 = vpack.c.b16 %v4647, %v4643
        %v5368 = vpack.c.b16 %v4648, %v4644
        %v5369 = vpack.c.b16 %v4653, %v4649
        %v5370 = vpack.c.b16 %v4654, %v4650
        %v5371 = vpack.c.b16 %v4655, %v4651
        %v5372 = vpack.c.b16 %v4656, %v4652
        %v5373 = vpack.c.b16 %v4661, %v4657
        %v5374 = vpack.c.b16 %v4662, %v4658
        %v5375 = vpack.c.b16 %v4663, %v4659
        %v5376 = vpack.c.b16 %v4664, %v4660
        %v5377 = vpack.c.b16 %v4669, %v4665
        %v5378 = vpack.c.b16 %v4670, %v4666
        %v5379 = vpack.c.b16 %v4671, %v4667
        %v5380 = vpack.c.b16 %v4672, %v4668
        %v5381 = vpack.c.b16 %v4677, %v4673
        %v5382 = vpack.c.b16 %v4678, %v4674
        %v5383 = vpack.c.b16 %v4679, %v4675
        %v5384 = vpack.c.b16 %v4680, %v4676
        %v5385 = vpack.c.b16 %v4685, %v4681
        %v5386 = vpack.c.b16 %v4686, %v4682
        %v5387 = vpack.c.b16 %v4687, %v4683
        %v5388 = vpack.c.b16 %v4688, %v4684
        %v5389 = vpack.c.b16 %v4693, %v4689
        %v5390 = vpack.c.b16 %v4694, %v4690
        %v5391 = vpack.c.b16 %v4695, %v4691
        %v5392 = vpack.c.b16 %v4696, %v4692
        %v5393 = vpack.c.b16 %v4701, %v4697
        %v5394 = vpack.c.b16 %v4702, %v4698
        %v5395 = vpack.c.b16 %v4703, %v4699
        %v5396 = vpack.c.b16 %v4704, %v4700
        %v5397 = vpack.c.b16 %v4709, %v4705
        %v5398 = vpack.c.b16 %v4710, %v4706
        %v5399 = vpack.c.b16 %v4711, %v4707
        %v5400 = vpack.c.b16 %v4712, %v4708
        %v5401 = vpack.c.b16 %v4717, %v4713
        %v5402 = vpack.c.b16 %v4718, %v4714
        %v5403 = vpack.c.b16 %v4719, %v4715
        %v5404 = vpack.c.b16 %v4720, %v4716
        %v5405 = vpack.c.b16 %v4725, %v4721
        %v5406 = vpack.c.b16 %v4726, %v4722
        %v5407 = vpack.c.b16 %v4727, %v4723
        %v5408 = vpack.c.b16 %v4728, %v4724
        %v5409 = vpack.c.b16 %v4733, %v4729
        %v5410 = vpack.c.b16 %v4734, %v4730
        %v5411 = vpack.c.b16 %v4735, %v4731
        %v5412 = vpack.c.b16 %v4736, %v4732
        %v5413 = vpack.c.b16 %v4741, %v4737
        %v5414 = vpack.c.b16 %v4742, %v4738
        %v5415 = vpack.c.b16 %v4743, %v4739
        %v5416 = vpack.c.b16 %v4744, %v4740
        %v5417 = vpack.c.b16 %v4749, %v4745
        %v5418 = vpack.c.b16 %v4750, %v4746
        %v5419 = vpack.c.b16 %v4751, %v4747
        %v5420 = vpack.c.b16 %v4752, %v4748
        %v5421 = vpack.c.b16 %v4757, %v4753
        %v5422 = vpack.c.b16 %v4758, %v4754
        %v5423 = vpack.c.b16 %v4759, %v4755
        %v5424 = vpack.c.b16 %v4760, %v4756
        %v5425 = vpack.c.b16 %v4765, %v4761
        %v5426 = vpack.c.b16 %v4766, %v4762
        %v5427 = vpack.c.b16 %v4767, %v4763
        %v5428 = vpack.c.b16 %v4768, %v4764
        %v5429 = vpack.c.b16 %v4773, %v4769
        %v5430 = vpack.c.b16 %v4774, %v4770
        %v5431 = vpack.c.b16 %v4775, %v4771
        %v5432 = vpack.c.b16 %v4776, %v4772
        %v5433 = vpack.c.b16 %v4781, %v4777
        %v5434 = vpack.c.b16 %v4782, %v4778
        %v5435 = vpack.c.b16 %v4783, %v4779
        %v5436 = vpack.c.b16 %v4784, %v4780
        %v5437 = vpack.c.b16 %v4789, %v4785
        %v5438 = vpack.c.b16 %v4790, %v4786
        %v5439 = vpack.c.b16 %v4791, %v4787
        %v5440 = vpack.c.b16 %v4792, %v4788
        %v5441 = vpack.c.b16 %v4797, %v4793
        %v5442 = vpack.c.b16 %v4798, %v4794
        %v5443 = vpack.c.b16 %v4799, %v4795
        %v5444 = vpack.c.b16 %v4800, %v4796
        %v5445 = vpack.c.b16 %v4805, %v4801
        %v5446 = vpack.c.b16 %v4806, %v4802
        %v5447 = vpack.c.b16 %v4807, %v4803
        %v5448 = vpack.c.b16 %v4808, %v4804
        %v5449 = vpack.c.b16 %v4813, %v4809
        %v5450 = vpack.c.b16 %v4814, %v4810
        %v5451 = vpack.c.b16 %v4815, %v4811
        %v5452 = vpack.c.b16 %v4816, %v4812
        %v5453 = vpack.c.b16 %v4821, %v4817
        %v5454 = vpack.c.b16 %v4822, %v4818
        %v5455 = vpack.c.b16 %v4823, %v4819
        %v5456 = vpack.c.b16 %v4824, %v4820
        %v5457 = vpack.c.b16 %v4829, %v4825
        %v5458 = vpack.c.b16 %v4830, %v4826
        %v5459 = vpack.c.b16 %v4831, %v4827
        %v5460 = vpack.c.b16 %v4832, %v4828
        %v5461 = vpack.c.b16 %v4837, %v4833
        %v5462 = vpack.c.b16 %v4838, %v4834
        %v5463 = vpack.c.b16 %v4839, %v4835
        %v5464 = vpack.c.b16 %v4840, %v4836
        %v5465 = vpack.c.b16 %v4845, %v4841
        %v5466 = vpack.c.b16 %v4846, %v4842
        %v5467 = vpack.c.b16 %v4847, %v4843
        %v5468 = vpack.c.b16 %v4848, %v4844
        %v5469 = vpack.c.b16 %v4853, %v4849
        %v5470 = vpack.c.b16 %v4854, %v4850
        %v5471 = vpack.c.b16 %v4855, %v4851
        %v5472 = vpack.c.b16 %v4856, %v4852
        %v5473 = vpack.c.b16 %v4861, %v4857
        %v5474 = vpack.c.b16 %v4862, %v4858
        %v5475 = vpack.c.b16 %v4863, %v4859
        %v5476 = vpack.c.b16 %v4864, %v4860
        %v5477 = vpack.c.b16 %v4869, %v4865
        %v5478 = vpack.c.b16 %v4870, %v4866
        %v5479 = vpack.c.b16 %v4871, %v4867
        %v5480 = vpack.c.b16 %v4872, %v4868
        %v5481 = vpack.c.b16 %v4877, %v4873
        %v5482 = vpack.c.b16 %v4878, %v4874
        %v5483 = vpack.c.b16 %v4879, %v4875
        %v5484 = vpack.c.b16 %v4880, %v4876
        %v5485 = vpack.c.b16 %v4885, %v4881
        %v5486 = vpack.c.b16 %v4886, %v4882
        %v5487 = vpack.c.b16 %v4887, %v4883
        %v5488 = vpack.c.b16 %v4888, %v4884
        %v5489 = vpack.c.b16 %v4893, %v4889
        %v5490 = vpack.c.b16 %v4894, %v4890
        %v5491 = vpack.c.b16 %v4895, %v4891
        %v5492 = vpack.c.b16 %v4896, %v4892
        %v5493 = vpack.c.b16 %v4901, %v4897
        %v5494 = vpack.c.b16 %v4902, %v4898
        %v5495 = vpack.c.b16 %v4903, %v4899
        %v5496 = vpack.c.b16 %v4904, %v4900
        %v5497 = vpack.c.b16 %v4909, %v4905
        %v5498 = vpack.c.b16 %v4910, %v4906
        %v5499 = vpack.c.b16 %v4911, %v4907
        %v5500 = vpack.c.b16 %v4912, %v4908
        %v5501 = vpack.c.b16 %v4917, %v4913
        %v5502 = vpack.c.b16 %v4918, %v4914
        %v5503 = vpack.c.b16 %v4919, %v4915
        %v5504 = vpack.c.b16 %v4920, %v4916
        %v5505 = vpack.c.b16 %v4925, %v4921
        %v5506 = vpack.c.b16 %v4926, %v4922
        %v5507 = vpack.c.b16 %v4927, %v4923
        %v5508 = vpack.c.b16 %v4928, %v4924
        %v5509 = vpack.c.b16 %v4933, %v4929
        %v5510 = vpack.c.b16 %v4934, %v4930
        %v5511 = vpack.c.b16 %v4935, %v4931
        %v5512 = vpack.c.b16 %v4936, %v4932
        %v5513 = vpack.c.b16 %v4941, %v4937
        %v5514 = vpack.c.b16 %v4942, %v4938
        %v5515 = vpack.c.b16 %v4943, %v4939
        %v5516 = vpack.c.b16 %v4944, %v4940
        %v5517 = vpack.c.b16 %v4949, %v4945
        %v5518 = vpack.c.b16 %v4950, %v4946
        %v5519 = vpack.c.b16 %v4951, %v4947
        %v5520 = vpack.c.b16 %v4952, %v4948
        %v5521 = vpack.c.b16 %v4957, %v4953
        %v5522 = vpack.c.b16 %v4958, %v4954
        %v5523 = vpack.c.b16 %v4959, %v4955
        %v5524 = vpack.c.b16 %v4960, %v4956
        %v5525 = vpack.c.b16 %v4965, %v4961
        %v5526 = vpack.c.b16 %v4966, %v4962
        %v5527 = vpack.c.b16 %v4967, %v4963
        %v5528 = vpack.c.b16 %v4968, %v4964
        %v5529 = vpack.c.b16 %v4973, %v4969
        %v5530 = vpack.c.b16 %v4974, %v4970
        %v5531 = vpack.c.b16 %v4975, %v4971
        %v5532 = vpack.c.b16 %v4976, %v4972
        %v5533 = vpack.c.b16 %v4981, %v4977
        %v5534 = vpack.c.b16 %v4982, %v4978
        %v5535 = vpack.c.b16 %v4983, %v4979
        %v5536 = vpack.c.b16 %v4984, %v4980
        %v5537 = vpack.c.b16 %v4989, %v4985
        %v5538 = vpack.c.b16 %v4990, %v4986
        %v5539 = vpack.c.b16 %v4991, %v4987
        %v5540 = vpack.c.b16 %v4992, %v4988
        %v5541 = vpack.c.b16 %v4997, %v4993
        %v5542 = vpack.c.b16 %v4998, %v4994
        %v5543 = vpack.c.b16 %v4999, %v4995
        %v5544 = vpack.c.b16 %v5000, %v4996
        %v5545 = vpack.c.b16 %v5005, %v5001
        %v5546 = vpack.c.b16 %v5006, %v5002
        %v5547 = vpack.c.b16 %v5007, %v5003
        %v5548 = vpack.c.b16 %v5008, %v5004
        %v5549 = vpack.c.b16 %v5013, %v5009
        %v5550 = vpack.c.b16 %v5014, %v5010
        %v5551 = vpack.c.b16 %v5015, %v5011
        %v5552 = vpack.c.b16 %v5016, %v5012
        %v5553 = vpack.c.b16 %v5021, %v5017
        %v5554 = vpack.c.b16 %v5022, %v5018
        %v5555 = vpack.c.b16 %v5023, %v5019
        %v5556 = vpack.c.b16 %v5024, %v5020
        %v5557 = vpack.c.b16 %v5029, %v5025
        %v5558 = vpack.c.b16 %v5030, %v5026
        %v5559 = vpack.c.b16 %v5031, %v5027
        %v5560 = vpack.c.b16 %v5032, %v5028
        %v5561 = vpack.c.b16 %v5037, %v5033
        %v5562 = vpack.c.b16 %v5038, %v5034
        %v5563 = vpack.c.b16 %v5039, %v5035
        %v5564 = vpack.c.b16 %v5040, %v5036
        %v5565 = vpack.c.b16 %v5045, %v5041
        %v5566 = vpack.c.b16 %v5046, %v5042
        %v5567 = vpack.c.b16 %v5047, %v5043
        %v5568 = vpack.c.b16 %v5048, %v5044
        %v5569 = vpack.c.b16 %v5053, %v5049
        %v5570 = vpack.c.b16 %v5054, %v5050
        %v5571 = vpack.c.b16 %v5055, %v5051
        %v5572 = vpack.c.b16 %v5056, %v5052
        %v5573 = vpack.c.b16 %v5061, %v5057
        %v5574 = vpack.c.b16 %v5062, %v5058
        %v5575 = vpack.c.b16 %v5063, %v5059
        %v5576 = vpack.c.b16 %v5064, %v5060
        %6089 = vmatprep.subr.bf16.mxu0 %v5066
        %6090 = vmatpush1.bf16.msra.mxu0 %v5065
        %6091 = vmatprep.subr.bf16.mxu0 %v5070
        %6092 = vmatpush1.bf16.msra.mxu0 %v5069
        %6093 = vmatprep.subr.bf16.mxu0 %v5074
        %6094 = vmatpush1.bf16.msra.mxu0 %v5073
        %6095 = vmatprep.subr.bf16.mxu0 %v5078
        %6096 = vmatpush1.bf16.msra.mxu0 %v5077
        %6097 = vmatprep.subr.bf16.mxu0 %v5082
        %6098 = vmatpush1.bf16.msra.mxu0 %v5081
        %6099 = vmatprep.subr.bf16.mxu0 %v5086
        %6100 = vmatpush1.bf16.msra.mxu0 %v5085
        %6101 = vmatprep.subr.bf16.mxu0 %v5090
        %6102 = vmatpush1.bf16.msra.mxu0 %v5089
        %6103 = vmatprep.subr.bf16.mxu0 %v5094
        %6104 = vmatpush1.bf16.msra.mxu0 %v5093
        %6105 = vmatprep.subr.bf16.mxu0 %v5098
        %6106 = vmatpush1.bf16.msra.mxu0 %v5097
        %6107 = vmatprep.subr.bf16.mxu0 %v5102
        %6108 = vmatpush1.bf16.msra.mxu0 %v5101
        %6109 = vmatprep.subr.bf16.mxu0 %v5106
        %6110 = vmatpush1.bf16.msra.mxu0 %v5105
        %6111 = vmatprep.subr.bf16.mxu0 %v5110
        %6112 = vmatpush1.bf16.msra.mxu0 %v5109
        %6113 = vmatprep.subr.bf16.mxu0 %v5114
        %6114 = vmatpush1.bf16.msra.mxu0 %v5113
        %6115 = vmatprep.subr.bf16.mxu0 %v5118
        %6116 = vmatpush1.bf16.msra.mxu0 %v5117
        %6117 = vmatprep.subr.bf16.mxu0 %v5122
        %6118 = vmatpush1.bf16.msra.mxu0 %v5121
        %6119 = vmatprep.subr.bf16.mxu0 %v5126
        %6120 = vmatpush1.bf16.msra.mxu0 %v5125
        %6121 = vmatprep.mubr.bf16.mxu0 %v2932
        %6122 = vmatmul.mubr.bf16.gmra.mrb[0].mxu0 %v2931
        %v6123 = vpop.f32.mrb[0].mxu0
        %v6124 = vadd.f32 %v3512, %v6123
        %v6125 = vpop.f32.mrb[0].mxu0
        %v6126 = vadd.f32 %v3516, %v6125
        %v6127 = vpop.f32.mrb[0].mxu0
        %v6128 = vadd.f32 %v3512, %v6127
        %v6129 = vpop.f32.mrb[0].mxu0
        %v6130 = vadd.f32 %v3516, %v6129
        %6131 = vmatprep.mubr.bf16.mxu0 %v2948
        %6132 = vmatmul.mubr.bf16.gmra.mrb[0].mxu0 %v2947
        %v6133 = vpop.f32.mrb[0].mxu0
        %v6134 = vadd.f32 %v3512, %v6133
        %v6135 = vpop.f32.mrb[0].mxu0
        %v6136 = vadd.f32 %v3516, %v6135
        %v6137 = vpop.f32.mrb[0].mxu0
        %v6138 = vadd.f32 %v3512, %v6137
        %v6139 = vpop.f32.mrb[0].mxu0
        %v6140 = vadd.f32 %v3516, %v6139
        %6141 = vmatprep.mubr.bf16.mxu0 %v2964
        %6142 = vmatmul.mubr.bf16.gmra.mrb[0].mxu0 %v2963
        %v6143 = vpop.f32.mrb[0].mxu0
        %v6144 = vadd.f32 %v3512, %v6143
        %v6145 = vpop.f32.mrb[0].mxu0
        %v6146 = vadd.f32 %v3516, %v6145
        %v6147 = vpop.f32.mrb[0].mxu0
        %v6148 = vadd.f32 %v3512, %v6147
        %v6149 = vpop.f32.mrb[0].mxu0
        %v6150 = vadd.f32 %v3516, %v6149
        %6151 = vmatprep.mubr.bf16.mxu0 %v2980
        %6152 = vmatmul.mubr.bf16.gmra.mrb[0].mxu0 %v2979
        %v6153 = vpop.f32.mrb[0].mxu0
        %v6154 = vadd.f32 %v3512, %v6153
        %v6155 = vpop.f32.mrb[0].mxu0
        %v6156 = vadd.f32 %v3516, %v6155
        %v6157 = vpop.f32.mrb[0].mxu0
        %v6158 = vadd.f32 %v3512, %v6157
        %v6159 = vpop.f32.mrb[0].mxu0
        %v6160 = vadd.f32 %v3516, %v6159
        %6161 = vdwg.mxu0
        %6162 = vmatprep.subr.bf16.mxu0 %v5130
        %6163 = vmatpush1.bf16.msra.mxu0 %v5129
        %6164 = vmatprep.subr.bf16.mxu0 %v5134
        %6165 = vmatpush1.bf16.msra.mxu0 %v5133
        %6166 = vmatprep.subr.bf16.mxu0 %v5138
        %6167 = vmatpush1.bf16.msra.mxu0 %v5137
        %6168 = vmatprep.subr.bf16.mxu0 %v5142
        %6169 = vmatpush1.bf16.msra.mxu0 %v5141
        %6170 = vmatprep.subr.bf16.mxu0 %v5146
        %6171 = vmatpush1.bf16.msra.mxu0 %v5145
        %6172 = vmatprep.subr.bf16.mxu0 %v5150
        %6173 = vmatpush1.bf16.msra.mxu0 %v5149
        %6174 = vmatprep.subr.bf16.mxu0 %v5154
        %6175 = vmatpush1.bf16.msra.mxu0 %v5153
        %6176 = vmatprep.subr.bf16.mxu0 %v5158
        %6177 = vmatpush1.bf16.msra.mxu0 %v5157
        %6178 = vmatprep.subr.bf16.mxu0 %v5162
        %6179 = vmatpush1.bf16.msra.mxu0 %v5161
        %6180 = vmatprep.subr.bf16.mxu0 %v5166
        %6181 = vmatpush1.bf16.msra.mxu0 %v5165
        %6182 = vmatprep.subr.bf16.mxu0 %v5170
        %6183 = vmatpush1.bf16.msra.mxu0 %v5169
        %6184 = vmatprep.subr.bf16.mxu0 %v5174
        %6185 = vmatpush1.bf16.msra.mxu0 %v5173
        %6186 = vmatprep.subr.bf16.mxu0 %v5178
        %6187 = vmatpush1.bf16.msra.mxu0 %v5177
        %6188 = vmatprep.subr.bf16.mxu0 %v5182
        %6189 = vmatpush1.bf16.msra.mxu0 %v5181
        %6190 = vmatprep.subr.bf16.mxu0 %v5186
        %6191 = vmatpush1.bf16.msra.mxu0 %v5185
        %6192 = vmatprep.subr.bf16.mxu0 %v5190
        %6193 = vmatpush1.bf16.msra.mxu0 %v5189
        %6194 = vmatprep.mubr.bf16.mxu0 %v2934
        %6195 = vmatmul.mubr.bf16.gmra.mrb[0].mxu0 %v2933
        %v6196 = vpop.f32.mrb[0].mxu0
        %v6197 = vadd.f32 %v6124, %v6196
        %v6198 = vpop.f32.mrb[0].mxu0
        %v6199 = vadd.f32 %v6126, %v6198
        %v6200 = vpop.f32.mrb[0].mxu0
        %v6201 = vadd.f32 %v6128, %v6200
        %v6202 = vpop.f32.mrb[0].mxu0
        %v6203 = vadd.f32 %v6130, %v6202
        %6204 = vmatprep.mubr.bf16.mxu0 %v2950
        %6205 = vmatmul.mubr.bf16.gmra.mrb[0].mxu0 %v2949
        %v6206 = vpop.f32.mrb[0].mxu0
        %v6207 = vadd.f32 %v6134, %v6206
        %v6208 = vpop.f32.mrb[0].mxu0
        %v6209 = vadd.f32 %v6136, %v6208
        %v6210 = vpop.f32.mrb[0].mxu0
        %v6211 = vadd.f32 %v6138, %v6210
        %v6212 = vpop.f32.mrb[0].mxu0
        %v6213 = vadd.f32 %v6140, %v6212
        %6214 = vmatprep.mubr.bf16.mxu0 %v2966
        %6215 = vmatmul.mubr.bf16.gmra.mrb[0].mxu0 %v2965
        %v6216 = vpop.f32.mrb[0].mxu0
        %v6217 = vadd.f32 %v6144, %v6216
        %v6218 = vpop.f32.mrb[0].mxu0
        %v6219 = vadd.f32 %v6146, %v6218
        %v6220 = vpop.f32.mrb[0].mxu0
        %v6221 = vadd.f32 %v6148, %v6220
        %v6222 = vpop.f32.mrb[0].mxu0
        %v6223 = vadd.f32 %v6150, %v6222
        %6224 = vmatprep.mubr.bf16.mxu0 %v2982
        %6225 = vmatmul.mubr.bf16.gmra.mrb[0].mxu0 %v2981
        %v6226 = vpop.f32.mrb[0].mxu0
        %v6227 = vadd.f32 %v6154, %v6226
        %v6228 = vpop.f32.mrb[0].mxu0
        %v6229 = vadd.f32 %v6156, %v6228
        %v6230 = vpop.f32.mrb[0].mxu0
        %v6231 = vadd.f32 %v6158, %v6230
        %v6232 = vpop.f32.mrb[0].mxu0
        %v6233 = vadd.f32 %v6160, %v6232
        %6234 = vdwg.mxu0
        %6235 = vmatprep.subr.bf16.mxu0 %v5194
        %6236 = vmatpush1.bf16.msra.mxu0 %v5193
        %6237 = vmatprep.subr.bf16.mxu0 %v5198
        %6238 = vmatpush1.bf16.msra.mxu0 %v5197
        %6239 = vmatprep.subr.bf16.mxu0 %v5202
        %6240 = vmatpush1.bf16.msra.mxu0 %v5201
        %6241 = vmatprep.subr.bf16.mxu0 %v5206
        %6242 = vmatpush1.bf16.msra.mxu0 %v5205
        %6243 = vmatprep.subr.bf16.mxu0 %v5210
        %6244 = vmatpush1.bf16.msra.mxu0 %v5209
        %6245 = vmatprep.subr.bf16.mxu0 %v5214
        %6246 = vmatpush1.bf16.msra.mxu0 %v5213
        %6247 = vmatprep.subr.bf16.mxu0 %v5218
        %6248 = vmatpush1.bf16.msra.mxu0 %v5217
        %6249 = vmatprep.subr.bf16.mxu0 %v5222
        %6250 = vmatpush1.bf16.msra.mxu0 %v5221
        %6251 = vmatprep.subr.bf16.mxu0 %v5226
        %6252 = vmatpush1.bf16.msra.mxu0 %v5225
        %6253 = vmatprep.subr.bf16.mxu0 %v5230
        %6254 = vmatpush1.bf16.msra.mxu0 %v5229
        %6255 = vmatprep.subr.bf16.mxu0 %v5234
        %6256 = vmatpush1.bf16.msra.mxu0 %v5233
        %6257 = vmatprep.subr.bf16.mxu0 %v5238
        %6258 = vmatpush1.bf16.msra.mxu0 %v5237
        %6259 = vmatprep.subr.bf16.mxu0 %v5242
        %6260 = vmatpush1.bf16.msra.mxu0 %v5241
        %6261 = vmatprep.subr.bf16.mxu0 %v5246
        %6262 = vmatpush1.bf16.msra.mxu0 %v5245
        %6263 = vmatprep.subr.bf16.mxu0 %v5250
        %6264 = vmatpush1.bf16.msra.mxu0 %v5249
        %6265 = vmatprep.subr.bf16.mxu0 %v5254
        %6266 = vmatpush1.bf16.msra.mxu0 %v5253
        %6267 = vmatprep.mubr.bf16.mxu0 %v2936
        %6268 = vmatmul.mubr.bf16.gmra.mrb[0].mxu0 %v2935
        %v6269 = vpop.f32.mrb[0].mxu0
        %v6270 = vadd.f32 %v6197, %v6269
        %v6271 = vpop.f32.mrb[0].mxu0
        %v6272 = vadd.f32 %v6199, %v6271
        %v6273 = vpop.f32.mrb[0].mxu0
        %v6274 = vadd.f32 %v6201, %v6273
        %v6275 = vpop.f32.mrb[0].mxu0
        %v6276 = vadd.f32 %v6203, %v6275
        %6277 = vmatprep.mubr.bf16.mxu0 %v2952
        %6278 = vmatmul.mubr.bf16.gmra.mrb[0].mxu0 %v2951
        %v6279 = vpop.f32.mrb[0].mxu0
        %v6280 = vadd.f32 %v6207, %v6279
        %v6281 = vpop.f32.mrb[0].mxu0
        %v6282 = vadd.f32 %v6209, %v6281
        %v6283 = vpop.f32.mrb[0].mxu0
        %v6284 = vadd.f32 %v6211, %v6283
        %v6285 = vpop.f32.mrb[0].mxu0
        %v6286 = vadd.f32 %v6213, %v6285
        %6287 = vmatprep.mubr.bf16.mxu0 %v2968
        %6288 = vmatmul.mubr.bf16.gmra.mrb[0].mxu0 %v2967
        %v6289 = vpop.f32.mrb[0].mxu0
        %v6290 = vadd.f32 %v6217, %v6289
        %v6291 = vpop.f32.mrb[0].mxu0
        %v6292 = vadd.f32 %v6219, %v6291
        %v6293 = vpop.f32.mrb[0].mxu0
        %v6294 = vadd.f32 %v6221, %v6293
        %v6295 = vpop.f32.mrb[0].mxu0
        %v6296 = vadd.f32 %v6223, %v6295
        %6297 = vmatprep.mubr.bf16.mxu0 %v2984
        %6298 = vmatmul.mubr.bf16.gmra.mrb[0].mxu0 %v2983
        %v6299 = vpop.f32.mrb[0].mxu0
        %v6300 = vadd.f32 %v6227, %v6299
        %v6301 = vpop.f32.mrb[0].mxu0
        %v6302 = vadd.f32 %v6229, %v6301
        %v6303 = vpop.f32.mrb[0].mxu0
        %v6304 = vadd.f32 %v6231, %v6303
        %v6305 = vpop.f32.mrb[0].mxu0
        %v6306 = vadd.f32 %v6233, %v6305
        %6307 = vdwg.mxu0
        %6308 = vmatprep.subr.bf16.mxu0 %v5258
        %6309 = vmatpush1.bf16.msra.mxu0 %v5257
        %6310 = vmatprep.subr.bf16.mxu0 %v5262
        %6311 = vmatpush1.bf16.msra.mxu0 %v5261
        %6312 = vmatprep.subr.bf16.mxu0 %v5266
        %6313 = vmatpush1.bf16.msra.mxu0 %v5265
        %6314 = vmatprep.subr.bf16.mxu0 %v5270
        %6315 = vmatpush1.bf16.msra.mxu0 %v5269
        %6316 = vmatprep.subr.bf16.mxu0 %v5274
        %6317 = vmatpush1.bf16.msra.mxu0 %v5273
        %6318 = vmatprep.subr.bf16.mxu0 %v5278
        %6319 = vmatpush1.bf16.msra.mxu0 %v5277
        %6320 = vmatprep.subr.bf16.mxu0 %v5282
        %6321 = vmatpush1.bf16.msra.mxu0 %v5281
        %6322 = vmatprep.subr.bf16.mxu0 %v5286
        %6323 = vmatpush1.bf16.msra.mxu0 %v5285
        %6324 = vmatprep.subr.bf16.mxu0 %v5290
        %6325 = vmatpush1.bf16.msra.mxu0 %v5289
        %6326 = vmatprep.subr.bf16.mxu0 %v5294
        %6327 = vmatpush1.bf16.msra.mxu0 %v5293
        %6328 = vmatprep.subr.bf16.mxu0 %v5298
        %6329 = vmatpush1.bf16.msra.mxu0 %v5297
        %6330 = vmatprep.subr.bf16.mxu0 %v5302
        %6331 = vmatpush1.bf16.msra.mxu0 %v5301
        %6332 = vmatprep.subr.bf16.mxu0 %v5306
        %6333 = vmatpush1.bf16.msra.mxu0 %v5305
        %6334 = vmatprep.subr.bf16.mxu0 %v5310
        %6335 = vmatpush1.bf16.msra.mxu0 %v5309
        %6336 = vmatprep.subr.bf16.mxu0 %v5314
        %6337 = vmatpush1.bf16.msra.mxu0 %v5313
        %6338 = vmatprep.subr.bf16.mxu0 %v5318
        %6339 = vmatpush1.bf16.msra.mxu0 %v5317
        %6340 = vmatprep.mubr.bf16.mxu0 %v2938
        %6341 = vmatmul.mubr.bf16.gmra.mrb[0].mxu0 %v2937
        %v6342 = vpop.f32.mrb[0].mxu0
        %v6343 = vadd.f32 %v6270, %v6342
        %v6344 = vpop.f32.mrb[0].mxu0
        %v6345 = vadd.f32 %v6272, %v6344
        %v6346 = vpop.f32.mrb[0].mxu0
        %v6347 = vadd.f32 %v6274, %v6346
        %v6348 = vpop.f32.mrb[0].mxu0
        %v6349 = vadd.f32 %v6276, %v6348
        %6350 = vmatprep.mubr.bf16.mxu0 %v2954
        %6351 = vmatmul.mubr.bf16.gmra.mrb[0].mxu0 %v2953
        %v6352 = vpop.f32.mrb[0].mxu0
        %v6353 = vadd.f32 %v6280, %v6352
        %v6354 = vpop.f32.mrb[0].mxu0
        %v6355 = vadd.f32 %v6282, %v6354
        %v6356 = vpop.f32.mrb[0].mxu0
        %v6357 = vadd.f32 %v6284, %v6356
        %v6358 = vpop.f32.mrb[0].mxu0
        %v6359 = vadd.f32 %v6286, %v6358
        %6360 = vmatprep.mubr.bf16.mxu0 %v2970
        %6361 = vmatmul.mubr.bf16.gmra.mrb[0].mxu0 %v2969
        %v6362 = vpop.f32.mrb[0].mxu0
        %v6363 = vadd.f32 %v6290, %v6362
        %v6364 = vpop.f32.mrb[0].mxu0
        %v6365 = vadd.f32 %v6292, %v6364
        %v6366 = vpop.f32.mrb[0].mxu0
        %v6367 = vadd.f32 %v6294, %v6366
        %v6368 = vpop.f32.mrb[0].mxu0
        %v6369 = vadd.f32 %v6296, %v6368
        %6370 = vmatprep.mubr.bf16.mxu0 %v2986
        %6371 = vmatmul.mubr.bf16.gmra.mrb[0].mxu0 %v2985
        %v6372 = vpop.f32.mrb[0].mxu0
        %v6373 = vadd.f32 %v6300, %v6372
        %v6374 = vpop.f32.mrb[0].mxu0
        %v6375 = vadd.f32 %v6302, %v6374
        %v6376 = vpop.f32.mrb[0].mxu0
        %v6377 = vadd.f32 %v6304, %v6376
        %v6378 = vpop.f32.mrb[0].mxu0
        %v6379 = vadd.f32 %v6306, %v6378
        %6380 = vdwg.mxu0
        %6381 = vmatprep.subr.bf16.mxu0 %v5322
        %6382 = vmatpush1.bf16.msra.mxu0 %v5321
        %6383 = vmatprep.subr.bf16.mxu0 %v5326
        %6384 = vmatpush1.bf16.msra.mxu0 %v5325
        %6385 = vmatprep.subr.bf16.mxu0 %v5330
        %6386 = vmatpush1.bf16.msra.mxu0 %v5329
        %6387 = vmatprep.subr.bf16.mxu0 %v5334
        %6388 = vmatpush1.bf16.msra.mxu0 %v5333
        %6389 = vmatprep.subr.bf16.mxu0 %v5338
        %6390 = vmatpush1.bf16.msra.mxu0 %v5337
        %6391 = vmatprep.subr.bf16.mxu0 %v5342
        %6392 = vmatpush1.bf16.msra.mxu0 %v5341
        %6393 = vmatprep.subr.bf16.mxu0 %v5346
        %6394 = vmatpush1.bf16.msra.mxu0 %v5345
        %6395 = vmatprep.subr.bf16.mxu0 %v5350
        %6396 = vmatpush1.bf16.msra.mxu0 %v5349
        %6397 = vmatprep.subr.bf16.mxu0 %v5354
        %6398 = vmatpush1.bf16.msra.mxu0 %v5353
        %6399 = vmatprep.subr.bf16.mxu0 %v5358
        %6400 = vmatpush1.bf16.msra.mxu0 %v5357
        %6401 = vmatprep.subr.bf16.mxu0 %v5362
        %6402 = vmatpush1.bf16.msra.mxu0 %v5361
        %6403 = vmatprep.subr.bf16.mxu0 %v5366
        %6404 = vmatpush1.bf16.msra.mxu0 %v5365
        %6405 = vmatprep.subr.bf16.mxu0 %v5370
        %6406 = vmatpush1.bf16.msra.mxu0 %v5369
        %6407 = vmatprep.subr.bf16.mxu0 %v5374
        %6408 = vmatpush1.bf16.msra.mxu0 %v5373
        %6409 = vmatprep.subr.bf16.mxu0 %v5378
        %6410 = vmatpush1.bf16.msra.mxu0 %v5377
        %6411 = vmatprep.subr.bf16.mxu0 %v5382
        %6412 = vmatpush1.bf16.msra.mxu0 %v5381
        %6413 = vmatprep.mubr.bf16.mxu0 %v2940
        %6414 = vmatmul.mubr.bf16.gmra.mrb[0].mxu0 %v2939
        %v6415 = vpop.f32.mrb[0].mxu0
        %v6416 = vadd.f32 %v6343, %v6415
        %v6417 = vpop.f32.mrb[0].mxu0
        %v6418 = vadd.f32 %v6345, %v6417
        %v6419 = vpop.f32.mrb[0].mxu0
        %v6420 = vadd.f32 %v6347, %v6419
        %v6421 = vpop.f32.mrb[0].mxu0
        %v6422 = vadd.f32 %v6349, %v6421
        %6423 = vmatprep.mubr.bf16.mxu0 %v2956
        %6424 = vmatmul.mubr.bf16.gmra.mrb[0].mxu0 %v2955
        %v6425 = vpop.f32.mrb[0].mxu0
        %v6426 = vadd.f32 %v6353, %v6425
        %v6427 = vpop.f32.mrb[0].mxu0
        %v6428 = vadd.f32 %v6355, %v6427
        %v6429 = vpop.f32.mrb[0].mxu0
        %v6430 = vadd.f32 %v6357, %v6429
        %v6431 = vpop.f32.mrb[0].mxu0
        %v6432 = vadd.f32 %v6359, %v6431
        %6433 = vmatprep.mubr.bf16.mxu0 %v2972
        %6434 = vmatmul.mubr.bf16.gmra.mrb[0].mxu0 %v2971
        %v6435 = vpop.f32.mrb[0].mxu0
        %v6436 = vadd.f32 %v6363, %v6435
        %v6437 = vpop.f32.mrb[0].mxu0
        %v6438 = vadd.f32 %v6365, %v6437
        %v6439 = vpop.f32.mrb[0].mxu0
        %v6440 = vadd.f32 %v6367, %v6439
        %v6441 = vpop.f32.mrb[0].mxu0
        %v6442 = vadd.f32 %v6369, %v6441
        %6443 = vmatprep.mubr.bf16.mxu0 %v2988
        %6444 = vmatmul.mubr.bf16.gmra.mrb[0].mxu0 %v2987
        %v6445 = vpop.f32.mrb[0].mxu0
        %v6446 = vadd.f32 %v6373, %v6445
        %v6447 = vpop.f32.mrb[0].mxu0
        %v6448 = vadd.f32 %v6375, %v6447
        %v6449 = vpop.f32.mrb[0].mxu0
        %v6450 = vadd.f32 %v6377, %v6449
        %v6451 = vpop.f32.mrb[0].mxu0
        %v6452 = vadd.f32 %v6379, %v6451
        %6453 = vdwg.mxu0
        %6454 = vmatprep.subr.bf16.mxu0 %v5386
        %6455 = vmatpush1.bf16.msra.mxu0 %v5385
        %6456 = vmatprep.subr.bf16.mxu0 %v5390
        %6457 = vmatpush1.bf16.msra.mxu0 %v5389
        %6458 = vmatprep.subr.bf16.mxu0 %v5394
        %6459 = vmatpush1.bf16.msra.mxu0 %v5393
        %6460 = vmatprep.subr.bf16.mxu0 %v5398
        %6461 = vmatpush1.bf16.msra.mxu0 %v5397
        %6462 = vmatprep.subr.bf16.mxu0 %v5402
        %6463 = vmatpush1.bf16.msra.mxu0 %v5401
        %6464 = vmatprep.subr.bf16.mxu0 %v5406
        %6465 = vmatpush1.bf16.msra.mxu0 %v5405
        %6466 = vmatprep.subr.bf16.mxu0 %v5410
        %6467 = vmatpush1.bf16.msra.mxu0 %v5409
        %6468 = vmatprep.subr.bf16.mxu0 %v5414
        %6469 = vmatpush1.bf16.msra.mxu0 %v5413
        %6470 = vmatprep.subr.bf16.mxu0 %v5418
        %6471 = vmatpush1.bf16.msra.mxu0 %v5417
        %6472 = vmatprep.subr.bf16.mxu0 %v5422
        %6473 = vmatpush1.bf16.msra.mxu0 %v5421
        %6474 = vmatprep.subr.bf16.mxu0 %v5426
        %6475 = vmatpush1.bf16.msra.mxu0 %v5425
        %6476 = vmatprep.subr.bf16.mxu0 %v5430
        %6477 = vmatpush1.bf16.msra.mxu0 %v5429
        %6478 = vmatprep.subr.bf16.mxu0 %v5434
        %6479 = vmatpush1.bf16.msra.mxu0 %v5433
        %6480 = vmatprep.subr.bf16.mxu0 %v5438
        %6481 = vmatpush1.bf16.msra.mxu0 %v5437
        %6482 = vmatprep.subr.bf16.mxu0 %v5442
        %6483 = vmatpush1.bf16.msra.mxu0 %v5441
        %6484 = vmatprep.subr.bf16.mxu0 %v5446
        %6485 = vmatpush1.bf16.msra.mxu0 %v5445
        %6486 = vmatprep.mubr.bf16.mxu0 %v2942
        %6487 = vmatmul.mubr.bf16.gmra.mrb[0].mxu0 %v2941
        %v6488 = vpop.f32.mrb[0].mxu0
        %v6489 = vadd.f32 %v6416, %v6488
        %v6490 = vpop.f32.mrb[0].mxu0
        %v6491 = vadd.f32 %v6418, %v6490
        %v6492 = vpop.f32.mrb[0].mxu0
        %v6493 = vadd.f32 %v6420, %v6492
        %v6494 = vpop.f32.mrb[0].mxu0
        %v6495 = vadd.f32 %v6422, %v6494
        %6496 = vmatprep.mubr.bf16.mxu0 %v2958
        %6497 = vmatmul.mubr.bf16.gmra.mrb[0].mxu0 %v2957
        %v6498 = vpop.f32.mrb[0].mxu0
        %v6499 = vadd.f32 %v6426, %v6498
        %v6500 = vpop.f32.mrb[0].mxu0
        %v6501 = vadd.f32 %v6428, %v6500
        %v6502 = vpop.f32.mrb[0].mxu0
        %v6503 = vadd.f32 %v6430, %v6502
        %v6504 = vpop.f32.mrb[0].mxu0
        %v6505 = vadd.f32 %v6432, %v6504
        %6506 = vmatprep.mubr.bf16.mxu0 %v2974
        %6507 = vmatmul.mubr.bf16.gmra.mrb[0].mxu0 %v2973
        %v6508 = vpop.f32.mrb[0].mxu0
        %v6509 = vadd.f32 %v6436, %v6508
        %v6510 = vpop.f32.mrb[0].mxu0
        %v6511 = vadd.f32 %v6438, %v6510
        %v6512 = vpop.f32.mrb[0].mxu0
        %v6513 = vadd.f32 %v6440, %v6512
        %v6514 = vpop.f32.mrb[0].mxu0
        %v6515 = vadd.f32 %v6442, %v6514
        %6516 = vmatprep.mubr.bf16.mxu0 %v2990
        %6517 = vmatmul.mubr.bf16.gmra.mrb[0].mxu0 %v2989
        %v6518 = vpop.f32.mrb[0].mxu0
        %v6519 = vadd.f32 %v6446, %v6518
        %v6520 = vpop.f32.mrb[0].mxu0
        %v6521 = vadd.f32 %v6448, %v6520
        %v6522 = vpop.f32.mrb[0].mxu0
        %v6523 = vadd.f32 %v6450, %v6522
        %v6524 = vpop.f32.mrb[0].mxu0
        %v6525 = vadd.f32 %v6452, %v6524
        %6526 = vdwg.mxu0
        %6527 = vmatprep.subr.bf16.mxu0 %v5450
        %6528 = vmatpush1.bf16.msra.mxu0 %v5449
        %6529 = vmatprep.subr.bf16.mxu0 %v5454
        %6530 = vmatpush1.bf16.msra.mxu0 %v5453
        %6531 = vmatprep.subr.bf16.mxu0 %v5458
        %6532 = vmatpush1.bf16.msra.mxu0 %v5457
        %6533 = vmatprep.subr.bf16.mxu0 %v5462
        %6534 = vmatpush1.bf16.msra.mxu0 %v5461
        %6535 = vmatprep.subr.bf16.mxu0 %v5466
        %6536 = vmatpush1.bf16.msra.mxu0 %v5465
        %6537 = vmatprep.subr.bf16.mxu0 %v5470
        %6538 = vmatpush1.bf16.msra.mxu0 %v5469
        %6539 = vmatprep.subr.bf16.mxu0 %v5474
        %6540 = vmatpush1.bf16.msra.mxu0 %v5473
        %6541 = vmatprep.subr.bf16.mxu0 %v5478
        %6542 = vmatpush1.bf16.msra.mxu0 %v5477
        %6543 = vmatprep.subr.bf16.mxu0 %v5482
        %6544 = vmatpush1.bf16.msra.mxu0 %v5481
        %6545 = vmatprep.subr.bf16.mxu0 %v5486
        %6546 = vmatpush1.bf16.msra.mxu0 %v5485
        %6547 = vmatprep.subr.bf16.mxu0 %v5490
        %6548 = vmatpush1.bf16.msra.mxu0 %v5489
        %6549 = vmatprep.subr.bf16.mxu0 %v5494
        %6550 = vmatpush1.bf16.msra.mxu0 %v5493
        %6551 = vmatprep.subr.bf16.mxu0 %v5498
        %6552 = vmatpush1.bf16.msra.mxu0 %v5497
        %6553 = vmatprep.subr.bf16.mxu0 %v5502
        %6554 = vmatpush1.bf16.msra.mxu0 %v5501
        %6555 = vmatprep.subr.bf16.mxu0 %v5506
        %6556 = vmatpush1.bf16.msra.mxu0 %v5505
        %6557 = vmatprep.subr.bf16.mxu0 %v5510
        %6558 = vmatpush1.bf16.msra.mxu0 %v5509
        %6559 = vmatprep.mubr.bf16.mxu0 %v2944
        %6560 = vmatmul.mubr.bf16.gmra.mrb[0].mxu0 %v2943
        %v6561 = vpop.f32.mrb[0].mxu0
        %v6562 = vadd.f32 %v6489, %v6561
        %v6563 = vpop.f32.mrb[0].mxu0
        %v6564 = vadd.f32 %v6491, %v6563
        %v6565 = vpop.f32.mrb[0].mxu0
        %v6566 = vadd.f32 %v6493, %v6565
        %v6567 = vpop.f32.mrb[0].mxu0
        %v6568 = vadd.f32 %v6495, %v6567
        %6569 = vmatprep.mubr.bf16.mxu0 %v2960
        %6570 = vmatmul.mubr.bf16.gmra.mrb[0].mxu0 %v2959
        %v6571 = vpop.f32.mrb[0].mxu0
        %v6572 = vadd.f32 %v6499, %v6571
        %v6573 = vpop.f32.mrb[0].mxu0
        %v6574 = vadd.f32 %v6501, %v6573
        %v6575 = vpop.f32.mrb[0].mxu0
        %v6576 = vadd.f32 %v6503, %v6575
        %v6577 = vpop.f32.mrb[0].mxu0
        %v6578 = vadd.f32 %v6505, %v6577
        %6579 = vmatprep.mubr.bf16.mxu0 %v2976
        %6580 = vmatmul.mubr.bf16.gmra.mrb[0].mxu0 %v2975
        %v6581 = vpop.f32.mrb[0].mxu0
        %v6582 = vadd.f32 %v6509, %v6581
        %v6583 = vpop.f32.mrb[0].mxu0
        %v6584 = vadd.f32 %v6511, %v6583
        %v6585 = vpop.f32.mrb[0].mxu0
        %v6586 = vadd.f32 %v6513, %v6585
        %v6587 = vpop.f32.mrb[0].mxu0
        %v6588 = vadd.f32 %v6515, %v6587
        %6589 = vmatprep.mubr.bf16.mxu0 %v2992
        %6590 = vmatmul.mubr.bf16.gmra.mrb[0].mxu0 %v2991
        %v6591 = vpop.f32.mrb[0].mxu0
        %v6592 = vadd.f32 %v6519, %v6591
        %v6593 = vpop.f32.mrb[0].mxu0
        %v6594 = vadd.f32 %v6521, %v6593
        %v6595 = vpop.f32.mrb[0].mxu0
        %v6596 = vadd.f32 %v6523, %v6595
        %v6597 = vpop.f32.mrb[0].mxu0
        %v6598 = vadd.f32 %v6525, %v6597
        %6599 = vdwg.mxu0
        %6600 = vmatprep.subr.bf16.mxu0 %v5514
        %6601 = vmatpush1.bf16.msra.mxu0 %v5513
        %6602 = vmatprep.subr.bf16.mxu0 %v5518
        %6603 = vmatpush1.bf16.msra.mxu0 %v5517
        %6604 = vmatprep.subr.bf16.mxu0 %v5522
        %6605 = vmatpush1.bf16.msra.mxu0 %v5521
        %6606 = vmatprep.subr.bf16.mxu0 %v5526
        %6607 = vmatpush1.bf16.msra.mxu0 %v5525
        %6608 = vmatprep.subr.bf16.mxu0 %v5530
        %6609 = vmatpush1.bf16.msra.mxu0 %v5529
        %6610 = vmatprep.subr.bf16.mxu0 %v5534
        %6611 = vmatpush1.bf16.msra.mxu0 %v5533
        %6612 = vmatprep.subr.bf16.mxu0 %v5538
        %6613 = vmatpush1.bf16.msra.mxu0 %v5537
        %6614 = vmatprep.subr.bf16.mxu0 %v5542
        %6615 = vmatpush1.bf16.msra.mxu0 %v5541
        %6616 = vmatprep.subr.bf16.mxu0 %v5546
        %6617 = vmatpush1.bf16.msra.mxu0 %v5545
        %6618 = vmatprep.subr.bf16.mxu0 %v5550
        %6619 = vmatpush1.bf16.msra.mxu0 %v5549
        %6620 = vmatprep.subr.bf16.mxu0 %v5554
        %6621 = vmatpush1.bf16.msra.mxu0 %v5553
        %6622 = vmatprep.subr.bf16.mxu0 %v5558
        %6623 = vmatpush1.bf16.msra.mxu0 %v5557
        %6624 = vmatprep.subr.bf16.mxu0 %v5562
        %6625 = vmatpush1.bf16.msra.mxu0 %v5561
        %6626 = vmatprep.subr.bf16.mxu0 %v5566
        %6627 = vmatpush1.bf16.msra.mxu0 %v5565
        %6628 = vmatprep.subr.bf16.mxu0 %v5570
        %6629 = vmatpush1.bf16.msra.mxu0 %v5569
        %6630 = vmatprep.subr.bf16.mxu0 %v5574
        %6631 = vmatpush1.bf16.msra.mxu0 %v5573
        %6632 = vmatprep.mubr.bf16.mxu0 %v2946
        %6633 = vmatmul.mubr.bf16.gmra.mrb[0].mxu0 %v2945
        %v6634 = vpop.f32.mrb[0].mxu0
        %v6635 = vadd.f32 %v6562, %v6634
        %v6636 = vpop.f32.mrb[0].mxu0
        %v6637 = vadd.f32 %v6564, %v6636
        %v6638 = vpop.f32.mrb[0].mxu0
        %v6639 = vadd.f32 %v6566, %v6638
        %v6640 = vpop.f32.mrb[0].mxu0
        %v6641 = vadd.f32 %v6568, %v6640
        %6642 = vmatprep.mubr.bf16.mxu0 %v2962
        %6643 = vmatmul.mubr.bf16.gmra.mrb[0].mxu0 %v2961
        %v6644 = vpop.f32.mrb[0].mxu0
        %v6645 = vadd.f32 %v6572, %v6644
        %v6646 = vpop.f32.mrb[0].mxu0
        %v6647 = vadd.f32 %v6574, %v6646
        %v6648 = vpop.f32.mrb[0].mxu0
        %v6649 = vadd.f32 %v6576, %v6648
        %v6650 = vpop.f32.mrb[0].mxu0
        %v6651 = vadd.f32 %v6578, %v6650
        %6652 = vmatprep.mubr.bf16.mxu0 %v2978
        %6653 = vmatmul.mubr.bf16.gmra.mrb[0].mxu0 %v2977
        %v6654 = vpop.f32.mrb[0].mxu0
        %v6655 = vadd.f32 %v6582, %v6654
        %v6656 = vpop.f32.mrb[0].mxu0
        %v6657 = vadd.f32 %v6584, %v6656
        %v6658 = vpop.f32.mrb[0].mxu0
        %v6659 = vadd.f32 %v6586, %v6658
        %v6660 = vpop.f32.mrb[0].mxu0
        %v6661 = vadd.f32 %v6588, %v6660
        %6662 = vmatprep.mubr.bf16.mxu0 %v2994
        %6663 = vmatmul.mubr.bf16.gmra.mrb[0].mxu0 %v2993
        %v6664 = vpop.f32.mrb[0].mxu0
        %v6665 = vadd.f32 %v6592, %v6664
        %v6666 = vpop.f32.mrb[0].mxu0
        %v6667 = vadd.f32 %v6594, %v6666
        %v6668 = vpop.f32.mrb[0].mxu0
        %v6669 = vadd.f32 %v6596, %v6668
        %v6670 = vpop.f32.mrb[0].mxu0
        %v6671 = vadd.f32 %v6598, %v6670
        %6672 = vdwg.mxu0
        %6673 = vmatprep.subr.bf16.mxu0 %v5068
        %6674 = vmatpush1.bf16.msra.mxu0 %v5067
        %6675 = vmatprep.subr.bf16.mxu0 %v5072
        %6676 = vmatpush1.bf16.msra.mxu0 %v5071
        %6677 = vmatprep.subr.bf16.mxu0 %v5076
        %6678 = vmatpush1.bf16.msra.mxu0 %v5075
        %6679 = vmatprep.subr.bf16.mxu0 %v5080
        %6680 = vmatpush1.bf16.msra.mxu0 %v5079
        %6681 = vmatprep.subr.bf16.mxu0 %v5084
        %6682 = vmatpush1.bf16.msra.mxu0 %v5083
        %6683 = vmatprep.subr.bf16.mxu0 %v5088
        %6684 = vmatpush1.bf16.msra.mxu0 %v5087
        %6685 = vmatprep.subr.bf16.mxu0 %v5092
        %6686 = vmatpush1.bf16.msra.mxu0 %v5091
        %6687 = vmatprep.subr.bf16.mxu0 %v5096
        %6688 = vmatpush1.bf16.msra.mxu0 %v5095
        %6689 = vmatprep.subr.bf16.mxu0 %v5100
        %6690 = vmatpush1.bf16.msra.mxu0 %v5099
        %6691 = vmatprep.subr.bf16.mxu0 %v5104
        %6692 = vmatpush1.bf16.msra.mxu0 %v5103
        %6693 = vmatprep.subr.bf16.mxu0 %v5108
        %6694 = vmatpush1.bf16.msra.mxu0 %v5107
        %6695 = vmatprep.subr.bf16.mxu0 %v5112
        %6696 = vmatpush1.bf16.msra.mxu0 %v5111
        %6697 = vmatprep.subr.bf16.mxu0 %v5116
        %6698 = vmatpush1.bf16.msra.mxu0 %v5115
        %6699 = vmatprep.subr.bf16.mxu0 %v5120
        %6700 = vmatpush1.bf16.msra.mxu0 %v5119
        %6701 = vmatprep.subr.bf16.mxu0 %v5124
        %6702 = vmatpush1.bf16.msra.mxu0 %v5123
        %6703 = vmatprep.subr.bf16.mxu0 %v5128
        %6704 = vmatpush1.bf16.msra.mxu0 %v5127
        %6705 = vmatprep.mubr.bf16.mxu0 %v2932
        %6706 = vmatmul.mubr.bf16.gmra.mrb[0].mxu0 %v2931
        %v6707 = vpop.f32.mrb[0].mxu0
        %v6708 = vadd.f32 %v3520, %v6707
        %v6709 = vpop.f32.mrb[0].mxu0
        %v6710 = vadd.f32 %v3524, %v6709
        %v6711 = vpop.f32.mrb[0].mxu0
        %v6712 = vadd.f32 %v3520, %v6711
        %v6713 = vpop.f32.mrb[0].mxu0
        %v6714 = vadd.f32 %v3524, %v6713
        %6715 = vmatprep.mubr.bf16.mxu0 %v2948
        %6716 = vmatmul.mubr.bf16.gmra.mrb[0].mxu0 %v2947
        %v6717 = vpop.f32.mrb[0].mxu0
        %v6718 = vadd.f32 %v3520, %v6717
        %v6719 = vpop.f32.mrb[0].mxu0
        %v6720 = vadd.f32 %v3524, %v6719
        %v6721 = vpop.f32.mrb[0].mxu0
        %v6722 = vadd.f32 %v3520, %v6721
        %v6723 = vpop.f32.mrb[0].mxu0
        %v6724 = vadd.f32 %v3524, %v6723
        %6725 = vmatprep.mubr.bf16.mxu0 %v2964
        %6726 = vmatmul.mubr.bf16.gmra.mrb[0].mxu0 %v2963
        %v6727 = vpop.f32.mrb[0].mxu0
        %v6728 = vadd.f32 %v3520, %v6727
        %v6729 = vpop.f32.mrb[0].mxu0
        %v6730 = vadd.f32 %v3524, %v6729
        %v6731 = vpop.f32.mrb[0].mxu0
        %v6732 = vadd.f32 %v3520, %v6731
        %v6733 = vpop.f32.mrb[0].mxu0
        %v6734 = vadd.f32 %v3524, %v6733
        %6735 = vmatprep.mubr.bf16.mxu0 %v2980
        %6736 = vmatmul.mubr.bf16.gmra.mrb[0].mxu0 %v2979
        %v6737 = vpop.f32.mrb[0].mxu0
        %v6738 = vadd.f32 %v3520, %v6737
        %v6739 = vpop.f32.mrb[0].mxu0
        %v6740 = vadd.f32 %v3524, %v6739
        %v6741 = vpop.f32.mrb[0].mxu0
        %v6742 = vadd.f32 %v3520, %v6741
        %v6743 = vpop.f32.mrb[0].mxu0
        %v6744 = vadd.f32 %v3524, %v6743
        %6745 = vdwg.mxu0
        %6746 = vmatprep.subr.bf16.mxu0 %v5132
        %6747 = vmatpush1.bf16.msra.mxu0 %v5131
        %6748 = vmatprep.subr.bf16.mxu0 %v5136
        %6749 = vmatpush1.bf16.msra.mxu0 %v5135
        %6750 = vmatprep.subr.bf16.mxu0 %v5140
        %6751 = vmatpush1.bf16.msra.mxu0 %v5139
        %6752 = vmatprep.subr.bf16.mxu0 %v5144
        %6753 = vmatpush1.bf16.msra.mxu0 %v5143
        %6754 = vmatprep.subr.bf16.mxu0 %v5148
        %6755 = vmatpush1.bf16.msra.mxu0 %v5147
        %6756 = vmatprep.subr.bf16.mxu0 %v5152
        %6757 = vmatpush1.bf16.msra.mxu0 %v5151
        %6758 = vmatprep.subr.bf16.mxu0 %v5156
        %6759 = vmatpush1.bf16.msra.mxu0 %v5155
        %6760 = vmatprep.subr.bf16.mxu0 %v5160
        %6761 = vmatpush1.bf16.msra.mxu0 %v5159
        %6762 = vmatprep.subr.bf16.mxu0 %v5164
        %6763 = vmatpush1.bf16.msra.mxu0 %v5163
        %6764 = vmatprep.subr.bf16.mxu0 %v5168
        %6765 = vmatpush1.bf16.msra.mxu0 %v5167
        %6766 = vmatprep.subr.bf16.mxu0 %v5172
        %6767 = vmatpush1.bf16.msra.mxu0 %v5171
        %6768 = vmatprep.subr.bf16.mxu0 %v5176
        %6769 = vmatpush1.bf16.msra.mxu0 %v5175
        %6770 = vmatprep.subr.bf16.mxu0 %v5180
        %6771 = vmatpush1.bf16.msra.mxu0 %v5179
        %6772 = vmatprep.subr.bf16.mxu0 %v5184
        %6773 = vmatpush1.bf16.msra.mxu0 %v5183
        %6774 = vmatprep.subr.bf16.mxu0 %v5188
        %6775 = vmatpush1.bf16.msra.mxu0 %v5187
        %6776 = vmatprep.subr.bf16.mxu0 %v5192
        %6777 = vmatpush1.bf16.msra.mxu0 %v5191
        %6778 = vmatprep.mubr.bf16.mxu0 %v2934
        %6779 = vmatmul.mubr.bf16.gmra.mrb[0].mxu0 %v2933
        %v6780 = vpop.f32.mrb[0].mxu0
        %v6781 = vadd.f32 %v6708, %v6780
        %v6782 = vpop.f32.mrb[0].mxu0
        %v6783 = vadd.f32 %v6710, %v6782
        %v6784 = vpop.f32.mrb[0].mxu0
        %v6785 = vadd.f32 %v6712, %v6784
        %v6786 = vpop.f32.mrb[0].mxu0
        %v6787 = vadd.f32 %v6714, %v6786
        %6788 = vmatprep.mubr.bf16.mxu0 %v2950
        %6789 = vmatmul.mubr.bf16.gmra.mrb[0].mxu0 %v2949
        %v6790 = vpop.f32.mrb[0].mxu0
        %v6791 = vadd.f32 %v6718, %v6790
        %v6792 = vpop.f32.mrb[0].mxu0
        %v6793 = vadd.f32 %v6720, %v6792
        %v6794 = vpop.f32.mrb[0].mxu0
        %v6795 = vadd.f32 %v6722, %v6794
        %v6796 = vpop.f32.mrb[0].mxu0
        %v6797 = vadd.f32 %v6724, %v6796
        %6798 = vmatprep.mubr.bf16.mxu0 %v2966
        %6799 = vmatmul.mubr.bf16.gmra.mrb[0].mxu0 %v2965
        %v6800 = vpop.f32.mrb[0].mxu0
        %v6801 = vadd.f32 %v6728, %v6800
        %v6802 = vpop.f32.mrb[0].mxu0
        %v6803 = vadd.f32 %v6730, %v6802
        %v6804 = vpop.f32.mrb[0].mxu0
        %v6805 = vadd.f32 %v6732, %v6804
        %v6806 = vpop.f32.mrb[0].mxu0
        %v6807 = vadd.f32 %v6734, %v6806
        %6808 = vmatprep.mubr.bf16.mxu0 %v2982
        %6809 = vmatmul.mubr.bf16.gmra.mrb[0].mxu0 %v2981
        %v6810 = vpop.f32.mrb[0].mxu0
        %v6811 = vadd.f32 %v6738, %v6810
        %v6812 = vpop.f32.mrb[0].mxu0
        %v6813 = vadd.f32 %v6740, %v6812
        %v6814 = vpop.f32.mrb[0].mxu0
        %v6815 = vadd.f32 %v6742, %v6814
        %v6816 = vpop.f32.mrb[0].mxu0
        %v6817 = vadd.f32 %v6744, %v6816
        %6818 = vdwg.mxu0
        %6819 = vmatprep.subr.bf16.mxu0 %v5196
        %6820 = vmatpush1.bf16.msra.mxu0 %v5195
        %6821 = vmatprep.subr.bf16.mxu0 %v5200
        %6822 = vmatpush1.bf16.msra.mxu0 %v5199
        %6823 = vmatprep.subr.bf16.mxu0 %v5204
        %6824 = vmatpush1.bf16.msra.mxu0 %v5203
        %6825 = vmatprep.subr.bf16.mxu0 %v5208
        %6826 = vmatpush1.bf16.msra.mxu0 %v5207
        %6827 = vmatprep.subr.bf16.mxu0 %v5212
        %6828 = vmatpush1.bf16.msra.mxu0 %v5211
        %6829 = vmatprep.subr.bf16.mxu0 %v5216
        %6830 = vmatpush1.bf16.msra.mxu0 %v5215
        %6831 = vmatprep.subr.bf16.mxu0 %v5220
        %6832 = vmatpush1.bf16.msra.mxu0 %v5219
        %6833 = vmatprep.subr.bf16.mxu0 %v5224
        %6834 = vmatpush1.bf16.msra.mxu0 %v5223
        %6835 = vmatprep.subr.bf16.mxu0 %v5228
        %6836 = vmatpush1.bf16.msra.mxu0 %v5227
        %6837 = vmatprep.subr.bf16.mxu0 %v5232
        %6838 = vmatpush1.bf16.msra.mxu0 %v5231
        %6839 = vmatprep.subr.bf16.mxu0 %v5236
        %6840 = vmatpush1.bf16.msra.mxu0 %v5235
        %6841 = vmatprep.subr.bf16.mxu0 %v5240
        %6842 = vmatpush1.bf16.msra.mxu0 %v5239
        %6843 = vmatprep.subr.bf16.mxu0 %v5244
        %6844 = vmatpush1.bf16.msra.mxu0 %v5243
        %6845 = vmatprep.subr.bf16.mxu0 %v5248
        %6846 = vmatpush1.bf16.msra.mxu0 %v5247
        %6847 = vmatprep.subr.bf16.mxu0 %v5252
        %6848 = vmatpush1.bf16.msra.mxu0 %v5251
        %6849 = vmatprep.subr.bf16.mxu0 %v5256
        %6850 = vmatpush1.bf16.msra.mxu0 %v5255
        %6851 = vmatprep.mubr.bf16.mxu0 %v2936
        %6852 = vmatmul.mubr.bf16.gmra.mrb[0].mxu0 %v2935
        %v6853 = vpop.f32.mrb[0].mxu0
        %v6854 = vadd.f32 %v6781, %v6853
        %v6855 = vpop.f32.mrb[0].mxu0
        %v6856 = vadd.f32 %v6783, %v6855
        %v6857 = vpop.f32.mrb[0].mxu0
        %v6858 = vadd.f32 %v6785, %v6857
        %v6859 = vpop.f32.mrb[0].mxu0
        %v6860 = vadd.f32 %v6787, %v6859
        %6861 = vmatprep.mubr.bf16.mxu0 %v2952
        %6862 = vmatmul.mubr.bf16.gmra.mrb[0].mxu0 %v2951
        %v6863 = vpop.f32.mrb[0].mxu0
        %v6864 = vadd.f32 %v6791, %v6863
        %v6865 = vpop.f32.mrb[0].mxu0
        %v6866 = vadd.f32 %v6793, %v6865
        %v6867 = vpop.f32.mrb[0].mxu0
        %v6868 = vadd.f32 %v6795, %v6867
        %v6869 = vpop.f32.mrb[0].mxu0
        %v6870 = vadd.f32 %v6797, %v6869
        %6871 = vmatprep.mubr.bf16.mxu0 %v2968
        %6872 = vmatmul.mubr.bf16.gmra.mrb[0].mxu0 %v2967
        %v6873 = vpop.f32.mrb[0].mxu0
        %v6874 = vadd.f32 %v6801, %v6873
        %v6875 = vpop.f32.mrb[0].mxu0
        %v6876 = vadd.f32 %v6803, %v6875
        %v6877 = vpop.f32.mrb[0].mxu0
        %v6878 = vadd.f32 %v6805, %v6877
        %v6879 = vpop.f32.mrb[0].mxu0
        %v6880 = vadd.f32 %v6807, %v6879
        %6881 = vmatprep.mubr.bf16.mxu0 %v2984
        %6882 = vmatmul.mubr.bf16.gmra.mrb[0].mxu0 %v2983
        %v6883 = vpop.f32.mrb[0].mxu0
        %v6884 = vadd.f32 %v6811, %v6883
        %v6885 = vpop.f32.mrb[0].mxu0
        %v6886 = vadd.f32 %v6813, %v6885
        %v6887 = vpop.f32.mrb[0].mxu0
        %v6888 = vadd.f32 %v6815, %v6887
        %v6889 = vpop.f32.mrb[0].mxu0
        %v6890 = vadd.f32 %v6817, %v6889
        %6891 = vdwg.mxu0
        %6892 = vmatprep.subr.bf16.mxu0 %v5260
        %6893 = vmatpush1.bf16.msra.mxu0 %v5259
        %6894 = vmatprep.subr.bf16.mxu0 %v5264
        %6895 = vmatpush1.bf16.msra.mxu0 %v5263
        %6896 = vmatprep.subr.bf16.mxu0 %v5268
        %6897 = vmatpush1.bf16.msra.mxu0 %v5267
        %6898 = vmatprep.subr.bf16.mxu0 %v5272
        %6899 = vmatpush1.bf16.msra.mxu0 %v5271
        %6900 = vmatprep.subr.bf16.mxu0 %v5276
        %6901 = vmatpush1.bf16.msra.mxu0 %v5275
        %6902 = vmatprep.subr.bf16.mxu0 %v5280
        %6903 = vmatpush1.bf16.msra.mxu0 %v5279
        %6904 = vmatprep.subr.bf16.mxu0 %v5284
        %6905 = vmatpush1.bf16.msra.mxu0 %v5283
        %6906 = vmatprep.subr.bf16.mxu0 %v5288
        %6907 = vmatpush1.bf16.msra.mxu0 %v5287
        %6908 = vmatprep.subr.bf16.mxu0 %v5292
        %6909 = vmatpush1.bf16.msra.mxu0 %v5291
        %6910 = vmatprep.subr.bf16.mxu0 %v5296
        %6911 = vmatpush1.bf16.msra.mxu0 %v5295
        %6912 = vmatprep.subr.bf16.mxu0 %v5300
        %6913 = vmatpush1.bf16.msra.mxu0 %v5299
        %6914 = vmatprep.subr.bf16.mxu0 %v5304
        %6915 = vmatpush1.bf16.msra.mxu0 %v5303
        %6916 = vmatprep.subr.bf16.mxu0 %v5308
        %6917 = vmatpush1.bf16.msra.mxu0 %v5307
        %6918 = vmatprep.subr.bf16.mxu0 %v5312
        %6919 = vmatpush1.bf16.msra.mxu0 %v5311
        %6920 = vmatprep.subr.bf16.mxu0 %v5316
        %6921 = vmatpush1.bf16.msra.mxu0 %v5315
        %6922 = vmatprep.subr.bf16.mxu0 %v5320
        %6923 = vmatpush1.bf16.msra.mxu0 %v5319
        %6924 = vmatprep.mubr.bf16.mxu0 %v2938
        %6925 = vmatmul.mubr.bf16.gmra.mrb[0].mxu0 %v2937
        %v6926 = vpop.f32.mrb[0].mxu0
        %v6927 = vadd.f32 %v6854, %v6926
        %v6928 = vpop.f32.mrb[0].mxu0
        %v6929 = vadd.f32 %v6856, %v6928
        %v6930 = vpop.f32.mrb[0].mxu0
        %v6931 = vadd.f32 %v6858, %v6930
        %v6932 = vpop.f32.mrb[0].mxu0
        %v6933 = vadd.f32 %v6860, %v6932
        %6934 = vmatprep.mubr.bf16.mxu0 %v2954
        %6935 = vmatmul.mubr.bf16.gmra.mrb[0].mxu0 %v2953
        %v6936 = vpop.f32.mrb[0].mxu0
        %v6937 = vadd.f32 %v6864, %v6936
        %v6938 = vpop.f32.mrb[0].mxu0
        %v6939 = vadd.f32 %v6866, %v6938
        %v6940 = vpop.f32.mrb[0].mxu0
        %v6941 = vadd.f32 %v6868, %v6940
        %v6942 = vpop.f32.mrb[0].mxu0
        %v6943 = vadd.f32 %v6870, %v6942
        %6944 = vmatprep.mubr.bf16.mxu0 %v2970
        %6945 = vmatmul.mubr.bf16.gmra.mrb[0].mxu0 %v2969
        %v6946 = vpop.f32.mrb[0].mxu0
        %v6947 = vadd.f32 %v6874, %v6946
        %v6948 = vpop.f32.mrb[0].mxu0
        %v6949 = vadd.f32 %v6876, %v6948
        %v6950 = vpop.f32.mrb[0].mxu0
        %v6951 = vadd.f32 %v6878, %v6950
        %v6952 = vpop.f32.mrb[0].mxu0
        %v6953 = vadd.f32 %v6880, %v6952
        %6954 = vmatprep.mubr.bf16.mxu0 %v2986
        %6955 = vmatmul.mubr.bf16.gmra.mrb[0].mxu0 %v2985
        %v6956 = vpop.f32.mrb[0].mxu0
        %v6957 = vadd.f32 %v6884, %v6956
        %v6958 = vpop.f32.mrb[0].mxu0
        %v6959 = vadd.f32 %v6886, %v6958
        %v6960 = vpop.f32.mrb[0].mxu0
        %v6961 = vadd.f32 %v6888, %v6960
        %v6962 = vpop.f32.mrb[0].mxu0
        %v6963 = vadd.f32 %v6890, %v6962
        %6964 = vdwg.mxu0
        %6965 = vmatprep.subr.bf16.mxu0 %v5324
        %6966 = vmatpush1.bf16.msra.mxu0 %v5323
        %6967 = vmatprep.subr.bf16.mxu0 %v5328
        %6968 = vmatpush1.bf16.msra.mxu0 %v5327
        %6969 = vmatprep.subr.bf16.mxu0 %v5332
        %6970 = vmatpush1.bf16.msra.mxu0 %v5331
        %6971 = vmatprep.subr.bf16.mxu0 %v5336
        %6972 = vmatpush1.bf16.msra.mxu0 %v5335
        %6973 = vmatprep.subr.bf16.mxu0 %v5340
        %6974 = vmatpush1.bf16.msra.mxu0 %v5339
        %6975 = vmatprep.subr.bf16.mxu0 %v5344
        %6976 = vmatpush1.bf16.msra.mxu0 %v5343
        %6977 = vmatprep.subr.bf16.mxu0 %v5348
        %6978 = vmatpush1.bf16.msra.mxu0 %v5347
        %6979 = vmatprep.subr.bf16.mxu0 %v5352
        %6980 = vmatpush1.bf16.msra.mxu0 %v5351
        %6981 = vmatprep.subr.bf16.mxu0 %v5356
        %6982 = vmatpush1.bf16.msra.mxu0 %v5355
        %6983 = vmatprep.subr.bf16.mxu0 %v5360
        %6984 = vmatpush1.bf16.msra.mxu0 %v5359
        %6985 = vmatprep.subr.bf16.mxu0 %v5364
        %6986 = vmatpush1.bf16.msra.mxu0 %v5363
        %6987 = vmatprep.subr.bf16.mxu0 %v5368
        %6988 = vmatpush1.bf16.msra.mxu0 %v5367
        %6989 = vmatprep.subr.bf16.mxu0 %v5372
        %6990 = vmatpush1.bf16.msra.mxu0 %v5371
        %6991 = vmatprep.subr.bf16.mxu0 %v5376
        %6992 = vmatpush1.bf16.msra.mxu0 %v5375
        %6993 = vmatprep.subr.bf16.mxu0 %v5380
        %6994 = vmatpush1.bf16.msra.mxu0 %v5379
        %6995 = vmatprep.subr.bf16.mxu0 %v5384
        %6996 = vmatpush1.bf16.msra.mxu0 %v5383
        %6997 = vmatprep.mubr.bf16.mxu0 %v2940
        %6998 = vmatmul.mubr.bf16.gmra.mrb[0].mxu0 %v2939
        %v6999 = vpop.f32.mrb[0].mxu0
        %v7000 = vadd.f32 %v6927, %v6999
        %v7001 = vpop.f32.mrb[0].mxu0
        %v7002 = vadd.f32 %v6929, %v7001
        %v7003 = vpop.f32.mrb[0].mxu0
        %v7004 = vadd.f32 %v6931, %v7003
        %v7005 = vpop.f32.mrb[0].mxu0
        %v7006 = vadd.f32 %v6933, %v7005
        %7007 = vmatprep.mubr.bf16.mxu0 %v2956
        %7008 = vmatmul.mubr.bf16.gmra.mrb[0].mxu0 %v2955
        %v7009 = vpop.f32.mrb[0].mxu0
        %v7010 = vadd.f32 %v6937, %v7009
        %v7011 = vpop.f32.mrb[0].mxu0
        %v7012 = vadd.f32 %v6939, %v7011
        %v7013 = vpop.f32.mrb[0].mxu0
        %v7014 = vadd.f32 %v6941, %v7013
        %v7015 = vpop.f32.mrb[0].mxu0
        %v7016 = vadd.f32 %v6943, %v7015
        %7017 = vmatprep.mubr.bf16.mxu0 %v2972
        %7018 = vmatmul.mubr.bf16.gmra.mrb[0].mxu0 %v2971
        %v7019 = vpop.f32.mrb[0].mxu0
        %v7020 = vadd.f32 %v6947, %v7019
        %v7021 = vpop.f32.mrb[0].mxu0
        %v7022 = vadd.f32 %v6949, %v7021
        %v7023 = vpop.f32.mrb[0].mxu0
        %v7024 = vadd.f32 %v6951, %v7023
        %v7025 = vpop.f32.mrb[0].mxu0
        %v7026 = vadd.f32 %v6953, %v7025
        %7027 = vmatprep.mubr.bf16.mxu0 %v2988
        %7028 = vmatmul.mubr.bf16.gmra.mrb[0].mxu0 %v2987
        %v7029 = vpop.f32.mrb[0].mxu0
        %v7030 = vadd.f32 %v6957, %v7029
        %v7031 = vpop.f32.mrb[0].mxu0
        %v7032 = vadd.f32 %v6959, %v7031
        %v7033 = vpop.f32.mrb[0].mxu0
        %v7034 = vadd.f32 %v6961, %v7033
        %v7035 = vpop.f32.mrb[0].mxu0
        %v7036 = vadd.f32 %v6963, %v7035
        %7037 = vdwg.mxu0
        %7038 = vmatprep.subr.bf16.mxu0 %v5388
        %7039 = vmatpush1.bf16.msra.mxu0 %v5387
        %7040 = vmatprep.subr.bf16.mxu0 %v5392
        %7041 = vmatpush1.bf16.msra.mxu0 %v5391
        %7042 = vmatprep.subr.bf16.mxu0 %v5396
        %7043 = vmatpush1.bf16.msra.mxu0 %v5395
        %7044 = vmatprep.subr.bf16.mxu0 %v5400
        %7045 = vmatpush1.bf16.msra.mxu0 %v5399
        %7046 = vmatprep.subr.bf16.mxu0 %v5404
        %7047 = vmatpush1.bf16.msra.mxu0 %v5403
        %7048 = vmatprep.subr.bf16.mxu0 %v5408
        %7049 = vmatpush1.bf16.msra.mxu0 %v5407
        %7050 = vmatprep.subr.bf16.mxu0 %v5412
        %7051 = vmatpush1.bf16.msra.mxu0 %v5411
        %7052 = vmatprep.subr.bf16.mxu0 %v5416
        %7053 = vmatpush1.bf16.msra.mxu0 %v5415
        %7054 = vmatprep.subr.bf16.mxu0 %v5420
        %7055 = vmatpush1.bf16.msra.mxu0 %v5419
        %7056 = vmatprep.subr.bf16.mxu0 %v5424
        %7057 = vmatpush1.bf16.msra.mxu0 %v5423
        %7058 = vmatprep.subr.bf16.mxu0 %v5428
        %7059 = vmatpush1.bf16.msra.mxu0 %v5427
        %7060 = vmatprep.subr.bf16.mxu0 %v5432
        %7061 = vmatpush1.bf16.msra.mxu0 %v5431
        %7062 = vmatprep.subr.bf16.mxu0 %v5436
        %7063 = vmatpush1.bf16.msra.mxu0 %v5435
        %7064 = vmatprep.subr.bf16.mxu0 %v5440
        %7065 = vmatpush1.bf16.msra.mxu0 %v5439
        %7066 = vmatprep.subr.bf16.mxu0 %v5444
        %7067 = vmatpush1.bf16.msra.mxu0 %v5443
        %7068 = vmatprep.subr.bf16.mxu0 %v5448
        %7069 = vmatpush1.bf16.msra.mxu0 %v5447
        %7070 = vmatprep.mubr.bf16.mxu0 %v2942
        %7071 = vmatmul.mubr.bf16.gmra.mrb[0].mxu0 %v2941
        %v7072 = vpop.f32.mrb[0].mxu0
        %v7073 = vadd.f32 %v7000, %v7072
        %v7074 = vpop.f32.mrb[0].mxu0
        %v7075 = vadd.f32 %v7002, %v7074
        %v7076 = vpop.f32.mrb[0].mxu0
        %v7077 = vadd.f32 %v7004, %v7076
        %v7078 = vpop.f32.mrb[0].mxu0
        %v7079 = vadd.f32 %v7006, %v7078
        %7080 = vmatprep.mubr.bf16.mxu0 %v2958
        %7081 = vmatmul.mubr.bf16.gmra.mrb[0].mxu0 %v2957
        %v7082 = vpop.f32.mrb[0].mxu0
        %v7083 = vadd.f32 %v7010, %v7082
        %v7084 = vpop.f32.mrb[0].mxu0
        %v7085 = vadd.f32 %v7012, %v7084
        %v7086 = vpop.f32.mrb[0].mxu0
        %v7087 = vadd.f32 %v7014, %v7086
        %v7088 = vpop.f32.mrb[0].mxu0
        %v7089 = vadd.f32 %v7016, %v7088
        %7090 = vmatprep.mubr.bf16.mxu0 %v2974
        %7091 = vmatmul.mubr.bf16.gmra.mrb[0].mxu0 %v2973
        %v7092 = vpop.f32.mrb[0].mxu0
        %v7093 = vadd.f32 %v7020, %v7092
        %v7094 = vpop.f32.mrb[0].mxu0
        %v7095 = vadd.f32 %v7022, %v7094
        %v7096 = vpop.f32.mrb[0].mxu0
        %v7097 = vadd.f32 %v7024, %v7096
        %v7098 = vpop.f32.mrb[0].mxu0
        %v7099 = vadd.f32 %v7026, %v7098
        %7100 = vmatprep.mubr.bf16.mxu0 %v2990
        %7101 = vmatmul.mubr.bf16.gmra.mrb[0].mxu0 %v2989
        %v7102 = vpop.f32.mrb[0].mxu0
        %v7103 = vadd.f32 %v7030, %v7102
        %v7104 = vpop.f32.mrb[0].mxu0
        %v7105 = vadd.f32 %v7032, %v7104
        %v7106 = vpop.f32.mrb[0].mxu0
        %v7107 = vadd.f32 %v7034, %v7106
        %v7108 = vpop.f32.mrb[0].mxu0
        %v7109 = vadd.f32 %v7036, %v7108
        %7110 = vdwg.mxu0
        %7111 = vmatprep.subr.bf16.mxu0 %v5452
        %7112 = vmatpush1.bf16.msra.mxu0 %v5451
        %7113 = vmatprep.subr.bf16.mxu0 %v5456
        %7114 = vmatpush1.bf16.msra.mxu0 %v5455
        %7115 = vmatprep.subr.bf16.mxu0 %v5460
        %7116 = vmatpush1.bf16.msra.mxu0 %v5459
        %7117 = vmatprep.subr.bf16.mxu0 %v5464
        %7118 = vmatpush1.bf16.msra.mxu0 %v5463
        %7119 = vmatprep.subr.bf16.mxu0 %v5468
        %7120 = vmatpush1.bf16.msra.mxu0 %v5467
        %7121 = vmatprep.subr.bf16.mxu0 %v5472
        %7122 = vmatpush1.bf16.msra.mxu0 %v5471
        %7123 = vmatprep.subr.bf16.mxu0 %v5476
        %7124 = vmatpush1.bf16.msra.mxu0 %v5475
        %7125 = vmatprep.subr.bf16.mxu0 %v5480
        %7126 = vmatpush1.bf16.msra.mxu0 %v5479
        %7127 = vmatprep.subr.bf16.mxu0 %v5484
        %7128 = vmatpush1.bf16.msra.mxu0 %v5483
        %7129 = vmatprep.subr.bf16.mxu0 %v5488
        %7130 = vmatpush1.bf16.msra.mxu0 %v5487
        %7131 = vmatprep.subr.bf16.mxu0 %v5492
        %7132 = vmatpush1.bf16.msra.mxu0 %v5491
        %7133 = vmatprep.subr.bf16.mxu0 %v5496
        %7134 = vmatpush1.bf16.msra.mxu0 %v5495
        %7135 = vmatprep.subr.bf16.mxu0 %v5500
        %7136 = vmatpush1.bf16.msra.mxu0 %v5499
        %7137 = vmatprep.subr.bf16.mxu0 %v5504
        %7138 = vmatpush1.bf16.msra.mxu0 %v5503
        %7139 = vmatprep.subr.bf16.mxu0 %v5508
        %7140 = vmatpush1.bf16.msra.mxu0 %v5507
        %7141 = vmatprep.subr.bf16.mxu0 %v5512
        %7142 = vmatpush1.bf16.msra.mxu0 %v5511
        %7143 = vmatprep.mubr.bf16.mxu0 %v2944
        %7144 = vmatmul.mubr.bf16.gmra.mrb[0].mxu0 %v2943
        %v7145 = vpop.f32.mrb[0].mxu0
        %v7146 = vadd.f32 %v7073, %v7145
        %v7147 = vpop.f32.mrb[0].mxu0
        %v7148 = vadd.f32 %v7075, %v7147
        %v7149 = vpop.f32.mrb[0].mxu0
        %v7150 = vadd.f32 %v7077, %v7149
        %v7151 = vpop.f32.mrb[0].mxu0
        %v7152 = vadd.f32 %v7079, %v7151
        %7153 = vmatprep.mubr.bf16.mxu0 %v2960
        %7154 = vmatmul.mubr.bf16.gmra.mrb[0].mxu0 %v2959
        %v7155 = vpop.f32.mrb[0].mxu0
        %v7156 = vadd.f32 %v7083, %v7155
        %v7157 = vpop.f32.mrb[0].mxu0
        %v7158 = vadd.f32 %v7085, %v7157
        %v7159 = vpop.f32.mrb[0].mxu0
        %v7160 = vadd.f32 %v7087, %v7159
        %v7161 = vpop.f32.mrb[0].mxu0
        %v7162 = vadd.f32 %v7089, %v7161
        %7163 = vmatprep.mubr.bf16.mxu0 %v2976
        %7164 = vmatmul.mubr.bf16.gmra.mrb[0].mxu0 %v2975
        %v7165 = vpop.f32.mrb[0].mxu0
        %v7166 = vadd.f32 %v7093, %v7165
        %v7167 = vpop.f32.mrb[0].mxu0
        %v7168 = vadd.f32 %v7095, %v7167
        %v7169 = vpop.f32.mrb[0].mxu0
        %v7170 = vadd.f32 %v7097, %v7169
        %v7171 = vpop.f32.mrb[0].mxu0
        %v7172 = vadd.f32 %v7099, %v7171
        %7173 = vmatprep.mubr.bf16.mxu0 %v2992
        %7174 = vmatmul.mubr.bf16.gmra.mrb[0].mxu0 %v2991
        %v7175 = vpop.f32.mrb[0].mxu0
        %v7176 = vadd.f32 %v7103, %v7175
        %v7177 = vpop.f32.mrb[0].mxu0
        %v7178 = vadd.f32 %v7105, %v7177
        %v7179 = vpop.f32.mrb[0].mxu0
        %v7180 = vadd.f32 %v7107, %v7179
        %v7181 = vpop.f32.mrb[0].mxu0
        %v7182 = vadd.f32 %v7109, %v7181
        %7183 = vdwg.mxu0
        %7184 = vmatprep.subr.bf16.mxu0 %v5516
        %7185 = vmatpush1.bf16.msra.mxu0 %v5515
        %7186 = vmatprep.subr.bf16.mxu0 %v5520
        %7187 = vmatpush1.bf16.msra.mxu0 %v5519
        %7188 = vmatprep.subr.bf16.mxu0 %v5524
        %7189 = vmatpush1.bf16.msra.mxu0 %v5523
        %7190 = vmatprep.subr.bf16.mxu0 %v5528
        %7191 = vmatpush1.bf16.msra.mxu0 %v5527
        %7192 = vmatprep.subr.bf16.mxu0 %v5532
        %7193 = vmatpush1.bf16.msra.mxu0 %v5531
        %7194 = vmatprep.subr.bf16.mxu0 %v5536
        %7195 = vmatpush1.bf16.msra.mxu0 %v5535
        %7196 = vmatprep.subr.bf16.mxu0 %v5540
        %7197 = vmatpush1.bf16.msra.mxu0 %v5539
        %7198 = vmatprep.subr.bf16.mxu0 %v5544
        %7199 = vmatpush1.bf16.msra.mxu0 %v5543
        %7200 = vmatprep.subr.bf16.mxu0 %v5548
        %7201 = vmatpush1.bf16.msra.mxu0 %v5547
        %7202 = vmatprep.subr.bf16.mxu0 %v5552
        %7203 = vmatpush1.bf16.msra.mxu0 %v5551
        %7204 = vmatprep.subr.bf16.mxu0 %v5556
        %7205 = vmatpush1.bf16.msra.mxu0 %v5555
        %7206 = vmatprep.subr.bf16.mxu0 %v5560
        %7207 = vmatpush1.bf16.msra.mxu0 %v5559
        %7208 = vmatprep.subr.bf16.mxu0 %v5564
        %7209 = vmatpush1.bf16.msra.mxu0 %v5563
        %7210 = vmatprep.subr.bf16.mxu0 %v5568
        %7211 = vmatpush1.bf16.msra.mxu0 %v5567
        %7212 = vmatprep.subr.bf16.mxu0 %v5572
        %7213 = vmatpush1.bf16.msra.mxu0 %v5571
        %7214 = vmatprep.subr.bf16.mxu0 %v5576
        %7215 = vmatpush1.bf16.msra.mxu0 %v5575
        %7216 = vmatprep.mubr.bf16.mxu0 %v2946
        %7217 = vmatmul.mubr.bf16.gmra.mrb[0].mxu0 %v2945
        %v7218 = vpop.f32.mrb[0].mxu0
        %v7219 = vadd.f32 %v7146, %v7218
        %v7220 = vpop.f32.mrb[0].mxu0
        %v7221 = vadd.f32 %v7148, %v7220
        %v7222 = vpop.f32.mrb[0].mxu0
        %v7223 = vadd.f32 %v7150, %v7222
        %v7224 = vpop.f32.mrb[0].mxu0
        %v7225 = vadd.f32 %v7152, %v7224
        %7226 = vmatprep.mubr.bf16.mxu0 %v2962
        %7227 = vmatmul.mubr.bf16.gmra.mrb[0].mxu0 %v2961
        %v7228 = vpop.f32.mrb[0].mxu0
        %v7229 = vadd.f32 %v7156, %v7228
        %v7230 = vpop.f32.mrb[0].mxu0
        %v7231 = vadd.f32 %v7158, %v7230
        %v7232 = vpop.f32.mrb[0].mxu0
        %v7233 = vadd.f32 %v7160, %v7232
        %v7234 = vpop.f32.mrb[0].mxu0
        %v7235 = vadd.f32 %v7162, %v7234
        %7236 = vmatprep.mubr.bf16.mxu0 %v2978
        %7237 = vmatmul.mubr.bf16.gmra.mrb[0].mxu0 %v2977
        %v7238 = vpop.f32.mrb[0].mxu0
        %v7239 = vadd.f32 %v7166, %v7238
        %v7240 = vpop.f32.mrb[0].mxu0
        %v7241 = vadd.f32 %v7168, %v7240
        %v7242 = vpop.f32.mrb[0].mxu0
        %v7243 = vadd.f32 %v7170, %v7242
        %v7244 = vpop.f32.mrb[0].mxu0
        %v7245 = vadd.f32 %v7172, %v7244
        %7246 = vmatprep.mubr.bf16.mxu0 %v2994
        %7247 = vmatmul.mubr.bf16.gmra.mrb[0].mxu0 %v2993
        %v7248 = vpop.f32.mrb[0].mxu0
        %v7249 = vadd.f32 %v7176, %v7248
        %v7250 = vpop.f32.mrb[0].mxu0
        %v7251 = vadd.f32 %v7178, %v7250
        %v7252 = vpop.f32.mrb[0].mxu0
        %v7253 = vadd.f32 %v7180, %v7252
        %v7254 = vpop.f32.mrb[0].mxu0
        %v7255 = vadd.f32 %v7182, %v7254
        %7256 = vdwg.mxu0
        %v7257 = vmax.f32 %v6635, 0.0
        %v7258 = vmax.f32 %v6637, 0.0
        %v7259 = vmax.f32 %v7219, 0.0
        %v7260 = vmax.f32 %v7221, 0.0
        %v7261 = vmax.f32 %v6639, 0.0
        %v7262 = vmax.f32 %v6641, 0.0
        %v7263 = vmax.f32 %v7223, 0.0
        %v7264 = vmax.f32 %v7225, 0.0
        %v7265 = vmax.f32 %v6645, 0.0
        %v7266 = vmax.f32 %v6647, 0.0
        %v7267 = vmax.f32 %v7229, 0.0
        %v7268 = vmax.f32 %v7231, 0.0
        %v7269 = vmax.f32 %v6649, 0.0
        %v7270 = vmax.f32 %v6651, 0.0
        %v7271 = vmax.f32 %v7233, 0.0
        %v7272 = vmax.f32 %v7235, 0.0
        %v7273 = vmax.f32 %v6655, 0.0
        %v7274 = vmax.f32 %v6657, 0.0
        %v7275 = vmax.f32 %v7239, 0.0
        %v7276 = vmax.f32 %v7241, 0.0
        %v7277 = vmax.f32 %v6659, 0.0
        %v7278 = vmax.f32 %v6661, 0.0
        %v7279 = vmax.f32 %v7243, 0.0
        %v7280 = vmax.f32 %v7245, 0.0
        %v7281 = vmax.f32 %v6665, 0.0
        %v7282 = vmax.f32 %v6667, 0.0
        %v7283 = vmax.f32 %v7249, 0.0
        %v7284 = vmax.f32 %v7251, 0.0
        %v7285 = vmax.f32 %v6669, 0.0
        %v7286 = vmax.f32 %v6671, 0.0
        %v7287 = vmax.f32 %v7253, 0.0
        %v7288 = vmax.f32 %v7255, 0.0
        %v7289 = vld [vmem:[%s360] sm:$0xf]
        %v7291 = vlaneseq
        %v7292 = vshrl.u32 %v7291, 7
        %v7293 = vsub.s32 0, %v7292
        %v7294 = vrot.slane %v7289, %v7293
        %v7295 = vlaneseq
        %v7296 = vshrl.u32 %v7295, 7
        %v7297 = vsub.s32 1, %v7296
        %v7298 = vrot.slane %v7289, %v7297
        %v7299 = vlaneseq
        %v7300 = vshrl.u32 %v7299, 7
        %v7301 = vsub.s32 2, %v7300
        %v7302 = vrot.slane %v7289, %v7301
        %v7303 = vlaneseq
        %v7304 = vshrl.u32 %v7303, 7
        %v7305 = vsub.s32 3, %v7304
        %v7306 = vrot.slane %v7289, %v7305
        %v7311 = vmul.f32 %v7257, %v7294
        %v7312 = vmul.f32 %v7258, %v7298
        %v7313 = vmul.f32 %v7259, %v7302
        %v7314 = vmul.f32 %v7260, %v7306
        %v7315 = vmul.f32 %v7261, %v7294
        %v7316 = vmul.f32 %v7262, %v7298
        %v7317 = vmul.f32 %v7263, %v7302
        %v7318 = vmul.f32 %v7264, %v7306
        %v7319 = vmul.f32 %v7265, %v7294
        %v7320 = vmul.f32 %v7266, %v7298
        %v7321 = vmul.f32 %v7267, %v7302
        %v7322 = vmul.f32 %v7268, %v7306
        %v7323 = vmul.f32 %v7269, %v7294
        %v7324 = vmul.f32 %v7270, %v7298
        %v7325 = vmul.f32 %v7271, %v7302
        %v7326 = vmul.f32 %v7272, %v7306
        %v7327 = vmul.f32 %v7273, %v7294
        %v7328 = vmul.f32 %v7274, %v7298
        %v7329 = vmul.f32 %v7275, %v7302
        %v7330 = vmul.f32 %v7276, %v7306
        %v7331 = vmul.f32 %v7277, %v7294
        %v7332 = vmul.f32 %v7278, %v7298
        %v7333 = vmul.f32 %v7279, %v7302
        %v7334 = vmul.f32 %v7280, %v7306
        %v7335 = vmul.f32 %v7281, %v7294
        %v7336 = vmul.f32 %v7282, %v7298
        %v7337 = vmul.f32 %v7283, %v7302
        %v7338 = vmul.f32 %v7284, %v7306
        %v7339 = vmul.f32 %v7285, %v7294
        %v7340 = vmul.f32 %v7286, %v7298
        %v7341 = vmul.f32 %v7287, %v7302
        %v7342 = vmul.f32 %v7288, %v7306
        %v7343 = vadd.f32 %v7311, %v7312
        %v7344 = vadd.f32 %v7343, %v7313
        %v7345 = vadd.f32 %v7344, %v7314
        %7346 = vadd.xlane.f32.xlu0 %v7345
        %v7347 = vpop.xlane.xlu0 %7346
        %v7348 = vadd.f32 %v7315, %v7316
        %v7349 = vadd.f32 %v7348, %v7317
        %v7350 = vadd.f32 %v7349, %v7318
        %7351 = vadd.xlane.f32.xlu0 %v7350
        %v7352 = vpop.xlane.xlu0 %7351
        %v7353 = vadd.f32 %v7319, %v7320
        %v7354 = vadd.f32 %v7353, %v7321
        %v7355 = vadd.f32 %v7354, %v7322
        %7356 = vadd.xlane.f32.xlu0 %v7355
        %v7357 = vpop.xlane.xlu0 %7356
        %v7358 = vadd.f32 %v7323, %v7324
        %v7359 = vadd.f32 %v7358, %v7325
        %v7360 = vadd.f32 %v7359, %v7326
        %7361 = vadd.xlane.f32.xlu0 %v7360
        %v7362 = vpop.xlane.xlu0 %7361
        %v7363 = vadd.f32 %v7327, %v7328
        %v7364 = vadd.f32 %v7363, %v7329
        %v7365 = vadd.f32 %v7364, %v7330
        %7366 = vadd.xlane.f32.xlu0 %v7365
        %v7367 = vpop.xlane.xlu0 %7366
        %v7368 = vadd.f32 %v7331, %v7332
        %v7369 = vadd.f32 %v7368, %v7333
        %v7370 = vadd.f32 %v7369, %v7334
        %7371 = vadd.xlane.f32.xlu0 %v7370
        %v7372 = vpop.xlane.xlu0 %7371
        %v7373 = vadd.f32 %v7335, %v7336
        %v7374 = vadd.f32 %v7373, %v7337
        %v7375 = vadd.f32 %v7374, %v7338
        %7376 = vadd.xlane.f32.xlu0 %v7375
        %v7377 = vpop.xlane.xlu0 %7376
        %v7378 = vadd.f32 %v7339, %v7340
        %v7379 = vadd.f32 %v7378, %v7341
        %v7380 = vadd.f32 %v7379, %v7342
        %7381 = vadd.xlane.f32.xlu0 %v7380
        %v7382 = vpop.xlane.xlu0 %7381
        %v7383 = vld [vmem:[%s412] sm:$0xff]
        %v7384 = vld [vmem:[%s412 + $0x8] sm:$0xff]
        %v7385 = vld [vmem:[%s412 + $0x10] sm:$0xff]
        %v7386 = vld [vmem:[%s412 + $0x18] sm:$0xff]
        %v7387 = vld [vmem:[%s412 + $0x20] sm:$0xff]
        %v7388 = vld [vmem:[%s412 + $0x28] sm:$0xff]
        %v7389 = vld [vmem:[%s412 + $0x30] sm:$0xff]
        %v7390 = vld [vmem:[%s412 + $0x38] sm:$0xff]
        %v7391 = vadd.f32 %v7383, %v7347
        %v7392 = vadd.f32 %v7384, %v7352
        %v7393 = vadd.f32 %v7385, %v7357
        %v7394 = vadd.f32 %v7386, %v7362
        %v7395 = vadd.f32 %v7387, %v7367
        %v7396 = vadd.f32 %v7388, %v7372
        %v7397 = vadd.f32 %v7389, %v7377
        %v7398 = vadd.f32 %v7390, %v7382
        %vm7399 = vcmask 7168
        %7400 = vst.msk [vmem:[%s412] sm:$0xff] %vm7399, %v7391
        %7401 = vst.msk [vmem:[%s412 + $0x8] sm:$0xff] %vm7399, %v7392
        %7402 = vst.msk [vmem:[%s412 + $0x10] sm:$0xff] %vm7399, %v7393
        %7403 = vst.msk [vmem:[%s412 + $0x18] sm:$0xff] %vm7399, %v7394
        %7404 = vst.msk [vmem:[%s412 + $0x20] sm:$0xff] %vm7399, %v7395
        %7405 = vst.msk [vmem:[%s412 + $0x28] sm:$0xff] %vm7399, %v7396
        %7406 = vst.msk [vmem:[%s412 + $0x30] sm:$0xff] %vm7399, %v7397
        %7407 = vst.msk [vmem:[%s412 + $0x38] sm:$0xff] %vm7399, %v7398
        %s7408 = smul.u32 8, %s26
        %p7409 = scmp.lt.s32.totalorder %s7408, 7
        %s7410 = scalar_select %p7409, %s7408, 7
        %p7411 = scmp.lt.s32.totalorder %s27, 0
        %s7412 = scalar_select %p7411, %s27, 0
        %s7413 = sadd.s32 %s7412, %s7410
        %s7414 = smul.addr %s7413, 8
        %s7415 = scalar_lea.vmem %s6, %s7414
        // Predicated region
        $region69: #{tpu_custom_call.1} parent=43 // pred_check
          %p7416 = pneg %p211
        $region70: #{tpu_custom_call.1} parent=43 // pred_check_branch
          %7418 = sbr.rel (%p7416) target = $region72
        $region71: #{tpu_custom_call.1} parent=43 // pred_region
          %s7419 = smul.u32 8, %s26
        $region72: #{tpu_custom_call.1} parent=43 // pred_fallthru
          _
        // Predicated region
        $region73: #{tpu_custom_call.1} parent=43 // pred_check
          %p7420 = pneg %p211
        $region74: #{tpu_custom_call.1} parent=43 // pred_check_branch
          %7422 = sbr.rel (%p7420) target = $region76
        $region75: #{tpu_custom_call.1} parent=43 // pred_region
          %s7423 = smul.u32 8, %s26
          %p7424 = scmp.lt.s32.totalorder %s7423, 7
          %s7425 = scalar_select %p7424, %s7423, 7
          %p7426 = scmp.lt.s32.totalorder %s27, 0
          %s7427 = scalar_select %p7426, %s27, 0
          %s7428 = sadd.s32 %s7427, %s7425
          %s7429 = smul.addr %s7428, 8
          %s7430 = scalar_lea.vmem %s6, %s7429
        $region76: #{tpu_custom_call.1} parent=43 // pred_fallthru
          _
      $region44: #{tpu_custom_call.1} parent=5 // pred_fallthru
        _
      %p7431 = scmp.le.s32.totalorder 2, %s16
      // Predicated region
      $region77: #{tpu_custom_call.1} parent=5 // pred_check
        %p7432 = pneg %p7431
      $region78: #{tpu_custom_call.1} parent=5 // pred_check_branch
        %7434 = sbr.rel (%p7432) target = $region80
      $region79: #{tpu_custom_call.1} parent=5 // pred_region
        %s7435 = ssub.s32 %s16, 2
      $region80: #{tpu_custom_call.1} parent=5 // pred_fallthru
        _
    $region6: #{tpu_custom_call.1} parent=1 // loop_footer
      %s20 = sadd.s32 1, %s16
    $region7: #{tpu_custom_call.1} parent=1 // loop_footer_branch
      %15 = sbr.rel target = $region3
    $region8: #{tpu_custom_call.1} parent=1 // loop_exit
      _
    %7436 = vsyncpa [#allocation5], 1
    %s7437 = scalar_lea.sflag [#allocation5], 1
    %7438 = vsyncpa %s7437, 1
    %7439 = vsyncpa [#allocation7], 1

</llo_original>
